<compile_context>
chip_gen: v7x
topology: tpu7x:2x2x1
jax: 0.10.0
libtpu: 0.0.40
codegen_flags: <defaults>
</compile_context>

<pallas_src>
import functools
import math

import jax
import jax.numpy as jnp
import numpy as np
from jax.experimental import pallas as pl
from jax.experimental.pallas import tpu as pltpu

EPS = 1e-6


def _layer_norm(x, a, b):
    # Matches annotated-transformer LayerNorm: a*(x-mean)/(std+eps)+b,
    # with torch's default *unbiased* std (divide by D-1).
    mu = jnp.mean(x, axis=-1, keepdims=True)
    d = x - mu
    var = jnp.sum(d * d, axis=-1, keepdims=True) * (1.0 / (x.shape[-1] - 1))
    inv = pl.reciprocal(jnp.sqrt(var) + EPS, approx=True)
    return a * (d * inv) + b


def _mha_block(xq, xkv, mask_add, wq, wk, wv, wo, bq, bk, bv, bo, n_heads):
    # xq: (Bb, T, D) f32, xkv: (Bb, S, D) f32, mask_add: (Bb, Tm, S) additive
    # (0 for keep, -1e9 for masked).  Returns (Bb, T, D) f32.
    Bb, T, D = xq.shape
    S = xkv.shape[1]
    dk = D // n_heads
    scale = 1.0 / math.sqrt(dk)

    # Batched QKV projections over the flattened (Bb*T, D) block — fills MXU M.
    xqf = xq.reshape(Bb * T, D).astype(jnp.bfloat16)
    xkf = xkv.reshape(Bb * S, D).astype(jnp.bfloat16)
    q = jnp.dot(xqf, wq, preferred_element_type=jnp.float32) + bq
    k = jnp.dot(xkf, wk, preferred_element_type=jnp.float32) + bk
    v = jnp.dot(xkf, wv, preferred_element_type=jnp.float32) + bv
    q = q.reshape(Bb, T, n_heads, dk).astype(jnp.bfloat16)
    k = k.reshape(Bb, S, n_heads, dk).astype(jnp.bfloat16)
    v = v.reshape(Bb, S, n_heads, dk).astype(jnp.bfloat16)

    ctx = []
    for i in range(Bb):  # static; attention never mixes batch elements
        qh = jnp.swapaxes(q[i], 0, 1)            # (H, T, dk)
        kh = jnp.swapaxes(k[i], 0, 1)            # (H, S, dk)
        vh = jnp.swapaxes(v[i], 0, 1)            # (H, S, dk)
        s = jnp.einsum('htd,hsd->hts', qh, kh,
                       preferred_element_type=jnp.float32) * scale
        s = s + mask_add[i][None, :, :]          # additive mask, all heads at once
        s = s - jnp.max(s, axis=-1, keepdims=True)
        p = jnp.exp(s)
        p = p * pl.reciprocal(jnp.sum(p, axis=-1, keepdims=True), approx=True)
        o = jnp.einsum('hts,hsd->htd', p.astype(jnp.bfloat16), vh,
                       preferred_element_type=jnp.float32)   # (H, T, dk)
        ctx.append(jnp.swapaxes(o, 0, 1).reshape(T, D))       # concat heads
    ctx = jnp.concatenate(ctx, axis=0)           # (Bb*T, D)

    # One full-K output projection for the whole block.
    out = jnp.dot(ctx.astype(jnp.bfloat16), wo,
                  preferred_element_type=jnp.float32) + bo
    return out.reshape(Bb, T, D)


def _decoder_layer_kernel(x_ref, mem_ref, smask_ref, tmask_ref,
                          attn_w_ref, attn_b_ref,
                          w1_ref, b1_ref, w2_ref, b2_ref,
                          ln_a_ref, ln_b_ref, fn_a_ref, fn_b_ref,
                          out_ref, x_acc, *, n_heads):
    l = pl.program_id(1)

    # Initialize the residual-stream carry at the first layer of this batch block.
    @pl.when(l == 0)
    def _():
        x_acc[...] = x_ref[...].astype(jnp.float32)

    x = x_acc[...]                      # (Bb, T, D) f32 residual stream
    mem = mem_ref[...]                  # (Bb, S, D) f32 encoder memory
    smask = smask_ref[...]              # (Bb, 1, S) additive src mask
    tmask = tmask_ref[...]              # (Bb, T, T) additive tgt mask
    ln_a = ln_a_ref[0]                  # (3, D)
    ln_b = ln_b_ref[0]                  # (3, D)

    # --- sublayer 0: masked self-attention -----------------------------------
    xn = _layer_norm(x, ln_a[0], ln_b[0])
    x = x + _mha_block(xn, xn, tmask,
                       attn_w_ref[0], attn_w_ref[1], attn_w_ref[2], attn_w_ref[3],
                       attn_b_ref[0], attn_b_ref[1], attn_b_ref[2], attn_b_ref[3],
                       n_heads)

    # --- sublayer 1: cross-attention over encoder memory ---------------------
    xn = _layer_norm(x, ln_a[1], ln_b[1])
    x = x + _mha_block(xn, mem, smask,
                       attn_w_ref[4], attn_w_ref[5], attn_w_ref[6], attn_w_ref[7],
                       attn_b_ref[4], attn_b_ref[5], attn_b_ref[6], attn_b_ref[7],
                       n_heads)

    # --- sublayer 2: position-wise feed-forward -------------------------------
    Bb, T, D = x.shape
    xn = _layer_norm(x, ln_a[2], ln_b[2])
    xf = xn.reshape(Bb * T, D).astype(jnp.bfloat16)
    h = jnp.maximum(
        jnp.dot(xf, w1_ref[0], preferred_element_type=jnp.float32) + b1_ref[0],
        0.0)
    y = jnp.dot(h.astype(jnp.bfloat16), w2_ref[0],
                preferred_element_type=jnp.float32) + b2_ref[0]
    x = x + y.reshape(Bb, T, D)

    x_acc[...] = x

    # Final LayerNorm + writeback after the last layer.
    @pl.when(l == pl.num_programs(1) - 1)
    def _():
        out_ref[...] = _layer_norm(x, fn_a_ref[...], fn_b_ref[...]).astype(out_ref.dtype)


def decoder_forward(x, memory, src_mask, tgt_mask, params, *, n_layers, n_heads,
                    batch_block=1):
    B, T, D = x.shape
    S = memory.shape[1]
    F = params["w1"].shape[-1]
    Bb = batch_block
    assert B % Bb == 0, "batch must be divisible by batch_block"

    # Additive masks (0 keep / -1e9 masked), computed once outside the kernel.
    src_add = (src_mask.astype(jnp.float32) - 1.0) * 1e9   # (B, 1, S)
    tgt_add = (tgt_mask.astype(jnp.float32) - 1.0) * 1e9   # (B, T, T)

    # bf16 weights: half the DMA/VMEM footprint, bf16 MXU rate; f32 accumulation.
    attn_w = params["attn_w"].astype(jnp.bfloat16)
    w1 = params["w1"].astype(jnp.bfloat16)
    w2 = params["w2"].astype(jnp.bfloat16)

    kernel = functools.partial(_decoder_layer_kernel, n_heads=n_heads)

    return pl.pallas_call(
        kernel,
        out_shape=jax.ShapeDtypeStruct((B, T, D), jnp.float32),
        grid_spec=pltpu.PrefetchScalarGridSpec(
            num_scalar_prefetch=0,
            grid=(B // Bb, n_layers),          # batch (parallel) x layer (arbitrary)
            in_specs=[
                pl.BlockSpec((Bb, T, D), lambda b, l: (b, 0, 0)),   # x (fetched once per b)
                pl.BlockSpec((Bb, S, D), lambda b, l: (b, 0, 0)),   # memory
                pl.BlockSpec((Bb, 1, S), lambda b, l: (b, 0, 0)),   # additive src mask
                pl.BlockSpec((Bb, T, T), lambda b, l: (b, 0, 0)),   # additive tgt mask
                pl.BlockSpec((8, D, D), lambda b, l: (l, 0, 0)),    # this layer's 8 attn W (bf16)
                pl.BlockSpec((8, D), lambda b, l: (l, 0)),          # this layer's 8 attn biases
                pl.BlockSpec((1, D, F), lambda b, l: (l, 0, 0)),    # W1 (bf16)
                pl.BlockSpec((1, 1, F), lambda b, l: (l, 0, 0)),    # b1
                pl.BlockSpec((1, F, D), lambda b, l: (l, 0, 0)),    # W2 (bf16)
                pl.BlockSpec((1, 1, D), lambda b, l: (l, 0, 0)),    # b2
                pl.BlockSpec((1, 3, D), lambda b, l: (l, 0, 0)),    # per-layer LN scale
                pl.BlockSpec((1, 3, D), lambda b, l: (l, 0, 0)),    # per-layer LN bias
                pl.BlockSpec((1, D), lambda b, l: (0, 0)),          # final LN a
                pl.BlockSpec((1, D), lambda b, l: (0, 0)),          # final LN b
            ],
            out_specs=pl.BlockSpec((Bb, T, D), lambda b, l: (b, 0, 0)),
            scratch_shapes=[pltpu.VMEM((Bb, T, D), jnp.float32)],   # residual-stream carry
        ),
        compiler_params=pltpu.CompilerParams(
            dimension_semantics=("parallel", "arbitrary"),
            vmem_limit_bytes=64 * 1024 * 1024,
        ),
    )(x, memory, src_add, tgt_add,
      attn_w, params["attn_b"], w1, params["b1"], w2, params["b2"],
      params["ln_a"], params["ln_b"], params["fn_a"], params["fn_b"])


def reference_decoder(x, memory, src_mask, tgt_mask, params, *, n_layers, n_heads):
    # Pure-JAX f32 reference with the same decoder semantics.
    B, T, D = x.shape
    dk = D // n_heads
    src_add = (src_mask.astype(jnp.float32) - 1.0) * 1e9
    tgt_add = (tgt_mask.astype(jnp.float32) - 1.0) * 1e9

    def ln(z, a, b):
        mu = z.mean(-1, keepdims=True)
        d = z - mu
        var = (d * d).sum(-1, keepdims=True) / (D - 1)
        return a * d / (jnp.sqrt(var) + EPS) + b

    def mha(xq, xkv, madd, wq, wk, wv, wo, bq, bk, bv, bo):
        q = (xq @ wq + bq).reshape(B, -1, n_heads, dk)
        k = (xkv @ wk + bk).reshape(B, -1, n_heads, dk)
        v = (xkv @ wv + bv).reshape(B, -1, n_heads, dk)
        s = jnp.einsum('bthd,bshd->bhts', q, k) / math.sqrt(dk)
        s = s + madd[:, None, :, :]
        p = jax.nn.softmax(s, axis=-1)
        o = jnp.einsum('bhts,bshd->bthd', p, v).reshape(B, -1, D)
        return o @ wo + bo

    aw, ab = params["attn_w"], params["attn_b"]
    for l in range(n_layers):
        la, lb = params["ln_a"][l], params["ln_b"][l]
        base = 8 * l
        xn = ln(x, la[0], lb[0])
        x = x + mha(xn, xn, tgt_add,
                    aw[base + 0], aw[base + 1], aw[base + 2], aw[base + 3],
                    ab[base + 0], ab[base + 1], ab[base + 2], ab[base + 3])
        xn = ln(x, la[1], lb[1])
        x = x + mha(xn, memory, src_add,
                    aw[base + 4], aw[base + 5], aw[base + 6], aw[base + 7],
                    ab[base + 4], ab[base + 5], ab[base + 6], ab[base + 7])
        xn = ln(x, la[2], lb[2])
        h = jax.nn.relu(xn @ params["w1"][l] + params["b1"][l])
        x = x + h @ params["w2"][l] + params["b2"][l]
    return ln(x, params["fn_a"], params["fn_b"])


def init_params(key, n_layers, d_model, d_ff):
    ks = jax.random.split(key, 8)
    return {
        # attn weights flattened as (layer, {self,cross}, {q,k,v,o}) -> N*8
        "attn_w": 0.05 * jax.random.normal(ks[0], (n_layers * 8, d_model, d_model),
                                           jnp.float32),
        "attn_b": 0.01 * jax.random.normal(ks[1], (n_layers * 8, d_model), jnp.float32),
        "w1": 0.05 * jax.random.normal(ks[2], (n_layers, d_model, d_ff), jnp.float32),
        "b1": 0.01 * jax.random.normal(ks[3], (n_layers, 1, d_ff), jnp.float32),
        "w2": 0.05 * jax.random.normal(ks[4], (n_layers, d_ff, d_model), jnp.float32),
        "b2": 0.01 * jax.random.normal(ks[5], (n_layers, 1, d_model), jnp.float32),
        "ln_a": 1.0 + 0.1 * jax.random.normal(ks[6], (n_layers, 3, d_model), jnp.float32),
        "ln_b": 0.1 * jax.random.normal(ks[7], (n_layers, 3, d_model), jnp.float32),
        "fn_a": jnp.ones((1, d_model), jnp.float32),
        "fn_b": jnp.zeros((1, d_model), jnp.float32),
    }


if __name__ == "__main__":
    B, T, S, D, H, FF, N = 4, 8, 8, 32, 4, 64, 2
    Bb = 2   # batch elements per grid step (grid = (B//Bb, N) -> 2 parallel steps)

    key = jax.random.PRNGKey(0)
    k_x, k_m, k_p = jax.random.split(key, 3)

    x = jax.random.normal(k_x, (B, T, D), jnp.float32)
    memory = jax.random.normal(k_m, (B, S, D), jnp.float32)

    # tgt_mask: causal (subsequent) mask; src_mask: padding mask (last 2 src
    # positions of batch element 1 masked out).
    tgt_mask = jnp.tril(jnp.ones((T, T), jnp.float32))[None].repeat(B, axis=0)
    src_mask = jnp.ones((B, 1, S), jnp.float32)
    src_mask = src_mask.at[1, 0, S - 2:].set(0.0)

    params = init_params(k_p, N, D, FF)

    out = decoder_forward(x, memory, src_mask, tgt_mask, params,
                          n_layers=N, n_heads=H, batch_block=Bb)
    out = jax.block_until_ready(out)

    with jax.default_matmul_precision("highest"):
        ref = reference_decoder(x, memory, src_mask, tgt_mask, params,
                                n_layers=N, n_heads=H)
    ref = jax.block_until_ready(ref)

    assert out.shape == (B, T, D)
    # bf16 matmuls + approx reciprocals in the kernel vs f32 reference.
    np.testing.assert_allclose(np.asarray(out), np.asarray(ref),
                               rtol=3e-2, atol=3e-2)
    print("KERNEL_OK")
</pallas_src>

<mosaic_0001>
module attributes {stable_mosaic.version = 11 : i64} {
  func.func @_decoder_layer_kernel(%arg0: i32, %arg1: i32, %arg2: memref<2x8x32xf32, #tpu.memory_space<vmem>>, %arg3: memref<2x8x32xf32, #tpu.memory_space<vmem>>, %arg4: memref<2x1x8xf32, #tpu.memory_space<vmem>>, %arg5: memref<2x8x8xf32, #tpu.memory_space<vmem>>, %arg6: memref<8x32x32xbf16, #tpu.memory_space<vmem>>, %arg7: memref<8x32xf32, #tpu.memory_space<vmem>>, %arg8: memref<1x32x64xbf16, #tpu.memory_space<vmem>>, %arg9: memref<1x1x64xf32, #tpu.memory_space<vmem>>, %arg10: memref<1x64x32xbf16, #tpu.memory_space<vmem>>, %arg11: memref<1x1x32xf32, #tpu.memory_space<vmem>>, %arg12: memref<1x3x32xf32, #tpu.memory_space<vmem>>, %arg13: memref<1x3x32xf32, #tpu.memory_space<vmem>>, %arg14: memref<1x32xf32, #tpu.memory_space<vmem>>, %arg15: memref<1x32xf32, #tpu.memory_space<vmem>>, %arg16: memref<2x8x32xf32, #tpu.memory_space<vmem>>, %arg17: memref<2x8x32xf32, #tpu.memory_space<vmem>>) attributes {dimension_semantics = [#tpu.dimension_semantics<parallel>, #tpu.dimension_semantics<arbitrary>], iteration_bounds = array<i64: 2, 2>, scalar_prefetch = 0 : i64, scratch_operands = 1 : i64, tpu.core_type = #tpu.core_type<tc>, window_params = [{transform_indices = @transform_0, window_bounds = array<i64: 2, 8, 32>}, {transform_indices = @transform_1, window_bounds = array<i64: 2, 8, 32>}, {transform_indices = @transform_2, window_bounds = array<i64: 2, 1, 8>}, {transform_indices = @transform_3, window_bounds = array<i64: 2, 8, 8>}, {transform_indices = @transform_4, window_bounds = array<i64: 8, 32, 32>}, {transform_indices = @transform_5, window_bounds = array<i64: 8, 32>}, {transform_indices = @transform_6, window_bounds = array<i64: 1, 32, 64>}, {transform_indices = @transform_7, window_bounds = array<i64: 1, 1, 64>}, {transform_indices = @transform_8, window_bounds = array<i64: 1, 64, 32>}, {transform_indices = @transform_9, window_bounds = array<i64: 1, 1, 32>}, {transform_indices = @transform_10, window_bounds = array<i64: 1, 3, 32>}, {transform_indices = @transform_11, window_bounds = array<i64: 1, 3, 32>}, {pipeline_mode = #tpu.pipeline_mode<synchronous>, transform_indices = @transform_12, window_bounds = array<i64: 1, 32>}, {pipeline_mode = #tpu.pipeline_mode<synchronous>, transform_indices = @transform_13, window_bounds = array<i64: 1, 32>}, {transform_indices = @transform_14, window_bounds = array<i64: 2, 8, 32>}]} {
    %c0_i32 = arith.constant 0 : i32
    %0 = arith.cmpi eq, %arg1, %c0_i32 : i32
    %1 = arith.extui %0 : i1 to i32
    %c0_i32_0 = arith.constant 0 : i32
    %2 = arith.cmpi ne, %1, %c0_i32_0 : i32
    scf.if %2 {
      %c0_112 = arith.constant 0 : index
      %c0_113 = arith.constant 0 : index
      %c0_114 = arith.constant 0 : index
      %333 = vector.load %arg2[%c0_112, %c0_113, %c0_114] : memref<2x8x32xf32, #tpu.memory_space<vmem>>, vector<2x8x32xf32>
      %c0_115 = arith.constant 0 : index
      %c0_116 = arith.constant 0 : index
      %c0_117 = arith.constant 0 : index
      %334 = vector.load %arg17[%c0_115, %c0_116, %c0_117] : memref<2x8x32xf32, #tpu.memory_space<vmem>>, vector<2x8x32xf32>
      tpu.vector_store %arg17[%c0_115, %c0_116, %c0_117], %333 {strides = array<i32>} : memref<2x8x32xf32, #tpu.memory_space<vmem>>, vector<2x8x32xf32>,
    } else {
    }
    %c0 = arith.constant 0 : index
    %c0_1 = arith.constant 0 : index
    %c0_2 = arith.constant 0 : index
    %3 = vector.load %arg17[%c0, %c0_1, %c0_2] : memref<2x8x32xf32, #tpu.memory_space<vmem>>, vector<2x8x32xf32>
    %c0_3 = arith.constant 0 : index
    %c0_4 = arith.constant 0 : index
    %c0_5 = arith.constant 0 : index
    %4 = vector.load %arg3[%c0_3, %c0_4, %c0_5] : memref<2x8x32xf32, #tpu.memory_space<vmem>>, vector<2x8x32xf32>
    %c0_6 = arith.constant 0 : index
    %c0_7 = arith.constant 0 : index
    %c0_8 = arith.constant 0 : index
    %5 = vector.load %arg4[%c0_6, %c0_7, %c0_8] : memref<2x1x8xf32, #tpu.memory_space<vmem>>, vector<2x1x8xf32>
    %c0_9 = arith.constant 0 : index
    %c0_10 = arith.constant 0 : index
    %c0_11 = arith.constant 0 : index
    %6 = vector.load %arg5[%c0_9, %c0_10, %c0_11] : memref<2x8x8xf32, #tpu.memory_space<vmem>>, vector<2x8x8xf32>
    %c0_12 = arith.constant 0 : index
    %c0_13 = arith.constant 0 : index
    %c0_14 = arith.constant 0 : index
    %7 = vector.load %arg12[%c0_12, %c0_13, %c0_14] : memref<1x3x32xf32, #tpu.memory_space<vmem>>, vector<1x3x32xf32>
    %8 = vector.shape_cast %7 : vector<1x3x32xf32> to vector<3x32xf32>
    %c0_15 = arith.constant 0 : index
    %c0_16 = arith.constant 0 : index
    %c0_17 = arith.constant 0 : index
    %9 = vector.load %arg13[%c0_15, %c0_16, %c0_17] : memref<1x3x32xf32, #tpu.memory_space<vmem>>, vector<1x3x32xf32>
    %10 = vector.shape_cast %9 : vector<1x3x32xf32> to vector<3x32xf32>
    %11 = vector.extract_strided_slice %8 {offsets = [0, 0], sizes = [1, 32], strides = [1, 1]} : vector<3x32xf32> to vector<1x32xf32>
    %12 = vector.shape_cast %11 : vector<1x32xf32> to vector<32xf32>
    %13 = vector.extract_strided_slice %10 {offsets = [0, 0], sizes = [1, 32], strides = [1, 1]} : vector<3x32xf32> to vector<1x32xf32>
    %14 = vector.shape_cast %13 : vector<1x32xf32> to vector<32xf32>
    %cst = arith.constant dense<0.000000e+00> : vector<2x8xf32>
    %15 = vector.multi_reduction <add>, %3, %cst [2] : vector<2x8x32xf32> to vector<2x8xf32>
    %16 = vector.shape_cast %15 : vector<2x8xf32> to vector<2x8x1xf32>
    %cst_18 = arith.constant 3.200000e+01 : f32
    %17 = vector.broadcast %cst_18 : f32 to vector<2x8x1xf32>
    %18 = arith.divf %16, %17 : vector<2x8x1xf32>
    %19 = vector.broadcast %18 : vector<2x8x1xf32> to vector<2x8x32xf32>
    %20 = arith.subf %3, %19 : vector<2x8x32xf32>
    %21 = arith.mulf %20, %20 : vector<2x8x32xf32>
    %cst_19 = arith.constant dense<0.000000e+00> : vector<2x8xf32>
    %22 = vector.multi_reduction <add>, %21, %cst_19 [2] : vector<2x8x32xf32> to vector<2x8xf32>
    %23 = vector.shape_cast %22 : vector<2x8xf32> to vector<2x8x1xf32>
    %cst_20 = arith.constant 0.0322580636 : f32
    %24 = vector.broadcast %cst_20 : f32 to vector<2x8x1xf32>
    %25 = arith.mulf %23, %24 : vector<2x8x1xf32>
    %26 = math.sqrt %25 : vector<2x8x1xf32>
    %cst_21 = arith.constant 9.99999997E-7 : f32
    %27 = vector.broadcast %cst_21 : f32 to vector<2x8x1xf32>
    %28 = arith.addf %26, %27 : vector<2x8x1xf32>
    %29 = tpu.reciprocal %28 {approx = true} : vector<2x8x1xf32> -> vector<2x8x1xf32>
    %30 = vector.broadcast %29 : vector<2x8x1xf32> to vector<2x8x32xf32>
    %31 = arith.mulf %20, %30 : vector<2x8x32xf32>
    %32 = vector.shape_cast %12 : vector<32xf32> to vector<1x1x32xf32>
    %33 = vector.broadcast %32 : vector<1x1x32xf32> to vector<2x8x32xf32>
    %34 = arith.mulf %33, %31 : vector<2x8x32xf32>
    %35 = vector.shape_cast %14 : vector<32xf32> to vector<1x1x32xf32>
    %36 = vector.broadcast %35 : vector<1x1x32xf32> to vector<2x8x32xf32>
    %37 = arith.addf %34, %36 : vector<2x8x32xf32>
    %c0_22 = arith.constant 0 : index
    %c0_23 = arith.constant 0 : index
    %c0_24 = arith.constant 0 : index
    %38 = vector.load %arg6[%c0_22, %c0_23, %c0_24] : memref<8x32x32xbf16, #tpu.memory_space<vmem>>, vector<1x32x32xbf16>
    %39 = vector.shape_cast %38 : vector<1x32x32xbf16> to vector<32x32xbf16>
    %c1 = arith.constant 1 : index
    %c0_25 = arith.constant 0 : index
    %c0_26 = arith.constant 0 : index
    %40 = vector.load %arg6[%c1, %c0_25, %c0_26] : memref<8x32x32xbf16, #tpu.memory_space<vmem>>, vector<1x32x32xbf16>
    %41 = vector.shape_cast %40 : vector<1x32x32xbf16> to vector<32x32xbf16>
    %c2 = arith.constant 2 : index
    %c0_27 = arith.constant 0 : index
    %c0_28 = arith.constant 0 : index
    %42 = vector.load %arg6[%c2, %c0_27, %c0_28] : memref<8x32x32xbf16, #tpu.memory_space<vmem>>, vector<1x32x32xbf16>
    %43 = vector.shape_cast %42 : vector<1x32x32xbf16> to vector<32x32xbf16>
    %c3 = arith.constant 3 : index
    %c0_29 = arith.constant 0 : index
    %c0_30 = arith.constant 0 : index
    %44 = vector.load %arg6[%c3, %c0_29, %c0_30] : memref<8x32x32xbf16, #tpu.memory_space<vmem>>, vector<1x32x32xbf16>
    %45 = vector.shape_cast %44 : vector<1x32x32xbf16> to vector<32x32xbf16>
    %c0_31 = arith.constant 0 : index
    %c0_32 = arith.constant 0 : index
    %46 = vector.load %arg7[%c0_31, %c0_32] : memref<8x32xf32, #tpu.memory_space<vmem>>, vector<1x32xf32>
    %47 = vector.shape_cast %46 : vector<1x32xf32> to vector<32xf32>
    %c1_33 = arith.constant 1 : index
    %c0_34 = arith.constant 0 : index
    %48 = vector.load %arg7[%c1_33, %c0_34] : memref<8x32xf32, #tpu.memory_space<vmem>>, vector<1x32xf32>
    %49 = vector.shape_cast %48 : vector<1x32xf32> to vector<32xf32>
    %c2_35 = arith.constant 2 : index
    %c0_36 = arith.constant 0 : index
    %50 = vector.load %arg7[%c2_35, %c0_36] : memref<8x32xf32, #tpu.memory_space<vmem>>, vector<1x32xf32>
    %51 = vector.shape_cast %50 : vector<1x32xf32> to vector<32xf32>
    %c3_37 = arith.constant 3 : index
    %c0_38 = arith.constant 0 : index
    %52 = vector.load %arg7[%c3_37, %c0_38] : memref<8x32xf32, #tpu.memory_space<vmem>>, vector<1x32xf32>
    %53 = vector.shape_cast %52 : vector<1x32xf32> to vector<32xf32>
    %54 = vector.shape_cast %37 : vector<2x8x32xf32> to vector<16x32xf32>
    %55 = arith.truncf %54 : vector<16x32xf32> to vector<16x32xbf16>
    %56 = vector.shape_cast %37 : vector<2x8x32xf32> to vector<16x32xf32>
    %57 = arith.truncf %56 : vector<16x32xf32> to vector<16x32xbf16>
    %cst_39 = arith.constant dense<0.000000e+00> : vector<16x32xf32>
    %58 = tpu.matmul %55, %39, %cst_39 {dimension_numbers = #tpu.dot_dimension_numbers<[1], [0], [0], [1], [0, 0, 1, 1], [], []>} : vector<16x32xbf16>, vector<32x32xbf16>, vector<16x32xf32> -> vector<16x32xf32>
    %59 = vector.shape_cast %47 : vector<32xf32> to vector<1x32xf32>
    %60 = vector.broadcast %59 : vector<1x32xf32> to vector<16x32xf32>
    %61 = arith.addf %58, %60 : vector<16x32xf32>
    %cst_40 = arith.constant dense<0.000000e+00> : vector<16x32xf32>
    %62 = tpu.matmul %57, %41, %cst_40 {dimension_numbers = #tpu.dot_dimension_numbers<[1], [0], [0], [1], [0, 0, 1, 1], [], []>} : vector<16x32xbf16>, vector<32x32xbf16>, vector<16x32xf32> -> vector<16x32xf32>
    %63 = vector.shape_cast %49 : vector<32xf32> to vector<1x32xf32>
    %64 = vector.broadcast %63 : vector<1x32xf32> to vector<16x32xf32>
    %65 = arith.addf %62, %64 : vector<16x32xf32>
    %cst_41 = arith.constant dense<0.000000e+00> : vector<16x32xf32>
    %66 = tpu.matmul %57, %43, %cst_41 {dimension_numbers = #tpu.dot_dimension_numbers<[1], [0], [0], [1], [0, 0, 1, 1], [], []>} : vector<16x32xbf16>, vector<32x32xbf16>, vector<16x32xf32> -> vector<16x32xf32>
    %67 = vector.shape_cast %51 : vector<32xf32> to vector<1x32xf32>
    %68 = vector.broadcast %67 : vector<1x32xf32> to vector<16x32xf32>
    %69 = arith.addf %66, %68 : vector<16x32xf32>
    %70 = vector.shape_cast %61 : vector<16x32xf32> to vector<2x8x4x8xf32>
    %71 = arith.truncf %70 : vector<2x8x4x8xf32> to vector<2x8x4x8xbf16>
    %72 = vector.shape_cast %65 : vector<16x32xf32> to vector<2x8x4x8xf32>
    %73 = arith.truncf %72 : vector<2x8x4x8xf32> to vector<2x8x4x8xbf16>
    %74 = vector.shape_cast %69 : vector<16x32xf32> to vector<2x8x4x8xf32>
    %75 = arith.truncf %74 : vector<2x8x4x8xf32> to vector<2x8x4x8xbf16>
    %76 = vector.extract_strided_slice %71 {offsets = [0, 0, 0, 0], sizes = [1, 8, 4, 8], strides = [1, 1, 1, 1]} : vector<2x8x4x8xbf16> to vector<1x8x4x8xbf16>
    %77 = vector.shape_cast %76 : vector<1x8x4x8xbf16> to vector<8x4x8xbf16>
    %78 = tpu.transpose %77, [1, 0, 2] : vector<8x4x8xbf16> -> vector<4x8x8xbf16>
    %79 = vector.extract_strided_slice %73 {offsets = [0, 0, 0, 0], sizes = [1, 8, 4, 8], strides = [1, 1, 1, 1]} : vector<2x8x4x8xbf16> to vector<1x8x4x8xbf16>
    %80 = vector.shape_cast %79 : vector<1x8x4x8xbf16> to vector<8x4x8xbf16>
    %81 = tpu.transpose %80, [1, 0, 2] : vector<8x4x8xbf16> -> vector<4x8x8xbf16>
    %82 = vector.extract_strided_slice %75 {offsets = [0, 0, 0, 0], sizes = [1, 8, 4, 8], strides = [1, 1, 1, 1]} : vector<2x8x4x8xbf16> to vector<1x8x4x8xbf16>
    %83 = vector.shape_cast %82 : vector<1x8x4x8xbf16> to vector<8x4x8xbf16>
    %84 = tpu.transpose %83, [1, 0, 2] : vector<8x4x8xbf16> -> vector<4x8x8xbf16>
    "tpu.trace_start"() <{level = 10 : i32, message = "htd,hsd->hts"}> : () -> ()
    %cst_42 = arith.constant dense<0.000000e+00> : vector<4x8x8xf32>
    %85 = tpu.matmul %78, %81, %cst_42 {dimension_numbers = #tpu.dot_dimension_numbers<[2], [2], [1], [1], [0, 0, 0, 1, 1, 1], [0], [0]>} : vector<4x8x8xbf16>, vector<4x8x8xbf16>, vector<4x8x8xf32> -> vector<4x8x8xf32>
    "tpu.trace_stop"() : () -> ()
    %cst_43 = arith.constant 0.353553385 : f32
    %86 = vector.broadcast %cst_43 : f32 to vector<4x8x8xf32>
    %87 = arith.mulf %85, %86 : vector<4x8x8xf32>
    %88 = vector.extract_strided_slice %6 {offsets = [0, 0, 0], sizes = [1, 8, 8], strides = [1, 1, 1]} : vector<2x8x8xf32> to vector<1x8x8xf32>
    %89 = vector.shape_cast %88 : vector<1x8x8xf32> to vector<8x8xf32>
    %90 = vector.shape_cast %89 : vector<8x8xf32> to vector<1x8x8xf32>
    %91 = vector.broadcast %90 : vector<1x8x8xf32> to vector<4x8x8xf32>
    %92 = arith.addf %87, %91 : vector<4x8x8xf32>
    %cst_44 = arith.constant dense<0xFF800000> : vector<4x8xf32>
    %93 = vector.multi_reduction <maximumf>, %92, %cst_44 [2] : vector<4x8x8xf32> to vector<4x8xf32>
    %94 = vector.shape_cast %93 : vector<4x8xf32> to vector<4x8x1xf32>
    %95 = vector.broadcast %94 : vector<4x8x1xf32> to vector<4x8x8xf32>
    %96 = arith.subf %92, %95 : vector<4x8x8xf32>
    %97 = math.exp %96 : vector<4x8x8xf32>
    %cst_45 = arith.constant dense<0.000000e+00> : vector<4x8xf32>
    %98 = vector.multi_reduction <add>, %97, %cst_45 [2] : vector<4x8x8xf32> to vector<4x8xf32>
    %99 = vector.shape_cast %98 : vector<4x8xf32> to vector<4x8x1xf32>
    %100 = tpu.reciprocal %99 {approx = true} : vector<4x8x1xf32> -> vector<4x8x1xf32>
    %101 = vector.broadcast %100 : vector<4x8x1xf32> to vector<4x8x8xf32>
    %102 = arith.mulf %97, %101 : vector<4x8x8xf32>
    %103 = arith.truncf %102 : vector<4x8x8xf32> to vector<4x8x8xbf16>
    "tpu.trace_start"() <{level = 10 : i32, message = "hts,hsd->htd"}> : () -> ()
    %cst_46 = arith.constant dense<0.000000e+00> : vector<4x8x8xf32>
    %104 = tpu.matmul %103, %84, %cst_46 {dimension_numbers = #tpu.dot_dimension_numbers<[2], [1], [1], [2], [0, 0, 0, 1, 1, 2], [0], [0]>} : vector<4x8x8xbf16>, vector<4x8x8xbf16>, vector<4x8x8xf32> -> vector<4x8x8xf32>
    "tpu.trace_stop"() : () -> ()
    %105 = tpu.transpose %104, [1, 0, 2] : vector<4x8x8xf32> -> vector<8x4x8xf32>
    %106 = vector.shape_cast %105 : vector<8x4x8xf32> to vector<8x32xf32>
    %107 = vector.extract_strided_slice %71 {offsets = [1, 0, 0, 0], sizes = [1, 8, 4, 8], strides = [1, 1, 1, 1]} : vector<2x8x4x8xbf16> to vector<1x8x4x8xbf16>
    %108 = vector.shape_cast %107 : vector<1x8x4x8xbf16> to vector<8x4x8xbf16>
    %109 = tpu.transpose %108, [1, 0, 2] : vector<8x4x8xbf16> -> vector<4x8x8xbf16>
    %110 = vector.extract_strided_slice %73 {offsets = [1, 0, 0, 0], sizes = [1, 8, 4, 8], strides = [1, 1, 1, 1]} : vector<2x8x4x8xbf16> to vector<1x8x4x8xbf16>
    %111 = vector.shape_cast %110 : vector<1x8x4x8xbf16> to vector<8x4x8xbf16>
    %112 = tpu.transpose %111, [1, 0, 2] : vector<8x4x8xbf16> -> vector<4x8x8xbf16>
    %113 = vector.extract_strided_slice %75 {offsets = [1, 0, 0, 0], sizes = [1, 8, 4, 8], strides = [1, 1, 1, 1]} : vector<2x8x4x8xbf16> to vector<1x8x4x8xbf16>
    %114 = vector.shape_cast %113 : vector<1x8x4x8xbf16> to vector<8x4x8xbf16>
    %115 = tpu.transpose %114, [1, 0, 2] : vector<8x4x8xbf16> -> vector<4x8x8xbf16>
    "tpu.trace_start"() <{level = 10 : i32, message = "htd,hsd->hts"}> : () -> ()
    %cst_47 = arith.constant dense<0.000000e+00> : vector<4x8x8xf32>
    %116 = tpu.matmul %109, %112, %cst_47 {dimension_numbers = #tpu.dot_dimension_numbers<[2], [2], [1], [1], [0, 0, 0, 1, 1, 1], [0], [0]>} : vector<4x8x8xbf16>, vector<4x8x8xbf16>, vector<4x8x8xf32> -> vector<4x8x8xf32>
    "tpu.trace_stop"() : () -> ()
    %cst_48 = arith.constant 0.353553385 : f32
    %117 = vector.broadcast %cst_48 : f32 to vector<4x8x8xf32>
    %118 = arith.mulf %116, %117 : vector<4x8x8xf32>
    %119 = vector.extract_strided_slice %6 {offsets = [1, 0, 0], sizes = [1, 8, 8], strides = [1, 1, 1]} : vector<2x8x8xf32> to vector<1x8x8xf32>
    %120 = vector.shape_cast %119 : vector<1x8x8xf32> to vector<8x8xf32>
    %121 = vector.shape_cast %120 : vector<8x8xf32> to vector<1x8x8xf32>
    %122 = vector.broadcast %121 : vector<1x8x8xf32> to vector<4x8x8xf32>
    %123 = arith.addf %118, %122 : vector<4x8x8xf32>
    %cst_49 = arith.constant dense<0xFF800000> : vector<4x8xf32>
    %124 = vector.multi_reduction <maximumf>, %123, %cst_49 [2] : vector<4x8x8xf32> to vector<4x8xf32>
    %125 = vector.shape_cast %124 : vector<4x8xf32> to vector<4x8x1xf32>
    %126 = vector.broadcast %125 : vector<4x8x1xf32> to vector<4x8x8xf32>
    %127 = arith.subf %123, %126 : vector<4x8x8xf32>
    %128 = math.exp %127 : vector<4x8x8xf32>
    %cst_50 = arith.constant dense<0.000000e+00> : vector<4x8xf32>
    %129 = vector.multi_reduction <add>, %128, %cst_50 [2] : vector<4x8x8xf32> to vector<4x8xf32>
    %130 = vector.shape_cast %129 : vector<4x8xf32> to vector<4x8x1xf32>
    %131 = tpu.reciprocal %130 {approx = true} : vector<4x8x1xf32> -> vector<4x8x1xf32>
    %132 = vector.broadcast %131 : vector<4x8x1xf32> to vector<4x8x8xf32>
    %133 = arith.mulf %128, %132 : vector<4x8x8xf32>
    %134 = arith.truncf %133 : vector<4x8x8xf32> to vector<4x8x8xbf16>
    "tpu.trace_start"() <{level = 10 : i32, message = "hts,hsd->htd"}> : () -> ()
    %cst_51 = arith.constant dense<0.000000e+00> : vector<4x8x8xf32>
    %135 = tpu.matmul %134, %115, %cst_51 {dimension_numbers = #tpu.dot_dimension_numbers<[2], [1], [1], [2], [0, 0, 0, 1, 1, 2], [0], [0]>} : vector<4x8x8xbf16>, vector<4x8x8xbf16>, vector<4x8x8xf32> -> vector<4x8x8xf32>
    "tpu.trace_stop"() : () -> ()
    %136 = tpu.transpose %135, [1, 0, 2] : vector<4x8x8xf32> -> vector<8x4x8xf32>
    %137 = vector.shape_cast %136 : vector<8x4x8xf32> to vector<8x32xf32>
    %138 = tpu.concatenate %106, %137 in 0 : vector<8x32xf32>, vector<8x32xf32> -> vector<16x32xf32>
    %139 = arith.truncf %138 : vector<16x32xf32> to vector<16x32xbf16>
    %cst_52 = arith.constant dense<0.000000e+00> : vector<16x32xf32>
    %140 = tpu.matmul %139, %45, %cst_52 {dimension_numbers = #tpu.dot_dimension_numbers<[1], [0], [0], [1], [0, 0, 1, 1], [], []>} : vector<16x32xbf16>, vector<32x32xbf16>, vector<16x32xf32> -> vector<16x32xf32>
    %141 = vector.shape_cast %53 : vector<32xf32> to vector<1x32xf32>
    %142 = vector.broadcast %141 : vector<1x32xf32> to vector<16x32xf32>
    %143 = arith.addf %140, %142 : vector<16x32xf32>
    %144 = vector.shape_cast %143 : vector<16x32xf32> to vector<2x8x32xf32>
    %145 = arith.addf %3, %144 : vector<2x8x32xf32>
    %146 = vector.extract_strided_slice %8 {offsets = [1, 0], sizes = [1, 32], strides = [1, 1]} : vector<3x32xf32> to vector<1x32xf32>
    %147 = vector.shape_cast %146 : vector<1x32xf32> to vector<32xf32>
    %148 = vector.extract_strided_slice %10 {offsets = [1, 0], sizes = [1, 32], strides = [1, 1]} : vector<3x32xf32> to vector<1x32xf32>
    %149 = vector.shape_cast %148 : vector<1x32xf32> to vector<32xf32>
    %cst_53 = arith.constant dense<0.000000e+00> : vector<2x8xf32>
    %150 = vector.multi_reduction <add>, %145, %cst_53 [2] : vector<2x8x32xf32> to vector<2x8xf32>
    %151 = vector.shape_cast %150 : vector<2x8xf32> to vector<2x8x1xf32>
    %cst_54 = arith.constant 3.200000e+01 : f32
    %152 = vector.broadcast %cst_54 : f32 to vector<2x8x1xf32>
    %153 = arith.divf %151, %152 : vector<2x8x1xf32>
    %154 = vector.broadcast %153 : vector<2x8x1xf32> to vector<2x8x32xf32>
    %155 = arith.subf %145, %154 : vector<2x8x32xf32>
    %156 = arith.mulf %155, %155 : vector<2x8x32xf32>
    %cst_55 = arith.constant dense<0.000000e+00> : vector<2x8xf32>
    %157 = vector.multi_reduction <add>, %156, %cst_55 [2] : vector<2x8x32xf32> to vector<2x8xf32>
    %158 = vector.shape_cast %157 : vector<2x8xf32> to vector<2x8x1xf32>
    %cst_56 = arith.constant 0.0322580636 : f32
    %159 = vector.broadcast %cst_56 : f32 to vector<2x8x1xf32>
    %160 = arith.mulf %158, %159 : vector<2x8x1xf32>
    %161 = math.sqrt %160 : vector<2x8x1xf32>
    %cst_57 = arith.constant 9.99999997E-7 : f32
    %162 = vector.broadcast %cst_57 : f32 to vector<2x8x1xf32>
    %163 = arith.addf %161, %162 : vector<2x8x1xf32>
    %164 = tpu.reciprocal %163 {approx = true} : vector<2x8x1xf32> -> vector<2x8x1xf32>
    %165 = vector.broadcast %164 : vector<2x8x1xf32> to vector<2x8x32xf32>
    %166 = arith.mulf %155, %165 : vector<2x8x32xf32>
    %167 = vector.shape_cast %147 : vector<32xf32> to vector<1x1x32xf32>
    %168 = vector.broadcast %167 : vector<1x1x32xf32> to vector<2x8x32xf32>
    %169 = arith.mulf %168, %166 : vector<2x8x32xf32>
    %170 = vector.shape_cast %149 : vector<32xf32> to vector<1x1x32xf32>
    %171 = vector.broadcast %170 : vector<1x1x32xf32> to vector<2x8x32xf32>
    %172 = arith.addf %169, %171 : vector<2x8x32xf32>
    %c4 = arith.constant 4 : index
    %c0_58 = arith.constant 0 : index
    %c0_59 = arith.constant 0 : index
    %173 = vector.load %arg6[%c4, %c0_58, %c0_59] : memref<8x32x32xbf16, #tpu.memory_space<vmem>>, vector<1x32x32xbf16>
    %174 = vector.shape_cast %173 : vector<1x32x32xbf16> to vector<32x32xbf16>
    %c5 = arith.constant 5 : index
    %c0_60 = arith.constant 0 : index
    %c0_61 = arith.constant 0 : index
    %175 = vector.load %arg6[%c5, %c0_60, %c0_61] : memref<8x32x32xbf16, #tpu.memory_space<vmem>>, vector<1x32x32xbf16>
    %176 = vector.shape_cast %175 : vector<1x32x32xbf16> to vector<32x32xbf16>
    %c6 = arith.constant 6 : index
    %c0_62 = arith.constant 0 : index
    %c0_63 = arith.constant 0 : index
    %177 = vector.load %arg6[%c6, %c0_62, %c0_63] : memref<8x32x32xbf16, #tpu.memory_space<vmem>>, vector<1x32x32xbf16>
    %178 = vector.shape_cast %177 : vector<1x32x32xbf16> to vector<32x32xbf16>
    %c7 = arith.constant 7 : index
    %c0_64 = arith.constant 0 : index
    %c0_65 = arith.constant 0 : index
    %179 = vector.load %arg6[%c7, %c0_64, %c0_65] : memref<8x32x32xbf16, #tpu.memory_space<vmem>>, vector<1x32x32xbf16>
    %180 = vector.shape_cast %179 : vector<1x32x32xbf16> to vector<32x32xbf16>
    %c4_66 = arith.constant 4 : index
    %c0_67 = arith.constant 0 : index
    %181 = vector.load %arg7[%c4_66, %c0_67] : memref<8x32xf32, #tpu.memory_space<vmem>>, vector<1x32xf32>
    %182 = vector.shape_cast %181 : vector<1x32xf32> to vector<32xf32>
    %c5_68 = arith.constant 5 : index
    %c0_69 = arith.constant 0 : index
    %183 = vector.load %arg7[%c5_68, %c0_69] : memref<8x32xf32, #tpu.memory_space<vmem>>, vector<1x32xf32>
    %184 = vector.shape_cast %183 : vector<1x32xf32> to vector<32xf32>
    %c6_70 = arith.constant 6 : index
    %c0_71 = arith.constant 0 : index
    %185 = vector.load %arg7[%c6_70, %c0_71] : memref<8x32xf32, #tpu.memory_space<vmem>>, vector<1x32xf32>
    %186 = vector.shape_cast %185 : vector<1x32xf32> to vector<32xf32>
    %c7_72 = arith.constant 7 : index
    %c0_73 = arith.constant 0 : index
    %187 = vector.load %arg7[%c7_72, %c0_73] : memref<8x32xf32, #tpu.memory_space<vmem>>, vector<1x32xf32>
    %188 = vector.shape_cast %187 : vector<1x32xf32> to vector<32xf32>
    %189 = vector.shape_cast %172 : vector<2x8x32xf32> to vector<16x32xf32>
    %190 = arith.truncf %189 : vector<16x32xf32> to vector<16x32xbf16>
    %191 = vector.shape_cast %4 : vector<2x8x32xf32> to vector<16x32xf32>
    %192 = arith.truncf %191 : vector<16x32xf32> to vector<16x32xbf16>
    %cst_74 = arith.constant dense<0.000000e+00> : vector<16x32xf32>
    %193 = tpu.matmul %190, %174, %cst_74 {dimension_numbers = #tpu.dot_dimension_numbers<[1], [0], [0], [1], [0, 0, 1, 1], [], []>} : vector<16x32xbf16>, vector<32x32xbf16>, vector<16x32xf32> -> vector<16x32xf32>
    %194 = vector.shape_cast %182 : vector<32xf32> to vector<1x32xf32>
    %195 = vector.broadcast %194 : vector<1x32xf32> to vector<16x32xf32>
    %196 = arith.addf %193, %195 : vector<16x32xf32>
    %cst_75 = arith.constant dense<0.000000e+00> : vector<16x32xf32>
    %197 = tpu.matmul %192, %176, %cst_75 {dimension_numbers = #tpu.dot_dimension_numbers<[1], [0], [0], [1], [0, 0, 1, 1], [], []>} : vector<16x32xbf16>, vector<32x32xbf16>, vector<16x32xf32> -> vector<16x32xf32>
    %198 = vector.shape_cast %184 : vector<32xf32> to vector<1x32xf32>
    %199 = vector.broadcast %198 : vector<1x32xf32> to vector<16x32xf32>
    %200 = arith.addf %197, %199 : vector<16x32xf32>
    %cst_76 = arith.constant dense<0.000000e+00> : vector<16x32xf32>
    %201 = tpu.matmul %192, %178, %cst_76 {dimension_numbers = #tpu.dot_dimension_numbers<[1], [0], [0], [1], [0, 0, 1, 1], [], []>} : vector<16x32xbf16>, vector<32x32xbf16>, vector<16x32xf32> -> vector<16x32xf32>
    %202 = vector.shape_cast %186 : vector<32xf32> to vector<1x32xf32>
    %203 = vector.broadcast %202 : vector<1x32xf32> to vector<16x32xf32>
    %204 = arith.addf %201, %203 : vector<16x32xf32>
    %205 = vector.shape_cast %196 : vector<16x32xf32> to vector<2x8x4x8xf32>
    %206 = arith.truncf %205 : vector<2x8x4x8xf32> to vector<2x8x4x8xbf16>
    %207 = vector.shape_cast %200 : vector<16x32xf32> to vector<2x8x4x8xf32>
    %208 = arith.truncf %207 : vector<2x8x4x8xf32> to vector<2x8x4x8xbf16>
    %209 = vector.shape_cast %204 : vector<16x32xf32> to vector<2x8x4x8xf32>
    %210 = arith.truncf %209 : vector<2x8x4x8xf32> to vector<2x8x4x8xbf16>
    %211 = vector.extract_strided_slice %206 {offsets = [0, 0, 0, 0], sizes = [1, 8, 4, 8], strides = [1, 1, 1, 1]} : vector<2x8x4x8xbf16> to vector<1x8x4x8xbf16>
    %212 = vector.shape_cast %211 : vector<1x8x4x8xbf16> to vector<8x4x8xbf16>
    %213 = tpu.transpose %212, [1, 0, 2] : vector<8x4x8xbf16> -> vector<4x8x8xbf16>
    %214 = vector.extract_strided_slice %208 {offsets = [0, 0, 0, 0], sizes = [1, 8, 4, 8], strides = [1, 1, 1, 1]} : vector<2x8x4x8xbf16> to vector<1x8x4x8xbf16>
    %215 = vector.shape_cast %214 : vector<1x8x4x8xbf16> to vector<8x4x8xbf16>
    %216 = tpu.transpose %215, [1, 0, 2] : vector<8x4x8xbf16> -> vector<4x8x8xbf16>
    %217 = vector.extract_strided_slice %210 {offsets = [0, 0, 0, 0], sizes = [1, 8, 4, 8], strides = [1, 1, 1, 1]} : vector<2x8x4x8xbf16> to vector<1x8x4x8xbf16>
    %218 = vector.shape_cast %217 : vector<1x8x4x8xbf16> to vector<8x4x8xbf16>
    %219 = tpu.transpose %218, [1, 0, 2] : vector<8x4x8xbf16> -> vector<4x8x8xbf16>
    "tpu.trace_start"() <{level = 10 : i32, message = "htd,hsd->hts"}> : () -> ()
    %cst_77 = arith.constant dense<0.000000e+00> : vector<4x8x8xf32>
    %220 = tpu.matmul %213, %216, %cst_77 {dimension_numbers = #tpu.dot_dimension_numbers<[2], [2], [1], [1], [0, 0, 0, 1, 1, 1], [0], [0]>} : vector<4x8x8xbf16>, vector<4x8x8xbf16>, vector<4x8x8xf32> -> vector<4x8x8xf32>
    "tpu.trace_stop"() : () -> ()
    %cst_78 = arith.constant 0.353553385 : f32
    %221 = vector.broadcast %cst_78 : f32 to vector<4x8x8xf32>
    %222 = arith.mulf %220, %221 : vector<4x8x8xf32>
    %223 = vector.extract_strided_slice %5 {offsets = [0, 0, 0], sizes = [1, 1, 8], strides = [1, 1, 1]} : vector<2x1x8xf32> to vector<1x1x8xf32>
    %224 = vector.shape_cast %223 : vector<1x1x8xf32> to vector<1x8xf32>
    %225 = vector.shape_cast %224 : vector<1x8xf32> to vector<1x1x8xf32>
    %226 = vector.broadcast %225 : vector<1x1x8xf32> to vector<4x8x8xf32>
    %227 = arith.addf %222, %226 : vector<4x8x8xf32>
    %cst_79 = arith.constant dense<0xFF800000> : vector<4x8xf32>
    %228 = vector.multi_reduction <maximumf>, %227, %cst_79 [2] : vector<4x8x8xf32> to vector<4x8xf32>
    %229 = vector.shape_cast %228 : vector<4x8xf32> to vector<4x8x1xf32>
    %230 = vector.broadcast %229 : vector<4x8x1xf32> to vector<4x8x8xf32>
    %231 = arith.subf %227, %230 : vector<4x8x8xf32>
    %232 = math.exp %231 : vector<4x8x8xf32>
    %cst_80 = arith.constant dense<0.000000e+00> : vector<4x8xf32>
    %233 = vector.multi_reduction <add>, %232, %cst_80 [2] : vector<4x8x8xf32> to vector<4x8xf32>
    %234 = vector.shape_cast %233 : vector<4x8xf32> to vector<4x8x1xf32>
    %235 = tpu.reciprocal %234 {approx = true} : vector<4x8x1xf32> -> vector<4x8x1xf32>
    %236 = vector.broadcast %235 : vector<4x8x1xf32> to vector<4x8x8xf32>
    %237 = arith.mulf %232, %236 : vector<4x8x8xf32>
    %238 = arith.truncf %237 : vector<4x8x8xf32> to vector<4x8x8xbf16>
    "tpu.trace_start"() <{level = 10 : i32, message = "hts,hsd->htd"}> : () -> ()
    %cst_81 = arith.constant dense<0.000000e+00> : vector<4x8x8xf32>
    %239 = tpu.matmul %238, %219, %cst_81 {dimension_numbers = #tpu.dot_dimension_numbers<[2], [1], [1], [2], [0, 0, 0, 1, 1, 2], [0], [0]>} : vector<4x8x8xbf16>, vector<4x8x8xbf16>, vector<4x8x8xf32> -> vector<4x8x8xf32>
    "tpu.trace_stop"() : () -> ()
    %240 = tpu.transpose %239, [1, 0, 2] : vector<4x8x8xf32> -> vector<8x4x8xf32>
    %241 = vector.shape_cast %240 : vector<8x4x8xf32> to vector<8x32xf32>
    %242 = vector.extract_strided_slice %206 {offsets = [1, 0, 0, 0], sizes = [1, 8, 4, 8], strides = [1, 1, 1, 1]} : vector<2x8x4x8xbf16> to vector<1x8x4x8xbf16>
    %243 = vector.shape_cast %242 : vector<1x8x4x8xbf16> to vector<8x4x8xbf16>
    %244 = tpu.transpose %243, [1, 0, 2] : vector<8x4x8xbf16> -> vector<4x8x8xbf16>
    %245 = vector.extract_strided_slice %208 {offsets = [1, 0, 0, 0], sizes = [1, 8, 4, 8], strides = [1, 1, 1, 1]} : vector<2x8x4x8xbf16> to vector<1x8x4x8xbf16>
    %246 = vector.shape_cast %245 : vector<1x8x4x8xbf16> to vector<8x4x8xbf16>
    %247 = tpu.transpose %246, [1, 0, 2] : vector<8x4x8xbf16> -> vector<4x8x8xbf16>
    %248 = vector.extract_strided_slice %210 {offsets = [1, 0, 0, 0], sizes = [1, 8, 4, 8], strides = [1, 1, 1, 1]} : vector<2x8x4x8xbf16> to vector<1x8x4x8xbf16>
    %249 = vector.shape_cast %248 : vector<1x8x4x8xbf16> to vector<8x4x8xbf16>
    %250 = tpu.transpose %249, [1, 0, 2] : vector<8x4x8xbf16> -> vector<4x8x8xbf16>
    "tpu.trace_start"() <{level = 10 : i32, message = "htd,hsd->hts"}> : () -> ()
    %cst_82 = arith.constant dense<0.000000e+00> : vector<4x8x8xf32>
    %251 = tpu.matmul %244, %247, %cst_82 {dimension_numbers = #tpu.dot_dimension_numbers<[2], [2], [1], [1], [0, 0, 0, 1, 1, 1], [0], [0]>} : vector<4x8x8xbf16>, vector<4x8x8xbf16>, vector<4x8x8xf32> -> vector<4x8x8xf32>
    "tpu.trace_stop"() : () -> ()
    %cst_83 = arith.constant 0.353553385 : f32
    %252 = vector.broadcast %cst_83 : f32 to vector<4x8x8xf32>
    %253 = arith.mulf %251, %252 : vector<4x8x8xf32>
    %254 = vector.extract_strided_slice %5 {offsets = [1, 0, 0], sizes = [1, 1, 8], strides = [1, 1, 1]} : vector<2x1x8xf32> to vector<1x1x8xf32>
    %255 = vector.shape_cast %254 : vector<1x1x8xf32> to vector<1x8xf32>
    %256 = vector.shape_cast %255 : vector<1x8xf32> to vector<1x1x8xf32>
    %257 = vector.broadcast %256 : vector<1x1x8xf32> to vector<4x8x8xf32>
    %258 = arith.addf %253, %257 : vector<4x8x8xf32>
    %cst_84 = arith.constant dense<0xFF800000> : vector<4x8xf32>
    %259 = vector.multi_reduction <maximumf>, %258, %cst_84 [2] : vector<4x8x8xf32> to vector<4x8xf32>
    %260 = vector.shape_cast %259 : vector<4x8xf32> to vector<4x8x1xf32>
    %261 = vector.broadcast %260 : vector<4x8x1xf32> to vector<4x8x8xf32>
    %262 = arith.subf %258, %261 : vector<4x8x8xf32>
    %263 = math.exp %262 : vector<4x8x8xf32>
    %cst_85 = arith.constant dense<0.000000e+00> : vector<4x8xf32>
    %264 = vector.multi_reduction <add>, %263, %cst_85 [2] : vector<4x8x8xf32> to vector<4x8xf32>
    %265 = vector.shape_cast %264 : vector<4x8xf32> to vector<4x8x1xf32>
    %266 = tpu.reciprocal %265 {approx = true} : vector<4x8x1xf32> -> vector<4x8x1xf32>
    %267 = vector.broadcast %266 : vector<4x8x1xf32> to vector<4x8x8xf32>
    %268 = arith.mulf %263, %267 : vector<4x8x8xf32>
    %269 = arith.truncf %268 : vector<4x8x8xf32> to vector<4x8x8xbf16>
    "tpu.trace_start"() <{level = 10 : i32, message = "hts,hsd->htd"}> : () -> ()
    %cst_86 = arith.constant dense<0.000000e+00> : vector<4x8x8xf32>
    %270 = tpu.matmul %269, %250, %cst_86 {dimension_numbers = #tpu.dot_dimension_numbers<[2], [1], [1], [2], [0, 0, 0, 1, 1, 2], [0], [0]>} : vector<4x8x8xbf16>, vector<4x8x8xbf16>, vector<4x8x8xf32> -> vector<4x8x8xf32>
    "tpu.trace_stop"() : () -> ()
    %271 = tpu.transpose %270, [1, 0, 2] : vector<4x8x8xf32> -> vector<8x4x8xf32>
    %272 = vector.shape_cast %271 : vector<8x4x8xf32> to vector<8x32xf32>
    %273 = tpu.concatenate %241, %272 in 0 : vector<8x32xf32>, vector<8x32xf32> -> vector<16x32xf32>
    %274 = arith.truncf %273 : vector<16x32xf32> to vector<16x32xbf16>
    %cst_87 = arith.constant dense<0.000000e+00> : vector<16x32xf32>
    %275 = tpu.matmul %274, %180, %cst_87 {dimension_numbers = #tpu.dot_dimension_numbers<[1], [0], [0], [1], [0, 0, 1, 1], [], []>} : vector<16x32xbf16>, vector<32x32xbf16>, vector<16x32xf32> -> vector<16x32xf32>
    %276 = vector.shape_cast %188 : vector<32xf32> to vector<1x32xf32>
    %277 = vector.broadcast %276 : vector<1x32xf32> to vector<16x32xf32>
    %278 = arith.addf %275, %277 : vector<16x32xf32>
    %279 = vector.shape_cast %278 : vector<16x32xf32> to vector<2x8x32xf32>
    %280 = arith.addf %145, %279 : vector<2x8x32xf32>
    %281 = vector.extract_strided_slice %8 {offsets = [2, 0], sizes = [1, 32], strides = [1, 1]} : vector<3x32xf32> to vector<1x32xf32>
    %282 = vector.shape_cast %281 : vector<1x32xf32> to vector<32xf32>
    %283 = vector.extract_strided_slice %10 {offsets = [2, 0], sizes = [1, 32], strides = [1, 1]} : vector<3x32xf32> to vector<1x32xf32>
    %284 = vector.shape_cast %283 : vector<1x32xf32> to vector<32xf32>
    %cst_88 = arith.constant dense<0.000000e+00> : vector<2x8xf32>
    %285 = vector.multi_reduction <add>, %280, %cst_88 [2] : vector<2x8x32xf32> to vector<2x8xf32>
    %286 = vector.shape_cast %285 : vector<2x8xf32> to vector<2x8x1xf32>
    %cst_89 = arith.constant 3.200000e+01 : f32
    %287 = vector.broadcast %cst_89 : f32 to vector<2x8x1xf32>
    %288 = arith.divf %286, %287 : vector<2x8x1xf32>
    %289 = vector.broadcast %288 : vector<2x8x1xf32> to vector<2x8x32xf32>
    %290 = arith.subf %280, %289 : vector<2x8x32xf32>
    %291 = arith.mulf %290, %290 : vector<2x8x32xf32>
    %cst_90 = arith.constant dense<0.000000e+00> : vector<2x8xf32>
    %292 = vector.multi_reduction <add>, %291, %cst_90 [2] : vector<2x8x32xf32> to vector<2x8xf32>
    %293 = vector.shape_cast %292 : vector<2x8xf32> to vector<2x8x1xf32>
    %cst_91 = arith.constant 0.0322580636 : f32
    %294 = vector.broadcast %cst_91 : f32 to vector<2x8x1xf32>
    %295 = arith.mulf %293, %294 : vector<2x8x1xf32>
    %296 = math.sqrt %295 : vector<2x8x1xf32>
    %cst_92 = arith.constant 9.99999997E-7 : f32
    %297 = vector.broadcast %cst_92 : f32 to vector<2x8x1xf32>
    %298 = arith.addf %296, %297 : vector<2x8x1xf32>
    %299 = tpu.reciprocal %298 {approx = true} : vector<2x8x1xf32> -> vector<2x8x1xf32>
    %300 = vector.broadcast %299 : vector<2x8x1xf32> to vector<2x8x32xf32>
    %301 = arith.mulf %290, %300 : vector<2x8x32xf32>
    %302 = vector.shape_cast %282 : vector<32xf32> to vector<1x1x32xf32>
    %303 = vector.broadcast %302 : vector<1x1x32xf32> to vector<2x8x32xf32>
    %304 = arith.mulf %303, %301 : vector<2x8x32xf32>
    %305 = vector.shape_cast %284 : vector<32xf32> to vector<1x1x32xf32>
    %306 = vector.broadcast %305 : vector<1x1x32xf32> to vector<2x8x32xf32>
    %307 = arith.addf %304, %306 : vector<2x8x32xf32>
    %308 = vector.shape_cast %307 : vector<2x8x32xf32> to vector<16x32xf32>
    %309 = arith.truncf %308 : vector<16x32xf32> to vector<16x32xbf16>
    %c0_93 = arith.constant 0 : index
    %c0_94 = arith.constant 0 : index
    %c0_95 = arith.constant 0 : index
    %310 = vector.load %arg8[%c0_93, %c0_94, %c0_95] : memref<1x32x64xbf16, #tpu.memory_space<vmem>>, vector<1x32x64xbf16>
    %311 = vector.shape_cast %310 : vector<1x32x64xbf16> to vector<32x64xbf16>
    %cst_96 = arith.constant dense<0.000000e+00> : vector<16x64xf32>
    %312 = tpu.matmul %309, %311, %cst_96 {dimension_numbers = #tpu.dot_dimension_numbers<[1], [0], [0], [1], [0, 0, 1, 1], [], []>} : vector<16x32xbf16>, vector<32x64xbf16>, vector<16x64xf32> -> vector<16x64xf32>
    %c0_97 = arith.constant 0 : index
    %c0_98 = arith.constant 0 : index
    %c0_99 = arith.constant 0 : index
    %313 = vector.load %arg9[%c0_97, %c0_98, %c0_99] : memref<1x1x64xf32, #tpu.memory_space<vmem>>, vector<1x1x64xf32>
    %314 = vector.shape_cast %313 : vector<1x1x64xf32> to vector<1x64xf32>
    %315 = vector.broadcast %314 : vector<1x64xf32> to vector<16x64xf32>
    %316 = arith.addf %312, %315 : vector<16x64xf32>
    %cst_100 = arith.constant 0.000000e+00 : f32
    %317 = vector.broadcast %cst_100 : f32 to vector<16x64xf32>
    %318 = arith.maximumf %316, %317 : vector<16x64xf32>
    %319 = arith.truncf %318 : vector<16x64xf32> to vector<16x64xbf16>
    %c0_101 = arith.constant 0 : index
    %c0_102 = arith.constant 0 : index
    %c0_103 = arith.constant 0 : index
    %320 = vector.load %arg10[%c0_101, %c0_102, %c0_103] : memref<1x64x32xbf16, #tpu.memory_space<vmem>>, vector<1x64x32xbf16>
    %321 = vector.shape_cast %320 : vector<1x64x32xbf16> to vector<64x32xbf16>
    %cst_104 = arith.constant dense<0.000000e+00> : vector<16x32xf32>
    %322 = tpu.matmul %319, %321, %cst_104 {dimension_numbers = #tpu.dot_dimension_numbers<[1], [0], [0], [1], [0, 0, 1, 1], [], []>} : vector<16x64xbf16>, vector<64x32xbf16>, vector<16x32xf32> -> vector<16x32xf32>
    %c0_105 = arith.constant 0 : index
    %c0_106 = arith.constant 0 : index
    %c0_107 = arith.constant 0 : index
    %323 = vector.load %arg11[%c0_105, %c0_106, %c0_107] : memref<1x1x32xf32, #tpu.memory_space<vmem>>, vector<1x1x32xf32>
    %324 = vector.shape_cast %323 : vector<1x1x32xf32> to vector<1x32xf32>
    %325 = vector.broadcast %324 : vector<1x32xf32> to vector<16x32xf32>
    %326 = arith.addf %322, %325 : vector<16x32xf32>
    %327 = vector.shape_cast %326 : vector<16x32xf32> to vector<2x8x32xf32>
    %328 = arith.addf %280, %327 : vector<2x8x32xf32>
    %c0_108 = arith.constant 0 : index
    %c0_109 = arith.constant 0 : index
    %c0_110 = arith.constant 0 : index
    %329 = vector.load %arg17[%c0_108, %c0_109, %c0_110] : memref<2x8x32xf32, #tpu.memory_space<vmem>>, vector<2x8x32xf32>
    tpu.vector_store %arg17[%c0_108, %c0_109, %c0_110], %328 {strides = array<i32>} : memref<2x8x32xf32, #tpu.memory_space<vmem>>, vector<2x8x32xf32>,
    %c1_i32 = arith.constant 1 : i32
    %330 = arith.cmpi eq, %arg1, %c1_i32 : i32
    %331 = arith.extui %330 : i1 to i32
    %c0_i32_111 = arith.constant 0 : i32
    %332 = arith.cmpi ne, %331, %c0_i32_111 : i32
    scf.if %332 {
      %c0_112 = arith.constant 0 : index
      %c0_113 = arith.constant 0 : index
      %333 = vector.load %arg14[%c0_112, %c0_113] : memref<1x32xf32, #tpu.memory_space<vmem>>, vector<1x32xf32>
      %c0_114 = arith.constant 0 : index
      %c0_115 = arith.constant 0 : index
      %334 = vector.load %arg15[%c0_114, %c0_115] : memref<1x32xf32, #tpu.memory_space<vmem>>, vector<1x32xf32>
      %cst_116 = arith.constant dense<0.000000e+00> : vector<2x8xf32>
      %335 = vector.multi_reduction <add>, %328, %cst_116 [2] : vector<2x8x32xf32> to vector<2x8xf32>
      %336 = vector.shape_cast %335 : vector<2x8xf32> to vector<2x8x1xf32>
      %cst_117 = arith.constant 3.200000e+01 : f32
      %337 = vector.broadcast %cst_117 : f32 to vector<2x8x1xf32>
      %338 = arith.divf %336, %337 : vector<2x8x1xf32>
      %339 = vector.broadcast %338 : vector<2x8x1xf32> to vector<2x8x32xf32>
      %340 = arith.subf %328, %339 : vector<2x8x32xf32>
      %341 = arith.mulf %340, %340 : vector<2x8x32xf32>
      %cst_118 = arith.constant dense<0.000000e+00> : vector<2x8xf32>
      %342 = vector.multi_reduction <add>, %341, %cst_118 [2] : vector<2x8x32xf32> to vector<2x8xf32>
      %343 = vector.shape_cast %342 : vector<2x8xf32> to vector<2x8x1xf32>
      %cst_119 = arith.constant 0.0322580636 : f32
      %344 = vector.broadcast %cst_119 : f32 to vector<2x8x1xf32>
      %345 = arith.mulf %343, %344 : vector<2x8x1xf32>
      %346 = math.sqrt %345 : vector<2x8x1xf32>
      %cst_120 = arith.constant 9.99999997E-7 : f32
      %347 = vector.broadcast %cst_120 : f32 to vector<2x8x1xf32>
      %348 = arith.addf %346, %347 : vector<2x8x1xf32>
      %349 = tpu.reciprocal %348 {approx = true} : vector<2x8x1xf32> -> vector<2x8x1xf32>
      %350 = vector.broadcast %349 : vector<2x8x1xf32> to vector<2x8x32xf32>
      %351 = arith.mulf %340, %350 : vector<2x8x32xf32>
      %352 = vector.shape_cast %333 : vector<1x32xf32> to vector<1x1x32xf32>
      %353 = vector.broadcast %352 : vector<1x1x32xf32> to vector<2x8x32xf32>
      %354 = arith.mulf %353, %351 : vector<2x8x32xf32>
      %355 = vector.shape_cast %334 : vector<1x32xf32> to vector<1x1x32xf32>
      %356 = vector.broadcast %355 : vector<1x1x32xf32> to vector<2x8x32xf32>
      %357 = arith.addf %354, %356 : vector<2x8x32xf32>
      %c0_121 = arith.constant 0 : index
      %c0_122 = arith.constant 0 : index
      %c0_123 = arith.constant 0 : index
      %358 = vector.load %arg16[%c0_121, %c0_122, %c0_123] : memref<2x8x32xf32, #tpu.memory_space<vmem>>, vector<2x8x32xf32>
      tpu.vector_store %arg16[%c0_121, %c0_122, %c0_123], %357 {strides = array<i32>} : memref<2x8x32xf32, #tpu.memory_space<vmem>>, vector<2x8x32xf32>,
    } else {
    }
    return
  }
  func.func @transform_0(%arg0: i32, %arg1: i32) -> (i32, i32, i32) {
    %c0_i32 = arith.constant 0 : i32
    %c0_i32_0 = arith.constant 0 : i32
    %c0_i32_1 = arith.constant 0 : i32
    return %arg0, %c0_i32, %c0_i32_0 : i32, i32, i32
  }
  func.func @transform_1(%arg0: i32, %arg1: i32) -> (i32, i32, i32) {
    %c0_i32 = arith.constant 0 : i32
    %c0_i32_0 = arith.constant 0 : i32
    %c0_i32_1 = arith.constant 0 : i32
    return %arg0, %c0_i32, %c0_i32_0 : i32, i32, i32
  }
  func.func @transform_2(%arg0: i32, %arg1: i32) -> (i32, i32, i32) {
    %c0_i32 = arith.constant 0 : i32
    %c0_i32_0 = arith.constant 0 : i32
    %c0_i32_1 = arith.constant 0 : i32
    return %arg0, %c0_i32, %c0_i32_0 : i32, i32, i32
  }
  func.func @transform_3(%arg0: i32, %arg1: i32) -> (i32, i32, i32) {
    %c0_i32 = arith.constant 0 : i32
    %c0_i32_0 = arith.constant 0 : i32
    %c0_i32_1 = arith.constant 0 : i32
    return %arg0, %c0_i32, %c0_i32_0 : i32, i32, i32
  }
  func.func @transform_4(%arg0: i32, %arg1: i32) -> (i32, i32, i32) {
    %c0_i32 = arith.constant 0 : i32
    %c0_i32_0 = arith.constant 0 : i32
    %c0_i32_1 = arith.constant 0 : i32
    return %arg1, %c0_i32, %c0_i32_0 : i32, i32, i32
  }
  func.func @transform_5(%arg0: i32, %arg1: i32) -> (i32, i32) {
    %c0_i32 = arith.constant 0 : i32
    %c0_i32_0 = arith.constant 0 : i32
    return %arg1, %c0_i32 : i32, i32
  }
  func.func @transform_6(%arg0: i32, %arg1: i32) -> (i32, i32, i32) {
    %c0_i32 = arith.constant 0 : i32
    %c0_i32_0 = arith.constant 0 : i32
    %c0_i32_1 = arith.constant 0 : i32
    return %arg1, %c0_i32, %c0_i32_0 : i32, i32, i32
  }
  func.func @transform_7(%arg0: i32, %arg1: i32) -> (i32, i32, i32) {
    %c0_i32 = arith.constant 0 : i32
    %c0_i32_0 = arith.constant 0 : i32
    %c0_i32_1 = arith.constant 0 : i32
    return %arg1, %c0_i32, %c0_i32_0 : i32, i32, i32
  }
  func.func @transform_8(%arg0: i32, %arg1: i32) -> (i32, i32, i32) {
    %c0_i32 = arith.constant 0 : i32
    %c0_i32_0 = arith.constant 0 : i32
    %c0_i32_1 = arith.constant 0 : i32
    return %arg1, %c0_i32, %c0_i32_0 : i32, i32, i32
  }
  func.func @transform_9(%arg0: i32, %arg1: i32) -> (i32, i32, i32) {
    %c0_i32 = arith.constant 0 : i32
    %c0_i32_0 = arith.constant 0 : i32
    %c0_i32_1 = arith.constant 0 : i32
    return %arg1, %c0_i32, %c0_i32_0 : i32, i32, i32
  }
  func.func @transform_10(%arg0: i32, %arg1: i32) -> (i32, i32, i32) {
    %c0_i32 = arith.constant 0 : i32
    %c0_i32_0 = arith.constant 0 : i32
    %c0_i32_1 = arith.constant 0 : i32
    return %arg1, %c0_i32, %c0_i32_0 : i32, i32, i32
  }
  func.func @transform_11(%arg0: i32, %arg1: i32) -> (i32, i32, i32) {
    %c0_i32 = arith.constant 0 : i32
    %c0_i32_0 = arith.constant 0 : i32
    %c0_i32_1 = arith.constant 0 : i32
    return %arg1, %c0_i32, %c0_i32_0 : i32, i32, i32
  }
  func.func @transform_12(%arg0: i32, %arg1: i32) -> (i32, i32) {
    %c0_i32 = arith.constant 0 : i32
    %c0_i32_0 = arith.constant 0 : i32
    %c0_i32_1 = arith.constant 0 : i32
    return %c0_i32, %c0_i32_0 : i32, i32
  }
  func.func @transform_13(%arg0: i32, %arg1: i32) -> (i32, i32) {
    %c0_i32 = arith.constant 0 : i32
    %c0_i32_0 = arith.constant 0 : i32
    %c0_i32_1 = arith.constant 0 : i32
    return %c0_i32, %c0_i32_0 : i32, i32
  }
  func.func @transform_14(%arg0: i32, %arg1: i32) -> (i32, i32, i32) {
    %c0_i32 = arith.constant 0 : i32
    %c0_i32_0 = arith.constant 0 : i32
    %c0_i32_1 = arith.constant 0 : i32
    return %arg0, %c0_i32, %c0_i32_0 : i32, i32, i32
  }
}

</mosaic_0001>

<llo_original>
// kernel: tpu_custom_call.1
$region0: #{tpu_custom_call.1}
  #allocation0 [shape = 'u32[]', space=smem, size = 0x4, offset = 0x4, fixed_abs, tag = 'smem constant byte address 0x4 - core index']
  #allocation1 [shape = 'u32[144,128]{1,0:T(1,128)}', space=vmem, size = 0x12000, scoped, tag = 'internal scratch']
  #allocation2 [shape = 'f32[2,8,32]{2,1,0:T(8,128)}', space=vmem, size = 0x2000, scoped, tag = 'scratch operand']
  %s0 = inlined_call_operand.hbm [shape: f32[4,8,32], index: 0, kind: input, shape index: {}]
  %s1 = inlined_call_operand.hbm [shape: f32[4,8,32], index: 1, kind: input, shape index: {}]
  %s2 = inlined_call_operand.hbm [shape: f32[4,1,8], index: 2, kind: input, shape index: {}]
  %s3 = inlined_call_operand.hbm [shape: f32[4,8,8], index: 3, kind: input, shape index: {}]
  %s4 = inlined_call_operand.hbm [shape: bf16[16,32,32], index: 4, kind: input, shape index: {}]
  %s5 = inlined_call_operand.hbm [shape: f32[16,32], index: 5, kind: input, shape index: {}]
  %s6 = inlined_call_operand.hbm [shape: bf16[2,32,64], index: 6, kind: input, shape index: {}]
  %s7 = inlined_call_operand.hbm [shape: f32[2,1,64], index: 7, kind: input, shape index: {}]
  %s8 = inlined_call_operand.hbm [shape: bf16[2,64,32], index: 8, kind: input, shape index: {}]
  %s9 = inlined_call_operand.hbm [shape: f32[2,1,32], index: 9, kind: input, shape index: {}]
  %s10 = inlined_call_operand.hbm [shape: f32[2,3,32], index: 10, kind: input, shape index: {}]
  %s11 = inlined_call_operand.hbm [shape: f32[2,3,32], index: 11, kind: input, shape index: {}]
  %s12 = inlined_call_operand.hbm [shape: f32[1,32], index: 12, kind: input, shape index: {}]
  %s13 = inlined_call_operand.hbm [shape: f32[1,32], index: 13, kind: input, shape index: {}]
  %s14 = inlined_call_operand.hbm [shape: f32[4,8,32], index: 14, kind: output, shape index: {}]
  %s15 = sld [smem:[#allocation0]]
  $region153: #{tpu_custom_call.1} parent=0
    _
  %s17 = ssub.s32 1, %s15
  %s18 = scalar_select 0, %s17, %s15
  $region1: #{tpu_custom_call.1} parent=0
    #allocation3 [shape = 'u8[16384]{0}', space=vmem, size = 0x4000, scoped, tag = 'input window, operand 0']
    #allocation4 [shape = 's32[2]{0}', space=sflag, size = 0x8, scoped, tag = 'scoped memory for tpu_custom_call.1']
    #allocation5 [shape = 's32[2]{0}', space=sflag, size = 0x8, scoped, tag = 'scoped memory for tpu_custom_call.1']
    #allocation6 [shape = 'u8[16384]{0}', space=vmem, size = 0x4000, scoped, tag = 'input window, operand 1']
    #allocation7 [shape = 's32[2]{0}', space=sflag, size = 0x8, scoped, tag = 'scoped memory for tpu_custom_call.1']
    #allocation8 [shape = 'u8[2048]{0}', space=vmem, size = 0x800, scoped, tag = 'input window, operand 2']
    #allocation9 [shape = 'u8[16384]{0}', space=vmem, size = 0x4000, scoped, tag = 'input window, operand 3']
    #allocation10 [shape = 's32[2]{0}', space=sflag, size = 0x8, scoped, tag = 'scoped memory for tpu_custom_call.1']
    #allocation11 [shape = 'u8[131072]{0}', space=vmem, size = 0x20000, scoped, tag = 'input window, operand 4']
    #allocation12 [shape = 'u8[8192]{0}', space=vmem, size = 0x2000, scoped, tag = 'input window, operand 5']
    #allocation13 [shape = 's32[2]{0}', space=sflag, size = 0x8, scoped, tag = 'scoped memory for tpu_custom_call.1']
    #allocation14 [shape = 'u8[16384]{0}', space=vmem, size = 0x4000, scoped, tag = 'input window, operand 6']
    #allocation15 [shape = 'u8[1024]{0}', space=vmem, size = 0x400, scoped, tag = 'input window, operand 7']
    #allocation16 [shape = 's32[2]{0}', space=sflag, size = 0x8, scoped, tag = 'scoped memory for tpu_custom_call.1']
    #allocation17 [shape = 'u8[32768]{0}', space=vmem, size = 0x8000, scoped, tag = 'input window, operand 8']
    #allocation18 [shape = 'u8[1024]{0}', space=vmem, size = 0x400, scoped, tag = 'input window, operand 9']
    #allocation19 [shape = 's32[2]{0}', space=sflag, size = 0x8, scoped, tag = 'scoped memory for tpu_custom_call.1']
    #allocation20 [shape = 'u8[4096]{0}', space=vmem, size = 0x1000, scoped, tag = 'input window, operand 10']
    #allocation21 [shape = 'u8[4096]{0}', space=vmem, size = 0x1000, scoped, tag = 'input window, operand 11']
    #allocation22 [shape = 's32[2]{0}', space=sflag, size = 0x8, scoped, tag = 'scoped memory for tpu_custom_call.1']
    #allocation23 [shape = 'u8[512]{0}', space=vmem, size = 0x400, scoped, tag = 'input window, operand 12, single buffered']
    #allocation24 [shape = 'u8[512]{0}', space=vmem, size = 0x400, scoped, tag = 'input window, operand 13, single buffered']
    #allocation25 [shape = 's32[1]{0}', space=sflag, size = 0x4, scoped, tag = 'scoped memory for tpu_custom_call.1']
    #allocation26 [shape = 'u8[16384]{0}', space=vmem, size = 0x4000, scoped, tag = 'output window, operand 0']
    %19 = vsyncpa [#allocation4], 0
    %s20 = scalar_lea.sflag [#allocation4], 1
    %21 = vsyncpa %s20, 0
    %22 = vsyncpa [#allocation7], 0
    %s23 = scalar_lea.sflag [#allocation7], 1
    %24 = vsyncpa %s23, 0
    %25 = vsyncpa [#allocation10], 0
    %s26 = scalar_lea.sflag [#allocation10], 1
    %27 = vsyncpa %s26, 0
    %28 = vsyncpa [#allocation13], 0
    %s29 = scalar_lea.sflag [#allocation13], 1
    %30 = vsyncpa %s29, 0
    %31 = vsyncpa [#allocation16], 0
    %s32 = scalar_lea.sflag [#allocation16], 1
    %33 = vsyncpa %s32, 0
    %34 = vsyncpa [#allocation19], 0
    %s35 = scalar_lea.sflag [#allocation19], 1
    %36 = vsyncpa %s35, 0
    %37 = vsyncpa [#allocation22], 0
    %s38 = scalar_lea.sflag [#allocation22], 1
    %39 = vsyncpa %s38, 0
    %40 = vsyncpa [#allocation25], 0
    %41 = vsyncpa [#allocation5], 0
    %s42 = scalar_lea.sflag [#allocation5], 1
    %43 = vsyncpa %s42, 0
    loop: start=0, step=1, limit=6
    $region2: #{tpu_custom_call.1} parent=1 // loop_pre_header
      _
    $region3: #{tpu_custom_call.1} parent=1 // loop_header
      %s45 = sphi 0, %s49
      %p46 = scmp.ge.s32.totalorder %s45, 6
      %s52 = sphi 0, %s64
      %s53 = sphi 0, %s60
      %s54 = sphi 0, %s52
      %s55 = sphi 0, %s53
      %s56 = sphi 0, %s54
      %s57 = sphi 0, %s55
      %s67 = sphi 0, %s69
      %s70 = sphi 0, %s67
      %s71 = sphi 0, %s70
      %s87 = sphi 0, %s71
      %s93 = sphi 0, %s95
      %s96 = sphi 0, %s93
      %s97 = sphi 0, %s96
      %s113 = sphi 0, %s97
      %s119 = sphi 0, %s121
      %s122 = sphi 0, %s119
      %s123 = sphi 0, %s122
      %s139 = sphi 0, %s123
      %s145 = sphi 0, %s147
      %s148 = sphi 0, %s145
      %s149 = sphi 0, %s148
      %s165 = sphi 0, %s149
      %s171 = sphi 0, %s173
      %s174 = sphi 0, %s171
      %s175 = sphi 0, %s174
      %s191 = sphi 0, %s175
      %s197 = sphi 0, %s199
      %s200 = sphi 0, %s197
      %s201 = sphi 0, %s200
      %s217 = sphi 0, %s201
      %s223 = sphi 0, %s225
      %s226 = sphi 0, %s223
      %s227 = sphi 0, %s226
      %s243 = sphi 0, %s227
      %s249 = sphi 0, %s251
      %s252 = sphi 0, %s249
      %s253 = sphi 0, %s252
      %s269 = sphi 0, %s253
      %s275 = sphi 0, %s277
      %s278 = sphi 0, %s275
      %s279 = sphi 0, %s278
      %s295 = sphi 0, %s279
      %s301 = sphi 0, %s303
      %s304 = sphi 0, %s301
      %s305 = sphi 0, %s304
      %s321 = sphi 0, %s305
      %s327 = sphi 0, %s329
      %s330 = sphi 0, %s327
      %s331 = sphi 0, %s330
      %s347 = sphi 0, %s331
      %s353 = sphi 0, %s355
      %s356 = sphi 0, %s353
      %s357 = sphi 0, %s356
      %s373 = sphi 0, %s357
      %s377 = sphi 0, %s377
      %s379 = sphi 0, %s377
      %s380 = sphi 0, %s379
      %s394 = sphi 0, %s380
      %s398 = sphi 0, %s398
      %s400 = sphi 0, %s398
      %s401 = sphi 0, %s400
      %s415 = sphi 0, %s401
      %s421 = sphi 0, %s423
      %s424 = sphi 0, %s421
      %s425 = sphi 0, %s424
      %s441 = sphi 0, %s425
    $region4: #{tpu_custom_call.1} parent=1 // loop_header_branch
      %48 = sbr.rel (%p46) target = $region8
    $region5: #{tpu_custom_call.1} parent=1 // loop_body
      %s50 = ssub.s32 %s45, 1
      %s51 = ssub.s32 %s45, 2
      %s58 = sadd.s32 1, %s53
      %p59 = scmp.ge.s32.totalorder %s58, 2
      %s60 = scalar_select %p59, 0, %s58
      %s61 = sadd.s32 1, %s52
      %s62 = scalar_select %p59, %s61, %s52
      %p63 = scmp.ge.s32.totalorder %s62, 2
      %s64 = scalar_select %p63, 0, %s62
      %s65 = ssub.s32 %s52, %s64
      %p66 = scmp.eq.s32.totalorder %s65, 0
      %s68 = sadd.s32 %s67, 1
      %s69 = scalar_select %p66, %s67, %s68
      %p72 = pneg %p66
      %p73 = scmp.eq.s32.totalorder %s45, 3
      %p74 = por %p72, %p73
      %p75 = scmp.ne.s32.totalorder %s67, %s70
      %p76 = scmp.eq.s32.totalorder %s45, 0
      %p77 = por %p75, %p76
      %p78 = scmp.ne.s32.totalorder %s67, %s70
      %p79 = scmp.eq.s32.totalorder %s50, 3
      %p80 = por %p78, %p79
      %p81 = scmp.ne.s32.totalorder %s70, %s71
      %p82 = scmp.eq.s32.totalorder %s50, 0
      %p83 = por %p81, %p82
      %p84 = scmp.ne.s32.totalorder %s70, %s71
      %p85 = scmp.eq.s32.totalorder %s51, 3
      %p86 = por %p84, %p85
      %p88 = scmp.ne.s32.totalorder %s71, %s87
      %p89 = scmp.eq.s32.totalorder %s51, 0
      %p90 = por %p88, %p89
      %s91 = ssub.s32 %s52, %s64
      %p92 = scmp.eq.s32.totalorder %s91, 0
      %s94 = sadd.s32 %s93, 1
      %s95 = scalar_select %p92, %s93, %s94
      %p98 = pneg %p92
      %p99 = scmp.eq.s32.totalorder %s45, 3
      %p100 = por %p98, %p99
      %p101 = scmp.ne.s32.totalorder %s93, %s96
      %p102 = scmp.eq.s32.totalorder %s45, 0
      %p103 = por %p101, %p102
      %p104 = scmp.ne.s32.totalorder %s93, %s96
      %p105 = scmp.eq.s32.totalorder %s50, 3
      %p106 = por %p104, %p105
      %p107 = scmp.ne.s32.totalorder %s96, %s97
      %p108 = scmp.eq.s32.totalorder %s50, 0
      %p109 = por %p107, %p108
      %p110 = scmp.ne.s32.totalorder %s96, %s97
      %p111 = scmp.eq.s32.totalorder %s51, 3
      %p112 = por %p110, %p111
      %p114 = scmp.ne.s32.totalorder %s97, %s113
      %p115 = scmp.eq.s32.totalorder %s51, 0
      %p116 = por %p114, %p115
      %s117 = ssub.s32 %s52, %s64
      %p118 = scmp.eq.s32.totalorder %s117, 0
      %s120 = sadd.s32 %s119, 1
      %s121 = scalar_select %p118, %s119, %s120
      %p124 = pneg %p118
      %p125 = scmp.eq.s32.totalorder %s45, 3
      %p126 = por %p124, %p125
      %p127 = scmp.ne.s32.totalorder %s119, %s122
      %p128 = scmp.eq.s32.totalorder %s45, 0
      %p129 = por %p127, %p128
      %p130 = scmp.ne.s32.totalorder %s119, %s122
      %p131 = scmp.eq.s32.totalorder %s50, 3
      %p132 = por %p130, %p131
      %p133 = scmp.ne.s32.totalorder %s122, %s123
      %p134 = scmp.eq.s32.totalorder %s50, 0
      %p135 = por %p133, %p134
      %p136 = scmp.ne.s32.totalorder %s122, %s123
      %p137 = scmp.eq.s32.totalorder %s51, 3
      %p138 = por %p136, %p137
      %p140 = scmp.ne.s32.totalorder %s123, %s139
      %p141 = scmp.eq.s32.totalorder %s51, 0
      %p142 = por %p140, %p141
      %s143 = ssub.s32 %s52, %s64
      %p144 = scmp.eq.s32.totalorder %s143, 0
      %s146 = sadd.s32 %s145, 1
      %s147 = scalar_select %p144, %s145, %s146
      %p150 = pneg %p144
      %p151 = scmp.eq.s32.totalorder %s45, 3
      %p152 = por %p150, %p151
      %p153 = scmp.ne.s32.totalorder %s145, %s148
      %p154 = scmp.eq.s32.totalorder %s45, 0
      %p155 = por %p153, %p154
      %p156 = scmp.ne.s32.totalorder %s145, %s148
      %p157 = scmp.eq.s32.totalorder %s50, 3
      %p158 = por %p156, %p157
      %p159 = scmp.ne.s32.totalorder %s148, %s149
      %p160 = scmp.eq.s32.totalorder %s50, 0
      %p161 = por %p159, %p160
      %p162 = scmp.ne.s32.totalorder %s148, %s149
      %p163 = scmp.eq.s32.totalorder %s51, 3
      %p164 = por %p162, %p163
      %p166 = scmp.ne.s32.totalorder %s149, %s165
      %p167 = scmp.eq.s32.totalorder %s51, 0
      %p168 = por %p166, %p167
      %s169 = ssub.s32 %s53, %s60
      %p170 = scmp.eq.s32.totalorder %s169, 0
      %s172 = sadd.s32 %s171, 1
      %s173 = scalar_select %p170, %s171, %s172
      %p176 = pneg %p170
      %p177 = scmp.eq.s32.totalorder %s45, 3
      %p178 = por %p176, %p177
      %p179 = scmp.ne.s32.totalorder %s171, %s174
      %p180 = scmp.eq.s32.totalorder %s45, 0
      %p181 = por %p179, %p180
      %p182 = scmp.ne.s32.totalorder %s171, %s174
      %p183 = scmp.eq.s32.totalorder %s50, 3
      %p184 = por %p182, %p183
      %p185 = scmp.ne.s32.totalorder %s174, %s175
      %p186 = scmp.eq.s32.totalorder %s50, 0
      %p187 = por %p185, %p186
      %p188 = scmp.ne.s32.totalorder %s174, %s175
      %p189 = scmp.eq.s32.totalorder %s51, 3
      %p190 = por %p188, %p189
      %p192 = scmp.ne.s32.totalorder %s175, %s191
      %p193 = scmp.eq.s32.totalorder %s51, 0
      %p194 = por %p192, %p193
      %s195 = ssub.s32 %s53, %s60
      %p196 = scmp.eq.s32.totalorder %s195, 0
      %s198 = sadd.s32 %s197, 1
      %s199 = scalar_select %p196, %s197, %s198
      %p202 = pneg %p196
      %p203 = scmp.eq.s32.totalorder %s45, 3
      %p204 = por %p202, %p203
      %p205 = scmp.ne.s32.totalorder %s197, %s200
      %p206 = scmp.eq.s32.totalorder %s45, 0
      %p207 = por %p205, %p206
      %p208 = scmp.ne.s32.totalorder %s197, %s200
      %p209 = scmp.eq.s32.totalorder %s50, 3
      %p210 = por %p208, %p209
      %p211 = scmp.ne.s32.totalorder %s200, %s201
      %p212 = scmp.eq.s32.totalorder %s50, 0
      %p213 = por %p211, %p212
      %p214 = scmp.ne.s32.totalorder %s200, %s201
      %p215 = scmp.eq.s32.totalorder %s51, 3
      %p216 = por %p214, %p215
      %p218 = scmp.ne.s32.totalorder %s201, %s217
      %p219 = scmp.eq.s32.totalorder %s51, 0
      %p220 = por %p218, %p219
      %s221 = ssub.s32 %s53, %s60
      %p222 = scmp.eq.s32.totalorder %s221, 0
      %s224 = sadd.s32 %s223, 1
      %s225 = scalar_select %p222, %s223, %s224
      %p228 = pneg %p222
      %p229 = scmp.eq.s32.totalorder %s45, 3
      %p230 = por %p228, %p229
      %p231 = scmp.ne.s32.totalorder %s223, %s226
      %p232 = scmp.eq.s32.totalorder %s45, 0
      %p233 = por %p231, %p232
      %p234 = scmp.ne.s32.totalorder %s223, %s226
      %p235 = scmp.eq.s32.totalorder %s50, 3
      %p236 = por %p234, %p235
      %p237 = scmp.ne.s32.totalorder %s226, %s227
      %p238 = scmp.eq.s32.totalorder %s50, 0
      %p239 = por %p237, %p238
      %p240 = scmp.ne.s32.totalorder %s226, %s227
      %p241 = scmp.eq.s32.totalorder %s51, 3
      %p242 = por %p240, %p241
      %p244 = scmp.ne.s32.totalorder %s227, %s243
      %p245 = scmp.eq.s32.totalorder %s51, 0
      %p246 = por %p244, %p245
      %s247 = ssub.s32 %s53, %s60
      %p248 = scmp.eq.s32.totalorder %s247, 0
      %s250 = sadd.s32 %s249, 1
      %s251 = scalar_select %p248, %s249, %s250
      %p254 = pneg %p248
      %p255 = scmp.eq.s32.totalorder %s45, 3
      %p256 = por %p254, %p255
      %p257 = scmp.ne.s32.totalorder %s249, %s252
      %p258 = scmp.eq.s32.totalorder %s45, 0
      %p259 = por %p257, %p258
      %p260 = scmp.ne.s32.totalorder %s249, %s252
      %p261 = scmp.eq.s32.totalorder %s50, 3
      %p262 = por %p260, %p261
      %p263 = scmp.ne.s32.totalorder %s252, %s253
      %p264 = scmp.eq.s32.totalorder %s50, 0
      %p265 = por %p263, %p264
      %p266 = scmp.ne.s32.totalorder %s252, %s253
      %p267 = scmp.eq.s32.totalorder %s51, 3
      %p268 = por %p266, %p267
      %p270 = scmp.ne.s32.totalorder %s253, %s269
      %p271 = scmp.eq.s32.totalorder %s51, 0
      %p272 = por %p270, %p271
      %s273 = ssub.s32 %s53, %s60
      %p274 = scmp.eq.s32.totalorder %s273, 0
      %s276 = sadd.s32 %s275, 1
      %s277 = scalar_select %p274, %s275, %s276
      %p280 = pneg %p274
      %p281 = scmp.eq.s32.totalorder %s45, 3
      %p282 = por %p280, %p281
      %p283 = scmp.ne.s32.totalorder %s275, %s278
      %p284 = scmp.eq.s32.totalorder %s45, 0
      %p285 = por %p283, %p284
      %p286 = scmp.ne.s32.totalorder %s275, %s278
      %p287 = scmp.eq.s32.totalorder %s50, 3
      %p288 = por %p286, %p287
      %p289 = scmp.ne.s32.totalorder %s278, %s279
      %p290 = scmp.eq.s32.totalorder %s50, 0
      %p291 = por %p289, %p290
      %p292 = scmp.ne.s32.totalorder %s278, %s279
      %p293 = scmp.eq.s32.totalorder %s51, 3
      %p294 = por %p292, %p293
      %p296 = scmp.ne.s32.totalorder %s279, %s295
      %p297 = scmp.eq.s32.totalorder %s51, 0
      %p298 = por %p296, %p297
      %s299 = ssub.s32 %s53, %s60
      %p300 = scmp.eq.s32.totalorder %s299, 0
      %s302 = sadd.s32 %s301, 1
      %s303 = scalar_select %p300, %s301, %s302
      %p306 = pneg %p300
      %p307 = scmp.eq.s32.totalorder %s45, 3
      %p308 = por %p306, %p307
      %p309 = scmp.ne.s32.totalorder %s301, %s304
      %p310 = scmp.eq.s32.totalorder %s45, 0
      %p311 = por %p309, %p310
      %p312 = scmp.ne.s32.totalorder %s301, %s304
      %p313 = scmp.eq.s32.totalorder %s50, 3
      %p314 = por %p312, %p313
      %p315 = scmp.ne.s32.totalorder %s304, %s305
      %p316 = scmp.eq.s32.totalorder %s50, 0
      %p317 = por %p315, %p316
      %p318 = scmp.ne.s32.totalorder %s304, %s305
      %p319 = scmp.eq.s32.totalorder %s51, 3
      %p320 = por %p318, %p319
      %p322 = scmp.ne.s32.totalorder %s305, %s321
      %p323 = scmp.eq.s32.totalorder %s51, 0
      %p324 = por %p322, %p323
      %s325 = ssub.s32 %s53, %s60
      %p326 = scmp.eq.s32.totalorder %s325, 0
      %s328 = sadd.s32 %s327, 1
      %s329 = scalar_select %p326, %s327, %s328
      %p332 = pneg %p326
      %p333 = scmp.eq.s32.totalorder %s45, 3
      %p334 = por %p332, %p333
      %p335 = scmp.ne.s32.totalorder %s327, %s330
      %p336 = scmp.eq.s32.totalorder %s45, 0
      %p337 = por %p335, %p336
      %p338 = scmp.ne.s32.totalorder %s327, %s330
      %p339 = scmp.eq.s32.totalorder %s50, 3
      %p340 = por %p338, %p339
      %p341 = scmp.ne.s32.totalorder %s330, %s331
      %p342 = scmp.eq.s32.totalorder %s50, 0
      %p343 = por %p341, %p342
      %p344 = scmp.ne.s32.totalorder %s330, %s331
      %p345 = scmp.eq.s32.totalorder %s51, 3
      %p346 = por %p344, %p345
      %p348 = scmp.ne.s32.totalorder %s331, %s347
      %p349 = scmp.eq.s32.totalorder %s51, 0
      %p350 = por %p348, %p349
      %s351 = ssub.s32 %s53, %s60
      %p352 = scmp.eq.s32.totalorder %s351, 0
      %s354 = sadd.s32 %s353, 1
      %s355 = scalar_select %p352, %s353, %s354
      %p358 = pneg %p352
      %p359 = scmp.eq.s32.totalorder %s45, 3
      %p360 = por %p358, %p359
      %p361 = scmp.ne.s32.totalorder %s353, %s356
      %p362 = scmp.eq.s32.totalorder %s45, 0
      %p363 = por %p361, %p362
      %p364 = scmp.ne.s32.totalorder %s353, %s356
      %p365 = scmp.eq.s32.totalorder %s50, 3
      %p366 = por %p364, %p365
      %p367 = scmp.ne.s32.totalorder %s356, %s357
      %p368 = scmp.eq.s32.totalorder %s50, 0
      %p369 = por %p367, %p368
      %p370 = scmp.ne.s32.totalorder %s356, %s357
      %p371 = scmp.eq.s32.totalorder %s51, 3
      %p372 = por %p370, %p371
      %p374 = scmp.ne.s32.totalorder %s357, %s373
      %p375 = scmp.eq.s32.totalorder %s51, 0
      %p376 = por %p374, %p375
      %s378 = sadd.s32 %s377, 1
      %p381 = scmp.eq.s32.totalorder %s45, 3
      %p382 = scmp.ne.s32.totalorder %s377, %s379
      %p383 = scmp.eq.s32.totalorder %s45, 0
      %p384 = por %p382, %p383
      %p385 = scmp.ne.s32.totalorder %s377, %s379
      %p386 = scmp.eq.s32.totalorder %s50, 3
      %p387 = por %p385, %p386
      %p388 = scmp.ne.s32.totalorder %s379, %s380
      %p389 = scmp.eq.s32.totalorder %s50, 0
      %p390 = por %p388, %p389
      %p391 = scmp.ne.s32.totalorder %s379, %s380
      %p392 = scmp.eq.s32.totalorder %s51, 3
      %p393 = por %p391, %p392
      %p395 = scmp.ne.s32.totalorder %s380, %s394
      %p396 = scmp.eq.s32.totalorder %s51, 0
      %p397 = por %p395, %p396
      %s399 = sadd.s32 %s398, 1
      %p402 = scmp.eq.s32.totalorder %s45, 3
      %p403 = scmp.ne.s32.totalorder %s398, %s400
      %p404 = scmp.eq.s32.totalorder %s45, 0
      %p405 = por %p403, %p404
      %p406 = scmp.ne.s32.totalorder %s398, %s400
      %p407 = scmp.eq.s32.totalorder %s50, 3
      %p408 = por %p406, %p407
      %p409 = scmp.ne.s32.totalorder %s400, %s401
      %p410 = scmp.eq.s32.totalorder %s50, 0
      %p411 = por %p409, %p410
      %p412 = scmp.ne.s32.totalorder %s400, %s401
      %p413 = scmp.eq.s32.totalorder %s51, 3
      %p414 = por %p412, %p413
      %p416 = scmp.ne.s32.totalorder %s401, %s415
      %p417 = scmp.eq.s32.totalorder %s51, 0
      %p418 = por %p416, %p417
      %s419 = ssub.s32 %s52, %s64
      %p420 = scmp.eq.s32.totalorder %s419, 0
      %s422 = sadd.s32 %s421, 1
      %s423 = scalar_select %p420, %s421, %s422
      %p426 = pneg %p420
      %p427 = scmp.eq.s32.totalorder %s45, 3
      %p428 = por %p426, %p427
      %p429 = scmp.ne.s32.totalorder %s421, %s424
      %p430 = scmp.eq.s32.totalorder %s45, 0
      %p431 = por %p429, %p430
      %p432 = scmp.ne.s32.totalorder %s421, %s424
      %p433 = scmp.eq.s32.totalorder %s50, 3
      %p434 = por %p432, %p433
      %p435 = scmp.ne.s32.totalorder %s424, %s425
      %p436 = scmp.eq.s32.totalorder %s50, 0
      %p437 = por %p435, %p436
      %p438 = scmp.ne.s32.totalorder %s424, %s425
      %p439 = scmp.eq.s32.totalorder %s51, 3
      %p440 = por %p438, %p439
      %p442 = scmp.ne.s32.totalorder %s425, %s441
      %p443 = scmp.eq.s32.totalorder %s51, 0
      %p444 = por %p442, %p443
      %p445 = scmp.le.s32.totalorder 1, %s45
      %p446 = scmp.lt.s32.totalorder %s45, 5
      %p447 = pnand %p445, %p446
      %p448 = pneg %p447
      // Predicated region
      $region9: #{tpu_custom_call.1} parent=5 // pred_check
        _
      $region10: #{tpu_custom_call.1} parent=5 // pred_check_branch
        %450 = sbr.rel (%p447) target = $region12
      $region11: #{tpu_custom_call.1} parent=5 // pred_region
        %s451 = ssub.s32 %s45, 1
        // Predicated region
        $region13: #{tpu_custom_call.1} parent=11 // pred_check
          %p452 = pneg %p390
        $region14: #{tpu_custom_call.1} parent=11 // pred_check_branch
          %454 = sbr.rel (%p452) target = $region16
        $region15: #{tpu_custom_call.1} parent=11 // pred_region
          %s456 = ssub.s32 16, 16
          %457 = vsyncadd [#allocation22], %s456
          %s459 = sshll.u32 [#allocation23], 4
          %s460 = int_to_ptr.vmem [resolvable:$true] %s459
          %462 = dma.hbm_to_vmem [thread:$0]  %s12, 16, %s460, [#allocation22]
        $region16: #{tpu_custom_call.1} parent=11 // pred_fallthru
          _
        // Predicated region
        $region17: #{tpu_custom_call.1} parent=11 // pred_check
          %p463 = pneg %p411
        $region18: #{tpu_custom_call.1} parent=11 // pred_check_branch
          %465 = sbr.rel (%p463) target = $region20
        $region19: #{tpu_custom_call.1} parent=11 // pred_region
          %s467 = ssub.s32 16, 16
          %468 = vsyncadd [#allocation25], %s467
          %s470 = sshll.u32 [#allocation24], 4
          %s471 = int_to_ptr.vmem [resolvable:$true] %s470
          %473 = dma.hbm_to_vmem [thread:$0]  %s13, 16, %s471, [#allocation25]
        $region20: #{tpu_custom_call.1} parent=11 // pred_fallthru
          _
      $region12: #{tpu_custom_call.1} parent=5 // pred_fallthru
        _
      %p474 = scmp.lt.s32.totalorder %s45, 4
      // Predicated region
      $region21: #{tpu_custom_call.1} parent=5 // pred_check
        %p475 = pneg %p474
      $region22: #{tpu_custom_call.1} parent=5 // pred_check_branch
        %477 = sbr.rel (%p475) target = $region24
      $region23: #{tpu_custom_call.1} parent=5 // pred_region
        // Predicated region
        $region25: #{tpu_custom_call.1} parent=23 // pred_check
          %p478 = pneg %p77
        $region26: #{tpu_custom_call.1} parent=23 // pred_check_branch
          %480 = sbr.rel (%p478) target = $region28
        $region27: #{tpu_custom_call.1} parent=23 // pred_region
          %s481 = sand.u32 %s67, 1
          %s482 = scalar_lea.sflag [#allocation4], %s481
          %s483 = sand.u32 %s67, 1
          %s484 = smul.addr %s483, 16
          %s485 = scalar_lea.vmem [#allocation3], %s484
          %s486 = smul.u32 2, %s52
          %s488 = ssub.s32 256, 256
          %489 = vsyncadd %s482, %s488
          %s490 = smul.addr %s486, 128
          %s491 = scalar_lea.hbm %s0, %s490
          %s492 = sshll.u32 %s485, 4
          %s493 = int_to_ptr.vmem [resolvable:$true] %s492
          %498 = dma.hbm_to_vmem [thread:$0]  %s491, 256, %s493, %s482, 128, 128, 8
        $region28: #{tpu_custom_call.1} parent=23 // pred_fallthru
          _
        // Predicated region
        $region29: #{tpu_custom_call.1} parent=23 // pred_check
          %p499 = pneg %p103
        $region30: #{tpu_custom_call.1} parent=23 // pred_check_branch
          %501 = sbr.rel (%p499) target = $region32
        $region31: #{tpu_custom_call.1} parent=23 // pred_region
          %s502 = sand.u32 %s45, 1
          %s503 = scalar_lea.sflag [#allocation7], %s502
          %s504 = sand.u32 %s93, 1
          %s505 = smul.addr %s504, 16
          %s506 = scalar_lea.vmem [#allocation6], %s505
          %s507 = smul.u32 2, %s52
          %s509 = ssub.s32 256, 256
          %510 = vsyncadd %s503, %s509
          %s511 = smul.addr %s507, 128
          %s512 = scalar_lea.hbm %s1, %s511
          %s513 = sshll.u32 %s506, 4
          %s514 = int_to_ptr.vmem [resolvable:$true] %s513
          %519 = dma.hbm_to_vmem [thread:$0]  %s512, 256, %s514, %s503, 128, 128, 8
        $region32: #{tpu_custom_call.1} parent=23 // pred_fallthru
          _
        // Predicated region
        $region33: #{tpu_custom_call.1} parent=23 // pred_check
          %p520 = pneg %p129
        $region34: #{tpu_custom_call.1} parent=23 // pred_check_branch
          %522 = sbr.rel (%p520) target = $region36
        $region35: #{tpu_custom_call.1} parent=23 // pred_region
          %s523 = sand.u32 %s45, 1
          %s524 = scalar_lea.sflag [#allocation7], %s523
          %s525 = sand.u32 %s119, 1
          %s526 = smul.addr %s525, 2
          %s527 = scalar_lea.vmem [#allocation8], %s526
          %s528 = smul.u32 2, %s52
          %s530 = ssub.s32 32, 32
          %531 = vsyncadd %s524, %s530
          %s532 = smul.addr %s528, 16
          %s533 = scalar_lea.hbm %s2, %s532
          %s534 = sshll.u32 %s527, 4
          %s535 = int_to_ptr.vmem [resolvable:$true] %s534
          %540 = dma.hbm_to_vmem [thread:$0]  %s533, 32, %s535, %s524, 16, 16, 1
        $region36: #{tpu_custom_call.1} parent=23 // pred_fallthru
          _
        // Predicated region
        $region37: #{tpu_custom_call.1} parent=23 // pred_check
          %p541 = pneg %p155
        $region38: #{tpu_custom_call.1} parent=23 // pred_check_branch
          %543 = sbr.rel (%p541) target = $region40
        $region39: #{tpu_custom_call.1} parent=23 // pred_region
          %s544 = sand.u32 %s45, 1
          %s545 = scalar_lea.sflag [#allocation10], %s544
          %s546 = sand.u32 %s145, 1
          %s547 = smul.addr %s546, 16
          %s548 = scalar_lea.vmem [#allocation9], %s547
          %s549 = smul.u32 2, %s52
          %s551 = ssub.s32 256, 256
          %552 = vsyncadd %s545, %s551
          %s553 = smul.addr %s549, 128
          %s554 = scalar_lea.hbm %s3, %s553
          %s555 = sshll.u32 %s548, 4
          %s556 = int_to_ptr.vmem [resolvable:$true] %s555
          %561 = dma.hbm_to_vmem [thread:$0]  %s554, 256, %s556, %s545, 128, 128, 8
        $region40: #{tpu_custom_call.1} parent=23 // pred_fallthru
          _
        // Predicated region
        $region41: #{tpu_custom_call.1} parent=23 // pred_check
          %p562 = pneg %p181
        $region42: #{tpu_custom_call.1} parent=23 // pred_check_branch
          %564 = sbr.rel (%p562) target = $region44
        $region43: #{tpu_custom_call.1} parent=23 // pred_region
          %s565 = sand.u32 %s45, 1
          %s566 = scalar_lea.sflag [#allocation10], %s565
          %s567 = sand.u32 %s171, 1
          %s568 = smul.addr %s567, 128
          %s569 = scalar_lea.vmem [#allocation11], %s568
          %s570 = smul.u32 8, %s53
          %s572 = ssub.s32 2048, 2048
          %573 = vsyncadd %s566, %s572
          %s574 = smul.addr %s570, 4
          %s575 = smul.addr %s574, 64
          %s576 = scalar_lea.hbm %s4, %s575
          %s577 = sshll.u32 %s569, 4
          %s578 = int_to_ptr.vmem [resolvable:$true] %s577
          %583 = dma.hbm_to_vmem [thread:$0]  %s576, 2048, %s578, %s566, 64, 64, 4
        $region44: #{tpu_custom_call.1} parent=23 // pred_fallthru
          _
        // Predicated region
        $region45: #{tpu_custom_call.1} parent=23 // pred_check
          %p584 = pneg %p207
        $region46: #{tpu_custom_call.1} parent=23 // pred_check_branch
          %586 = sbr.rel (%p584) target = $region48
        $region47: #{tpu_custom_call.1} parent=23 // pred_region
          %s587 = sand.u32 %s45, 1
          %s588 = scalar_lea.sflag [#allocation13], %s587
          %s589 = sand.u32 %s197, 1
          %s590 = smul.addr %s589, 8
          %s591 = scalar_lea.vmem [#allocation12], %s590
          %s593 = ssub.s32 128, 128
          %594 = vsyncadd %s588, %s593
          %s595 = smul.addr %s53, 128
          %s596 = scalar_lea.hbm %s5, %s595
          %s598 = sshll.u32 %s591, 4
          %s599 = int_to_ptr.vmem [resolvable:$true] %s598
          %601 = dma.hbm_to_vmem [thread:$0]  %s596, 128, %s599, %s588
        $region48: #{tpu_custom_call.1} parent=23 // pred_fallthru
          _
        // Predicated region
        $region49: #{tpu_custom_call.1} parent=23 // pred_check
          %p602 = pneg %p233
        $region50: #{tpu_custom_call.1} parent=23 // pred_check_branch
          %604 = sbr.rel (%p602) target = $region52
        $region51: #{tpu_custom_call.1} parent=23 // pred_region
          %s605 = sand.u32 %s45, 1
          %s606 = scalar_lea.sflag [#allocation13], %s605
          %s607 = sand.u32 %s223, 1
          %s608 = smul.addr %s607, 16
          %s609 = scalar_lea.vmem [#allocation14], %s608
          %s611 = ssub.s32 256, 256
          %612 = vsyncadd %s606, %s611
          %s613 = smul.addr %s53, 4
          %s614 = smul.addr %s613, 64
          %s615 = scalar_lea.hbm %s6, %s614
          %s616 = sshll.u32 %s609, 4
          %s617 = int_to_ptr.vmem [resolvable:$true] %s616
          %622 = dma.hbm_to_vmem [thread:$0]  %s615, 256, %s617, %s606, 64, 64, 4
        $region52: #{tpu_custom_call.1} parent=23 // pred_fallthru
          _
        // Predicated region
        $region53: #{tpu_custom_call.1} parent=23 // pred_check
          %p623 = pneg %p259
        $region54: #{tpu_custom_call.1} parent=23 // pred_check_branch
          %625 = sbr.rel (%p623) target = $region56
        $region55: #{tpu_custom_call.1} parent=23 // pred_region
          %s626 = sand.u32 %s45, 1
          %s627 = scalar_lea.sflag [#allocation16], %s626
          %s628 = sand.u32 %s249, 1
          %s629 = scalar_lea.vmem [#allocation15], %s628
          %s631 = ssub.s32 16, 16
          %632 = vsyncadd %s627, %s631
          %s633 = smul.addr %s53, 16
          %s634 = scalar_lea.hbm %s7, %s633
          %s636 = sshll.u32 %s629, 4
          %s637 = int_to_ptr.vmem [resolvable:$true] %s636
          %639 = dma.hbm_to_vmem [thread:$0]  %s634, 16, %s637, %s627
        $region56: #{tpu_custom_call.1} parent=23 // pred_fallthru
          _
        // Predicated region
        $region57: #{tpu_custom_call.1} parent=23 // pred_check
          %p640 = pneg %p285
        $region58: #{tpu_custom_call.1} parent=23 // pred_check_branch
          %642 = sbr.rel (%p640) target = $region60
        $region59: #{tpu_custom_call.1} parent=23 // pred_region
          %s643 = sand.u32 %s45, 1
          %s644 = scalar_lea.sflag [#allocation16], %s643
          %s645 = sand.u32 %s275, 1
          %s646 = smul.addr %s645, 32
          %s647 = scalar_lea.vmem [#allocation17], %s646
          %s649 = ssub.s32 512, 512
          %650 = vsyncadd %s644, %s649
          %s651 = smul.addr %s53, 8
          %s652 = smul.addr %s651, 64
          %s653 = scalar_lea.hbm %s8, %s652
          %s654 = sshll.u32 %s647, 4
          %s655 = int_to_ptr.vmem [resolvable:$true] %s654
          %660 = dma.hbm_to_vmem [thread:$0]  %s653, 512, %s655, %s644, 64, 64, 4
        $region60: #{tpu_custom_call.1} parent=23 // pred_fallthru
          _
        // Predicated region
        $region61: #{tpu_custom_call.1} parent=23 // pred_check
          %p661 = pneg %p311
        $region62: #{tpu_custom_call.1} parent=23 // pred_check_branch
          %663 = sbr.rel (%p661) target = $region64
        $region63: #{tpu_custom_call.1} parent=23 // pred_region
          %s664 = sand.u32 %s45, 1
          %s665 = scalar_lea.sflag [#allocation19], %s664
          %s666 = sand.u32 %s301, 1
          %s667 = scalar_lea.vmem [#allocation18], %s666
          %s669 = ssub.s32 16, 16
          %670 = vsyncadd %s665, %s669
          %s671 = smul.addr %s53, 16
          %s672 = scalar_lea.hbm %s9, %s671
          %s674 = sshll.u32 %s667, 4
          %s675 = int_to_ptr.vmem [resolvable:$true] %s674
          %677 = dma.hbm_to_vmem [thread:$0]  %s672, 16, %s675, %s665
        $region64: #{tpu_custom_call.1} parent=23 // pred_fallthru
          _
        // Predicated region
        $region65: #{tpu_custom_call.1} parent=23 // pred_check
          %p678 = pneg %p337
        $region66: #{tpu_custom_call.1} parent=23 // pred_check_branch
          %680 = sbr.rel (%p678) target = $region68
        $region67: #{tpu_custom_call.1} parent=23 // pred_region
          %s681 = sand.u32 %s45, 1
          %s682 = scalar_lea.sflag [#allocation19], %s681
          %s683 = sand.u32 %s327, 1
          %s684 = smul.addr %s683, 4
          %s685 = scalar_lea.vmem [#allocation20], %s684
          %s687 = ssub.s32 64, 64
          %688 = vsyncadd %s682, %s687
          %s689 = smul.addr %s53, 64
          %s690 = scalar_lea.hbm %s10, %s689
          %s692 = sshll.u32 %s685, 4
          %s693 = int_to_ptr.vmem [resolvable:$true] %s692
          %695 = dma.hbm_to_vmem [thread:$0]  %s690, 64, %s693, %s682
        $region68: #{tpu_custom_call.1} parent=23 // pred_fallthru
          _
        // Predicated region
        $region69: #{tpu_custom_call.1} parent=23 // pred_check
          %p696 = pneg %p363
        $region70: #{tpu_custom_call.1} parent=23 // pred_check_branch
          %698 = sbr.rel (%p696) target = $region72
        $region71: #{tpu_custom_call.1} parent=23 // pred_region
          %s699 = sand.u32 %s45, 1
          %s700 = scalar_lea.sflag [#allocation22], %s699
          %s701 = sand.u32 %s353, 1
          %s702 = smul.addr %s701, 4
          %s703 = scalar_lea.vmem [#allocation21], %s702
          %s705 = ssub.s32 64, 64
          %706 = vsyncadd %s700, %s705
          %s707 = smul.addr %s53, 64
          %s708 = scalar_lea.hbm %s11, %s707
          %s710 = sshll.u32 %s703, 4
          %s711 = int_to_ptr.vmem [resolvable:$true] %s710
          %713 = dma.hbm_to_vmem [thread:$0]  %s708, 64, %s711, %s700
        $region72: #{tpu_custom_call.1} parent=23 // pred_fallthru
          _
      $region24: #{tpu_custom_call.1} parent=5 // pred_fallthru
        _
      %p714 = scmp.le.s32.totalorder 1, %s45
      %p715 = scmp.lt.s32.totalorder %s45, 5
      %p716 = pnand %p714, %p715
      %p717 = pneg %p716
      // Predicated region
      $region73: #{tpu_custom_call.1} parent=5 // pred_check
        _
      $region74: #{tpu_custom_call.1} parent=5 // pred_check_branch
        %719 = sbr.rel (%p716) target = $region76
      $region75: #{tpu_custom_call.1} parent=5 // pred_region
        %s720 = ssub.s32 %s45, 1
        %s721 = sand.u32 %s70, 1
        %s722 = scalar_lea.sflag [#allocation4], %s721
        %s723 = sand.u32 %s70, 1
        %s724 = smul.addr %s723, 16
        %s725 = scalar_lea.vmem [#allocation3], %s724
        // Predicated region
        $region77: #{tpu_custom_call.1} parent=75 // pred_check
          %p726 = pneg %p83
        $region78: #{tpu_custom_call.1} parent=75 // pred_check_branch
          %728 = sbr.rel (%p726) target = $region80
        $region79: #{tpu_custom_call.1} parent=75 // pred_region
          %729 = dma.done %s722, 256
        $region80: #{tpu_custom_call.1} parent=75 // pred_fallthru
          _
        %s730 = sand.u32 %s50, 1
        %s731 = scalar_lea.sflag [#allocation7], %s730
        %s732 = sand.u32 %s96, 1
        %s733 = smul.addr %s732, 16
        %s734 = scalar_lea.vmem [#allocation6], %s733
        // Predicated region
        $region81: #{tpu_custom_call.1} parent=75 // pred_check
          %p735 = pneg %p109
        $region82: #{tpu_custom_call.1} parent=75 // pred_check_branch
          %737 = sbr.rel (%p735) target = $region84
        $region83: #{tpu_custom_call.1} parent=75 // pred_region
          %738 = dma.done %s731, 256
        $region84: #{tpu_custom_call.1} parent=75 // pred_fallthru
          _
        %s739 = sand.u32 %s50, 1
        %s740 = scalar_lea.sflag [#allocation7], %s739
        %s741 = sand.u32 %s122, 1
        %s742 = smul.addr %s741, 2
        %s743 = scalar_lea.vmem [#allocation8], %s742
        // Predicated region
        $region85: #{tpu_custom_call.1} parent=75 // pred_check
          %p744 = pneg %p135
        $region86: #{tpu_custom_call.1} parent=75 // pred_check_branch
          %746 = sbr.rel (%p744) target = $region88
        $region87: #{tpu_custom_call.1} parent=75 // pred_region
          %747 = dma.done %s740, 32
        $region88: #{tpu_custom_call.1} parent=75 // pred_fallthru
          _
        %s748 = sand.u32 %s50, 1
        %s749 = scalar_lea.sflag [#allocation10], %s748
        %s750 = sand.u32 %s148, 1
        %s751 = smul.addr %s750, 16
        %s752 = scalar_lea.vmem [#allocation9], %s751
        // Predicated region
        $region89: #{tpu_custom_call.1} parent=75 // pred_check
          %p753 = pneg %p161
        $region90: #{tpu_custom_call.1} parent=75 // pred_check_branch
          %755 = sbr.rel (%p753) target = $region92
        $region91: #{tpu_custom_call.1} parent=75 // pred_region
          %756 = dma.done %s749, 256
        $region92: #{tpu_custom_call.1} parent=75 // pred_fallthru
          _
        %s757 = sand.u32 %s50, 1
        %s758 = scalar_lea.sflag [#allocation10], %s757
        %s759 = sand.u32 %s174, 1
        %s760 = smul.addr %s759, 128
        %s761 = scalar_lea.vmem [#allocation11], %s760
        // Predicated region
        $region93: #{tpu_custom_call.1} parent=75 // pred_check
          %p762 = pneg %p187
        $region94: #{tpu_custom_call.1} parent=75 // pred_check_branch
          %764 = sbr.rel (%p762) target = $region96
        $region95: #{tpu_custom_call.1} parent=75 // pred_region
          %765 = dma.done %s758, 2048
        $region96: #{tpu_custom_call.1} parent=75 // pred_fallthru
          _
        %s766 = sand.u32 %s50, 1
        %s767 = scalar_lea.sflag [#allocation13], %s766
        %s768 = sand.u32 %s200, 1
        %s769 = smul.addr %s768, 8
        %s770 = scalar_lea.vmem [#allocation12], %s769
        // Predicated region
        $region97: #{tpu_custom_call.1} parent=75 // pred_check
          %p771 = pneg %p213
        $region98: #{tpu_custom_call.1} parent=75 // pred_check_branch
          %773 = sbr.rel (%p771) target = $region100
        $region99: #{tpu_custom_call.1} parent=75 // pred_region
          %774 = dma.done %s767, 128
        $region100: #{tpu_custom_call.1} parent=75 // pred_fallthru
          _
        %s775 = sand.u32 %s50, 1
        %s776 = scalar_lea.sflag [#allocation13], %s775
        %s777 = sand.u32 %s226, 1
        %s778 = smul.addr %s777, 16
        %s779 = scalar_lea.vmem [#allocation14], %s778
        // Predicated region
        $region101: #{tpu_custom_call.1} parent=75 // pred_check
          %p780 = pneg %p239
        $region102: #{tpu_custom_call.1} parent=75 // pred_check_branch
          %782 = sbr.rel (%p780) target = $region104
        $region103: #{tpu_custom_call.1} parent=75 // pred_region
          %783 = dma.done %s776, 256
        $region104: #{tpu_custom_call.1} parent=75 // pred_fallthru
          _
        %s784 = sand.u32 %s50, 1
        %s785 = scalar_lea.sflag [#allocation16], %s784
        %s786 = sand.u32 %s252, 1
        %s787 = scalar_lea.vmem [#allocation15], %s786
        // Predicated region
        $region105: #{tpu_custom_call.1} parent=75 // pred_check
          %p788 = pneg %p265
        $region106: #{tpu_custom_call.1} parent=75 // pred_check_branch
          %790 = sbr.rel (%p788) target = $region108
        $region107: #{tpu_custom_call.1} parent=75 // pred_region
          %791 = dma.done %s785, 16
        $region108: #{tpu_custom_call.1} parent=75 // pred_fallthru
          _
        %s792 = sand.u32 %s50, 1
        %s793 = scalar_lea.sflag [#allocation16], %s792
        %s794 = sand.u32 %s278, 1
        %s795 = smul.addr %s794, 32
        %s796 = scalar_lea.vmem [#allocation17], %s795
        // Predicated region
        $region109: #{tpu_custom_call.1} parent=75 // pred_check
          %p797 = pneg %p291
        $region110: #{tpu_custom_call.1} parent=75 // pred_check_branch
          %799 = sbr.rel (%p797) target = $region112
        $region111: #{tpu_custom_call.1} parent=75 // pred_region
          %800 = dma.done %s793, 512
        $region112: #{tpu_custom_call.1} parent=75 // pred_fallthru
          _
        %s801 = sand.u32 %s50, 1
        %s802 = scalar_lea.sflag [#allocation19], %s801
        %s803 = sand.u32 %s304, 1
        %s804 = scalar_lea.vmem [#allocation18], %s803
        // Predicated region
        $region113: #{tpu_custom_call.1} parent=75 // pred_check
          %p805 = pneg %p317
        $region114: #{tpu_custom_call.1} parent=75 // pred_check_branch
          %807 = sbr.rel (%p805) target = $region116
        $region115: #{tpu_custom_call.1} parent=75 // pred_region
          %808 = dma.done %s802, 16
        $region116: #{tpu_custom_call.1} parent=75 // pred_fallthru
          _
        %s809 = sand.u32 %s50, 1
        %s810 = scalar_lea.sflag [#allocation19], %s809
        %s811 = sand.u32 %s330, 1
        %s812 = smul.addr %s811, 4
        %s813 = scalar_lea.vmem [#allocation20], %s812
        // Predicated region
        $region117: #{tpu_custom_call.1} parent=75 // pred_check
          %p814 = pneg %p343
        $region118: #{tpu_custom_call.1} parent=75 // pred_check_branch
          %816 = sbr.rel (%p814) target = $region120
        $region119: #{tpu_custom_call.1} parent=75 // pred_region
          %817 = dma.done %s810, 64
        $region120: #{tpu_custom_call.1} parent=75 // pred_fallthru
          _
        %s818 = sand.u32 %s50, 1
        %s819 = scalar_lea.sflag [#allocation22], %s818
        %s820 = sand.u32 %s356, 1
        %s821 = smul.addr %s820, 4
        %s822 = scalar_lea.vmem [#allocation21], %s821
        // Predicated region
        $region121: #{tpu_custom_call.1} parent=75 // pred_check
          %p823 = pneg %p369
        $region122: #{tpu_custom_call.1} parent=75 // pred_check_branch
          %825 = sbr.rel (%p823) target = $region124
        $region123: #{tpu_custom_call.1} parent=75 // pred_region
          %826 = dma.done %s819, 64
        $region124: #{tpu_custom_call.1} parent=75 // pred_fallthru
          _
        // Predicated region
        $region125: #{tpu_custom_call.1} parent=75 // pred_check
          %p827 = pneg %p390
        $region126: #{tpu_custom_call.1} parent=75 // pred_check_branch
          %829 = sbr.rel (%p827) target = $region128
        $region127: #{tpu_custom_call.1} parent=75 // pred_region
          %830 = dma.done [#allocation22], 16
        $region128: #{tpu_custom_call.1} parent=75 // pred_fallthru
          _
        // Predicated region
        $region129: #{tpu_custom_call.1} parent=75 // pred_check
          %p831 = pneg %p411
        $region130: #{tpu_custom_call.1} parent=75 // pred_check_branch
          %833 = sbr.rel (%p831) target = $region132
        $region131: #{tpu_custom_call.1} parent=75 // pred_region
          %834 = dma.done [#allocation25], 16
        $region132: #{tpu_custom_call.1} parent=75 // pred_fallthru
          _
        %s835 = sand.u32 %s70, 1
        %s836 = scalar_lea.sflag [#allocation4], %s835
        %s837 = sand.u32 %s70, 1
        %s838 = smul.addr %s837, 16
        %s839 = scalar_lea.vmem [#allocation3], %s838
        %p840 = pneg %p83
        %p841 = pneg %p80
        %s842 = sand.u32 %s50, 1
        %s843 = scalar_lea.sflag [#allocation7], %s842
        %s844 = sand.u32 %s96, 1
        %s845 = smul.addr %s844, 16
        %s846 = scalar_lea.vmem [#allocation6], %s845
        %p847 = pneg %p109
        %p848 = pneg %p106
        %s849 = sand.u32 %s50, 1
        %s850 = scalar_lea.sflag [#allocation7], %s849
        %s851 = sand.u32 %s122, 1
        %s852 = smul.addr %s851, 2
        %s853 = scalar_lea.vmem [#allocation8], %s852
        %p854 = pneg %p135
        %p855 = pneg %p132
        %s856 = sand.u32 %s50, 1
        %s857 = scalar_lea.sflag [#allocation10], %s856
        %s858 = sand.u32 %s148, 1
        %s859 = smul.addr %s858, 16
        %s860 = scalar_lea.vmem [#allocation9], %s859
        %p861 = pneg %p161
        %p862 = pneg %p158
        %s863 = sand.u32 %s50, 1
        %s864 = scalar_lea.sflag [#allocation10], %s863
        %s865 = sand.u32 %s174, 1
        %s866 = smul.addr %s865, 128
        %s867 = scalar_lea.vmem [#allocation11], %s866
        %p868 = pneg %p187
        %p869 = pneg %p184
        %s870 = sand.u32 %s50, 1
        %s871 = scalar_lea.sflag [#allocation13], %s870
        %s872 = sand.u32 %s200, 1
        %s873 = smul.addr %s872, 8
        %s874 = scalar_lea.vmem [#allocation12], %s873
        %p875 = pneg %p213
        %p876 = pneg %p210
        %s877 = sand.u32 %s50, 1
        %s878 = scalar_lea.sflag [#allocation13], %s877
        %s879 = sand.u32 %s226, 1
        %s880 = smul.addr %s879, 16
        %s881 = scalar_lea.vmem [#allocation14], %s880
        %p882 = pneg %p239
        %p883 = pneg %p236
        %s884 = sand.u32 %s50, 1
        %s885 = scalar_lea.sflag [#allocation16], %s884
        %s886 = sand.u32 %s252, 1
        %s887 = scalar_lea.vmem [#allocation15], %s886
        %p888 = pneg %p265
        %p889 = pneg %p262
        %s890 = sand.u32 %s50, 1
        %s891 = scalar_lea.sflag [#allocation16], %s890
        %s892 = sand.u32 %s278, 1
        %s893 = smul.addr %s892, 32
        %s894 = scalar_lea.vmem [#allocation17], %s893
        %p895 = pneg %p291
        %p896 = pneg %p288
        %s897 = sand.u32 %s50, 1
        %s898 = scalar_lea.sflag [#allocation19], %s897
        %s899 = sand.u32 %s304, 1
        %s900 = scalar_lea.vmem [#allocation18], %s899
        %p901 = pneg %p317
        %p902 = pneg %p314
        %s903 = sand.u32 %s50, 1
        %s904 = scalar_lea.sflag [#allocation19], %s903
        %s905 = sand.u32 %s330, 1
        %s906 = smul.addr %s905, 4
        %s907 = scalar_lea.vmem [#allocation20], %s906
        %p908 = pneg %p343
        %p909 = pneg %p340
        %s910 = sand.u32 %s50, 1
        %s911 = scalar_lea.sflag [#allocation22], %s910
        %s912 = sand.u32 %s356, 1
        %s913 = smul.addr %s912, 4
        %s914 = scalar_lea.vmem [#allocation21], %s913
        %p915 = pneg %p369
        %p916 = pneg %p366
        %p917 = pneg %p390
        %p918 = pneg %p387
        %p919 = pneg %p411
        %p920 = pneg %p408
        %p921 = pneg %p437
        %p922 = pneg %p434
        %s923 = sand.u32 %s424, 1
        %s924 = scalar_lea.sflag [#allocation5], %s923
        %s925 = sand.u32 %s424, 1
        %s926 = smul.addr %s925, 16
        %s927 = scalar_lea.vmem [#allocation26], %s926
        %s928 = smul.u32 2, %s54
        %s929 = smul.u32 2, %s54
        %s930 = smul.u32 2, %s54
        %s931 = smul.u32 2, %s54
        %s932 = smul.u32 8, %s55
        %s933 = smul.u32 2, %s54
        %p935 = scmp.eq.s32.totalorder %s55, 0
        // Predicated region
        $region133: #{tpu_custom_call.1} parent=75 // pred_check
          %p936 = pneg %p935
        $region134: #{tpu_custom_call.1} parent=75 // pred_check_branch
          %938 = sbr.rel (%p936) target = $region136
        $region135: #{tpu_custom_call.1} parent=75 // pred_region
          %v939 = vld [vmem:[%s725] sm:$0xff]
          %v940 = vld [vmem:[%s725 + $0x8] sm:$0xff]
          %vm941 = vcmask 261120
          %942 = vst.msk [vmem:[#allocation2] sm:$0xff] %vm941, %v939
          %943 = vst.msk [vmem:[#allocation2 + $0x8] sm:$0xff] %vm941, %v940
        $region136: #{tpu_custom_call.1} parent=75 // pred_fallthru
          _
        %v944 = vld [vmem:[#allocation2] sm:$0xff]
        %v945 = vld [vmem:[#allocation2 + $0x8] sm:$0xff]
        %v946 = vld [vmem:[%s734] sm:$0xff]
        %v947 = vld [vmem:[%s734 + $0x8] sm:$0xff]
        %v948 = vld [vmem:[%s743] sm:$0x1]
        %v949 = vld [vmem:[%s743 + $0x1] sm:$0x1]
        %v950 = vld [vmem:[%s752] sm:$0xff]
        %v951 = vld [vmem:[%s752 + $0x8] sm:$0xff]
        %v952 = vld [vmem:[%s813] sm:$0x7]
        %v953 = vld [vmem:[%s822] sm:$0x7]
        %vm954 = vcmask 261120
        %v955 = vsel %vm954, %v944, 0.0
        %956 = vadd.xlane.f32.xlu0 %v955
        %v957 = vpop.xlane.xlu0 %956
        %v958 = vsel %vm954, %v945, 0.0
        %959 = vadd.xlane.f32.xlu0 %v958
        %v960 = vpop.xlane.xlu0 %959
        %v961 = vrcp.pop 32.0
        %v962 = vmul.f32 %v957, %v961
        %v963 = vmul.f32 %v960, %v961
        %v964 = vsub.f32 %v944, %v962
        %v965 = vsub.f32 %v945, %v963
        %v966 = vmul.f32 %v964, %v964
        %v967 = vmul.f32 %v965, %v965
        %v968 = vsel %vm954, %v966, 0.0
        %969 = vadd.xlane.f32.xlu0 %v968
        %v970 = vpop.xlane.xlu0 %969
        %v971 = vsel %vm954, %v967, 0.0
        %972 = vadd.xlane.f32.xlu0 %v971
        %v973 = vpop.xlane.xlu0 %972
        %v974 = vmul.f32 %v970, 0.032258064
        %v975 = vmul.f32 %v973, 0.032258064
        %v976 = vrsqrt.pop %v974
        %v977 = vmul.f32 %v974, %v976
        %vm978 = vcmp.eq.f32.partialorder %v974, inf
        %v979 = vsel %vm978, %v974, %v977
        %vm980 = vcmp.eq.f32.partialorder %v974, 0.0
        %v981 = vand.u32 %v974, 2147483648
        %v982 = vsel %vm980, %v981, %v979
        %v983 = vrsqrt.pop %v975
        %v984 = vmul.f32 %v975, %v983
        %vm985 = vcmp.eq.f32.partialorder %v975, inf
        %v986 = vsel %vm985, %v975, %v984
        %vm987 = vcmp.eq.f32.partialorder %v975, 0.0
        %v988 = vand.u32 %v975, 2147483648
        %v989 = vsel %vm987, %v988, %v986
        %v990 = vadd.f32 %v982, 1e-06
        %v991 = vadd.f32 %v989, 1e-06
        %v992 = vrcp.pop %v990
        %v993 = vrcp.pop %v991
        %v994 = vmul.f32 %v964, %v992
        %v995 = vmul.f32 %v965, %v993
        %v996 = vlaneseq
        %v997 = vshrl.u32 %v996, 7
        %v998 = vsub.s32 0, %v997
        %v999 = vrot.slane %v952, %v998
        %v1000 = vmul.f32 %v999, %v994
        %v1001 = vmul.f32 %v999, %v995
        %v1002 = vlaneseq
        %v1003 = vshrl.u32 %v1002, 7
        %v1004 = vsub.s32 0, %v1003
        %v1005 = vrot.slane %v953, %v1004
        %v1006 = vadd.f32 %v1000, %v1005
        %v1007 = vadd.f32 %v1001, %v1005
        %v1008 = vld [vmem:[%s761] sm:$0xf]
        %v1009 = vld [vmem:[%s761 + $0x4] sm:$0xf]
        %v1010 = vld [vmem:[%s761 + $0x8] sm:$0xf]
        %v1011 = vld [vmem:[%s761 + $0xc] sm:$0xf]
        %s1012 = scalar_lea.vmem %s761, 16 [#allocation11]
        %v1013 = vld [vmem:[%s1012] sm:$0xf]
        %v1014 = vld [vmem:[%s1012 + $0x4] sm:$0xf]
        %v1015 = vld [vmem:[%s1012 + $0x8] sm:$0xf]
        %v1016 = vld [vmem:[%s1012 + $0xc] sm:$0xf]
        %s1017 = scalar_lea.vmem %s761, 32 [#allocation11]
        %v1018 = vld [vmem:[%s1017] sm:$0xf]
        %v1019 = vld [vmem:[%s1017 + $0x4] sm:$0xf]
        %v1020 = vld [vmem:[%s1017 + $0x8] sm:$0xf]
        %v1021 = vld [vmem:[%s1017 + $0xc] sm:$0xf]
        %s1022 = scalar_lea.vmem %s761, 48 [#allocation11]
        %v1023 = vld [vmem:[%s1022] sm:$0xf]
        %v1024 = vld [vmem:[%s1022 + $0x4] sm:$0xf]
        %v1025 = vld [vmem:[%s1022 + $0x8] sm:$0xf]
        %v1026 = vld [vmem:[%s1022 + $0xc] sm:$0xf]
        %v1027 = vld [vmem:[%s770] sm:$0x1]
        %v1028 = vld [vmem:[%s770 + $0x1] sm:$0x1]
        %v1029 = vld [vmem:[%s770 + $0x2] sm:$0x1]
        %v1030 = vld [vmem:[%s770 + $0x3] sm:$0x1]
        %v1031 = vpack.c.bf16 %v1007, %v1006
        %v1032 = vlaneseq
        %v1033 = vshrl.u32 %v1032, 7
        %v1034 = vsub.s32 0, %v1033
        %v1035 = vrot.slane %v1027, %v1034
        %v1040 = vunpack.c.l.b16 %v1008
        %v1041 = vunpack.c.l.b16 %v1009
        %v1042 = vunpack.c.l.b16 %v1010
        %v1043 = vunpack.c.l.b16 %v1011
        %v1044 = vpack.c.b16 %v1041, %v1040
        %v1045 = vpack.c.b16 %v1043, %v1042
        %v1049 = vsel %vm954, %v1031, 0
        %1051 = vmatprep.subr.bf16.mxu0 0
        %1052 = vmatpush1.bf16.msra.mxu0 %v1044
        %1053 = vmatprep.subr.bf16.mxu0 0
        %1054 = vmatpush1.bf16.msra.mxu0 %v1045
        %1055 = vmatprep.subr.bf16.mxu0 0
        %1056 = vmatpush1.bf16.msra.mxu0 0
        %1057 = vmatprep.subr.bf16.mxu0 0
        %1058 = vmatpush1.bf16.msra.mxu0 0
        %1059 = vmatprep.subr.bf16.mxu0 0
        %1060 = vmatpush1.bf16.msra.mxu0 0
        %1061 = vmatprep.subr.bf16.mxu0 0
        %1062 = vmatpush1.bf16.msra.mxu0 0
        %1063 = vmatprep.subr.bf16.mxu0 0
        %1064 = vmatpush1.bf16.msra.mxu0 0
        %1065 = vmatprep.subr.bf16.mxu0 0
        %1066 = vmatpush1.bf16.msra.mxu0 0
        %1067 = vmatprep.subr.bf16.mxu0 0
        %1068 = vmatpush1.bf16.msra.mxu0 0
        %1069 = vmatprep.subr.bf16.mxu0 0
        %1070 = vmatpush1.bf16.msra.mxu0 0
        %1071 = vmatprep.subr.bf16.mxu0 0
        %1072 = vmatpush1.bf16.msra.mxu0 0
        %1073 = vmatprep.subr.bf16.mxu0 0
        %1074 = vmatpush1.bf16.msra.mxu0 0
        %1075 = vmatprep.subr.bf16.mxu0 0
        %1076 = vmatpush1.bf16.msra.mxu0 0
        %1077 = vmatprep.subr.bf16.mxu0 0
        %1078 = vmatpush1.bf16.msra.mxu0 0
        %1079 = vmatprep.subr.bf16.mxu0 0
        %1080 = vmatpush1.bf16.msra.mxu0 0
        %1081 = vmatprep.subr.bf16.mxu0 0
        %1082 = vmatpush1.bf16.msra.mxu0 0
        %1083 = vmatprep.mubr.bf16.mxu0 0
        %1084 = vmatmul.mubr.bf16.gmra.mrb[0].mxu0 %v1049
        %v1085 = vpop.f32.mrb[0].mxu0
        %v1086 = vadd.f32 %v1035, %v1085
        %v1087 = vpop.f32.mrb[0].mxu0
        %v1088 = vpop.f32.mrb[0].mxu0
        %v1089 = vadd.f32 %v1035, %v1088
        %v1090 = vpop.f32.mrb[0].mxu0
        %1091 = vdwg.mxu0
        %v1092 = vlaneseq
        %v1093 = vshrl.u32 %v1092, 7
        %v1094 = vsub.s32 0, %v1093
        %v1095 = vrot.slane %v1028, %v1094
        %v1100 = vunpack.c.l.b16 %v1013
        %v1101 = vunpack.c.l.b16 %v1014
        %v1102 = vunpack.c.l.b16 %v1015
        %v1103 = vunpack.c.l.b16 %v1016
        %v1104 = vpack.c.b16 %v1101, %v1100
        %v1105 = vpack.c.b16 %v1103, %v1102
        %1108 = vmatprep.subr.bf16.mxu0 0
        %1109 = vmatpush1.bf16.msra.mxu0 %v1104
        %1110 = vmatprep.subr.bf16.mxu0 0
        %1111 = vmatpush1.bf16.msra.mxu0 %v1105
        %1112 = vmatprep.subr.bf16.mxu0 0
        %1113 = vmatpush1.bf16.msra.mxu0 0
        %1114 = vmatprep.subr.bf16.mxu0 0
        %1115 = vmatpush1.bf16.msra.mxu0 0
        %1116 = vmatprep.subr.bf16.mxu0 0
        %1117 = vmatpush1.bf16.msra.mxu0 0
        %1118 = vmatprep.subr.bf16.mxu0 0
        %1119 = vmatpush1.bf16.msra.mxu0 0
        %1120 = vmatprep.subr.bf16.mxu0 0
        %1121 = vmatpush1.bf16.msra.mxu0 0
        %1122 = vmatprep.subr.bf16.mxu0 0
        %1123 = vmatpush1.bf16.msra.mxu0 0
        %1124 = vmatprep.subr.bf16.mxu0 0
        %1125 = vmatpush1.bf16.msra.mxu0 0
        %1126 = vmatprep.subr.bf16.mxu0 0
        %1127 = vmatpush1.bf16.msra.mxu0 0
        %1128 = vmatprep.subr.bf16.mxu0 0
        %1129 = vmatpush1.bf16.msra.mxu0 0
        %1130 = vmatprep.subr.bf16.mxu0 0
        %1131 = vmatpush1.bf16.msra.mxu0 0
        %1132 = vmatprep.subr.bf16.mxu0 0
        %1133 = vmatpush1.bf16.msra.mxu0 0
        %1134 = vmatprep.subr.bf16.mxu0 0
        %1135 = vmatpush1.bf16.msra.mxu0 0
        %1136 = vmatprep.subr.bf16.mxu0 0
        %1137 = vmatpush1.bf16.msra.mxu0 0
        %1138 = vmatprep.subr.bf16.mxu0 0
        %1139 = vmatpush1.bf16.msra.mxu0 0
        %1140 = vmatprep.mubr.bf16.mxu0 0
        %1141 = vmatmul.mubr.bf16.gmra.mrb[0].mxu0 %v1049
        %v1142 = vpop.f32.mrb[0].mxu0
        %v1143 = vadd.f32 %v1095, %v1142
        %v1144 = vpop.f32.mrb[0].mxu0
        %v1145 = vpop.f32.mrb[0].mxu0
        %v1146 = vadd.f32 %v1095, %v1145
        %v1147 = vpop.f32.mrb[0].mxu0
        %1148 = vdwg.mxu0
        %v1149 = vlaneseq
        %v1150 = vshrl.u32 %v1149, 7
        %v1151 = vsub.s32 0, %v1150
        %v1152 = vrot.slane %v1029, %v1151
        %v1157 = vunpack.c.l.b16 %v1018
        %v1158 = vunpack.c.l.b16 %v1019
        %v1159 = vunpack.c.l.b16 %v1020
        %v1160 = vunpack.c.l.b16 %v1021
        %v1161 = vpack.c.b16 %v1158, %v1157
        %v1162 = vpack.c.b16 %v1160, %v1159
        %1165 = vmatprep.subr.bf16.mxu0 0
        %1166 = vmatpush1.bf16.msra.mxu0 %v1161
        %1167 = vmatprep.subr.bf16.mxu0 0
        %1168 = vmatpush1.bf16.msra.mxu0 %v1162
        %1169 = vmatprep.subr.bf16.mxu0 0
        %1170 = vmatpush1.bf16.msra.mxu0 0
        %1171 = vmatprep.subr.bf16.mxu0 0
        %1172 = vmatpush1.bf16.msra.mxu0 0
        %1173 = vmatprep.subr.bf16.mxu0 0
        %1174 = vmatpush1.bf16.msra.mxu0 0
        %1175 = vmatprep.subr.bf16.mxu0 0
        %1176 = vmatpush1.bf16.msra.mxu0 0
        %1177 = vmatprep.subr.bf16.mxu0 0
        %1178 = vmatpush1.bf16.msra.mxu0 0
        %1179 = vmatprep.subr.bf16.mxu0 0
        %1180 = vmatpush1.bf16.msra.mxu0 0
        %1181 = vmatprep.subr.bf16.mxu0 0
        %1182 = vmatpush1.bf16.msra.mxu0 0
        %1183 = vmatprep.subr.bf16.mxu0 0
        %1184 = vmatpush1.bf16.msra.mxu0 0
        %1185 = vmatprep.subr.bf16.mxu0 0
        %1186 = vmatpush1.bf16.msra.mxu0 0
        %1187 = vmatprep.subr.bf16.mxu0 0
        %1188 = vmatpush1.bf16.msra.mxu0 0
        %1189 = vmatprep.subr.bf16.mxu0 0
        %1190 = vmatpush1.bf16.msra.mxu0 0
        %1191 = vmatprep.subr.bf16.mxu0 0
        %1192 = vmatpush1.bf16.msra.mxu0 0
        %1193 = vmatprep.subr.bf16.mxu0 0
        %1194 = vmatpush1.bf16.msra.mxu0 0
        %1195 = vmatprep.subr.bf16.mxu0 0
        %1196 = vmatpush1.bf16.msra.mxu0 0
        %1197 = vmatprep.mubr.bf16.mxu0 0
        %1198 = vmatmul.mubr.bf16.gmra.mrb[0].mxu0 %v1049
        %v1199 = vpop.f32.mrb[0].mxu0
        %v1200 = vadd.f32 %v1152, %v1199
        %v1201 = vpop.f32.mrb[0].mxu0
        %v1202 = vpop.f32.mrb[0].mxu0
        %v1203 = vadd.f32 %v1152, %v1202
        %v1204 = vpop.f32.mrb[0].mxu0
        %1205 = vdwg.mxu0
        %1208 = vrot.lane.b32.xlu0 %v1086, 120
        %v1209 = vpop.permute.xlu0 %1208
        %1210 = vrot.lane.b32.xlu0 %v1089, 120
        %v1211 = vpop.permute.xlu0 %1210
        %1214 = vrot.lane.b32.xlu0 %v1086, 112
        %v1215 = vpop.permute.xlu0 %1214
        %1216 = vrot.lane.b32.xlu0 %v1089, 112
        %v1217 = vpop.permute.xlu0 %1216
        %1220 = vrot.lane.b32.xlu0 %v1086, 104
        %v1221 = vpop.permute.xlu0 %1220
        %1222 = vrot.lane.b32.xlu0 %v1089, 104
        %v1223 = vpop.permute.xlu0 %1222
        %v1226 = vcombine.low %v1086, %v1215
        %v1227 = vcombine.high %v1086, %v1215
        %v1229 = vunpack.c.l.s4 1983009808
        %v1230 = vunpack.c.0.s8 %v1229
        %v1231 = vlaneseq
        %v1232 = vshrl.u32 %v1231, 7
        %v1233 = vsub.s32 %v1230, %v1232
        %v1234 = vrot.slane %v1226, %v1233
        %v1236 = vunpack.c.l.s4 1983009808
        %v1237 = vunpack.c.0.s8 %v1236
        %v1238 = vlaneseq
        %v1239 = vshrl.u32 %v1238, 7
        %v1240 = vsub.s32 %v1237, %v1239
        %v1241 = vrot.slane %v1227, %v1240
        %v1242 = vcombine.low %v1209, %v1221
        %v1243 = vcombine.high %v1209, %v1221
        %v1245 = vunpack.c.l.s4 1983009808
        %v1246 = vunpack.c.0.s8 %v1245
        %v1247 = vlaneseq
        %v1248 = vshrl.u32 %v1247, 7
        %v1249 = vsub.s32 %v1246, %v1248
        %v1250 = vrot.slane %v1242, %v1249
        %v1252 = vunpack.c.l.s4 1983009808
        %v1253 = vunpack.c.0.s8 %v1252
        %v1254 = vlaneseq
        %v1255 = vshrl.u32 %v1254, 7
        %v1256 = vsub.s32 %v1253, %v1255
        %v1257 = vrot.slane %v1243, %v1256
        %v1258 = vcombine.low %v1234, %v1250
        %v1259 = vcombine.high %v1234, %v1250
        %v1261 = vunpack.c.l.s4 1934713408
        %v1262 = vunpack.c.0.s8 %v1261
        %v1263 = vlaneseq
        %v1264 = vshrl.u32 %v1263, 7
        %v1265 = vsub.s32 %v1262, %v1264
        %v1266 = vrot.slane %v1258, %v1265
        %v1268 = vunpack.c.l.s4 1934713408
        %v1269 = vunpack.c.0.s8 %v1268
        %v1270 = vlaneseq
        %v1271 = vshrl.u32 %v1270, 7
        %v1272 = vsub.s32 %v1269, %v1271
        %v1273 = vrot.slane %v1259, %v1272
        %v1274 = vcombine.low %v1241, %v1257
        %v1275 = vcombine.high %v1241, %v1257
        %v1277 = vunpack.c.l.s4 1934713408
        %v1278 = vunpack.c.0.s8 %v1277
        %v1279 = vlaneseq
        %v1280 = vshrl.u32 %v1279, 7
        %v1281 = vsub.s32 %v1278, %v1280
        %v1282 = vrot.slane %v1274, %v1281
        %v1284 = vunpack.c.l.s4 1934713408
        %v1285 = vunpack.c.0.s8 %v1284
        %v1286 = vlaneseq
        %v1287 = vshrl.u32 %v1286, 7
        %v1288 = vsub.s32 %v1285, %v1287
        %v1289 = vrot.slane %v1275, %v1288
        %v1290 = vcombine.high %v1266, 0.0
        %v1291 = vcombine.high %v1273, 0.0
        %v1292 = vcombine.high %v1282, 0.0
        %v1293 = vcombine.high %v1289, 0.0
        %v1294 = vcombine.low %v1089, %v1217
        %v1295 = vcombine.high %v1089, %v1217
        %v1297 = vunpack.c.l.s4 1983009808
        %v1298 = vunpack.c.0.s8 %v1297
        %v1299 = vlaneseq
        %v1300 = vshrl.u32 %v1299, 7
        %v1301 = vsub.s32 %v1298, %v1300
        %v1302 = vrot.slane %v1294, %v1301
        %v1304 = vunpack.c.l.s4 1983009808
        %v1305 = vunpack.c.0.s8 %v1304
        %v1306 = vlaneseq
        %v1307 = vshrl.u32 %v1306, 7
        %v1308 = vsub.s32 %v1305, %v1307
        %v1309 = vrot.slane %v1295, %v1308
        %v1310 = vcombine.low %v1211, %v1223
        %v1311 = vcombine.high %v1211, %v1223
        %v1313 = vunpack.c.l.s4 1983009808
        %v1314 = vunpack.c.0.s8 %v1313
        %v1315 = vlaneseq
        %v1316 = vshrl.u32 %v1315, 7
        %v1317 = vsub.s32 %v1314, %v1316
        %v1318 = vrot.slane %v1310, %v1317
        %v1320 = vunpack.c.l.s4 1983009808
        %v1321 = vunpack.c.0.s8 %v1320
        %v1322 = vlaneseq
        %v1323 = vshrl.u32 %v1322, 7
        %v1324 = vsub.s32 %v1321, %v1323
        %v1325 = vrot.slane %v1311, %v1324
        %v1326 = vcombine.low %v1302, %v1318
        %v1327 = vcombine.high %v1302, %v1318
        %v1329 = vunpack.c.l.s4 1934713408
        %v1330 = vunpack.c.0.s8 %v1329
        %v1331 = vlaneseq
        %v1332 = vshrl.u32 %v1331, 7
        %v1333 = vsub.s32 %v1330, %v1332
        %v1334 = vrot.slane %v1326, %v1333
        %v1336 = vunpack.c.l.s4 1934713408
        %v1337 = vunpack.c.0.s8 %v1336
        %v1338 = vlaneseq
        %v1339 = vshrl.u32 %v1338, 7
        %v1340 = vsub.s32 %v1337, %v1339
        %v1341 = vrot.slane %v1327, %v1340
        %v1342 = vcombine.low %v1309, %v1325
        %v1343 = vcombine.high %v1309, %v1325
        %v1345 = vunpack.c.l.s4 1934713408
        %v1346 = vunpack.c.0.s8 %v1345
        %v1347 = vlaneseq
        %v1348 = vshrl.u32 %v1347, 7
        %v1349 = vsub.s32 %v1346, %v1348
        %v1350 = vrot.slane %v1342, %v1349
        %v1352 = vunpack.c.l.s4 1934713408
        %v1353 = vunpack.c.0.s8 %v1352
        %v1354 = vlaneseq
        %v1355 = vshrl.u32 %v1354, 7
        %v1356 = vsub.s32 %v1353, %v1355
        %v1357 = vrot.slane %v1343, %v1356
        %v1358 = vcombine.high %v1334, 0.0
        %v1359 = vcombine.high %v1341, 0.0
        %v1360 = vcombine.high %v1350, 0.0
        %v1361 = vcombine.high %v1357, 0.0
        %v1362 = vpack.c.bf16 %v1266, %v1266
        %v1363 = vpack.c.bf16 %v1290, %v1290
        %v1364 = vpack.c.bf16 %v1273, %v1273
        %v1365 = vpack.c.bf16 %v1291, %v1291
        %v1366 = vpack.c.bf16 %v1282, %v1282
        %v1367 = vpack.c.bf16 %v1292, %v1292
        %v1368 = vpack.c.bf16 %v1289, %v1289
        %v1369 = vpack.c.bf16 %v1293, %v1293
        %v1370 = vpack.c.bf16 %v1334, %v1334
        %v1371 = vpack.c.bf16 %v1358, %v1358
        %v1372 = vpack.c.bf16 %v1341, %v1341
        %v1373 = vpack.c.bf16 %v1359, %v1359
        %v1374 = vpack.c.bf16 %v1350, %v1350
        %v1375 = vpack.c.bf16 %v1360, %v1360
        %v1376 = vpack.c.bf16 %v1357, %v1357
        %v1377 = vpack.c.bf16 %v1361, %v1361
        %1380 = vrot.lane.b32.xlu0 %v1143, 120
        %v1381 = vpop.permute.xlu0 %1380
        %1382 = vrot.lane.b32.xlu0 %v1146, 120
        %v1383 = vpop.permute.xlu0 %1382
        %1386 = vrot.lane.b32.xlu0 %v1143, 112
        %v1387 = vpop.permute.xlu0 %1386
        %1388 = vrot.lane.b32.xlu0 %v1146, 112
        %v1389 = vpop.permute.xlu0 %1388
        %1392 = vrot.lane.b32.xlu0 %v1143, 104
        %v1393 = vpop.permute.xlu0 %1392
        %1394 = vrot.lane.b32.xlu0 %v1146, 104
        %v1395 = vpop.permute.xlu0 %1394
        %v1398 = vcombine.low %v1143, %v1387
        %v1399 = vcombine.high %v1143, %v1387
        %v1401 = vunpack.c.l.s4 1983009808
        %v1402 = vunpack.c.0.s8 %v1401
        %v1403 = vlaneseq
        %v1404 = vshrl.u32 %v1403, 7
        %v1405 = vsub.s32 %v1402, %v1404
        %v1406 = vrot.slane %v1398, %v1405
        %v1408 = vunpack.c.l.s4 1983009808
        %v1409 = vunpack.c.0.s8 %v1408
        %v1410 = vlaneseq
        %v1411 = vshrl.u32 %v1410, 7
        %v1412 = vsub.s32 %v1409, %v1411
        %v1413 = vrot.slane %v1399, %v1412
        %v1414 = vcombine.low %v1381, %v1393
        %v1415 = vcombine.high %v1381, %v1393
        %v1417 = vunpack.c.l.s4 1983009808
        %v1418 = vunpack.c.0.s8 %v1417
        %v1419 = vlaneseq
        %v1420 = vshrl.u32 %v1419, 7
        %v1421 = vsub.s32 %v1418, %v1420
        %v1422 = vrot.slane %v1414, %v1421
        %v1424 = vunpack.c.l.s4 1983009808
        %v1425 = vunpack.c.0.s8 %v1424
        %v1426 = vlaneseq
        %v1427 = vshrl.u32 %v1426, 7
        %v1428 = vsub.s32 %v1425, %v1427
        %v1429 = vrot.slane %v1415, %v1428
        %v1430 = vcombine.low %v1406, %v1422
        %v1431 = vcombine.high %v1406, %v1422
        %v1433 = vunpack.c.l.s4 1934713408
        %v1434 = vunpack.c.0.s8 %v1433
        %v1435 = vlaneseq
        %v1436 = vshrl.u32 %v1435, 7
        %v1437 = vsub.s32 %v1434, %v1436
        %v1438 = vrot.slane %v1430, %v1437
        %v1440 = vunpack.c.l.s4 1934713408
        %v1441 = vunpack.c.0.s8 %v1440
        %v1442 = vlaneseq
        %v1443 = vshrl.u32 %v1442, 7
        %v1444 = vsub.s32 %v1441, %v1443
        %v1445 = vrot.slane %v1431, %v1444
        %v1446 = vcombine.low %v1413, %v1429
        %v1447 = vcombine.high %v1413, %v1429
        %v1449 = vunpack.c.l.s4 1934713408
        %v1450 = vunpack.c.0.s8 %v1449
        %v1451 = vlaneseq
        %v1452 = vshrl.u32 %v1451, 7
        %v1453 = vsub.s32 %v1450, %v1452
        %v1454 = vrot.slane %v1446, %v1453
        %v1456 = vunpack.c.l.s4 1934713408
        %v1457 = vunpack.c.0.s8 %v1456
        %v1458 = vlaneseq
        %v1459 = vshrl.u32 %v1458, 7
        %v1460 = vsub.s32 %v1457, %v1459
        %v1461 = vrot.slane %v1447, %v1460
        %v1462 = vcombine.high %v1438, 0.0
        %v1463 = vcombine.high %v1445, 0.0
        %v1464 = vcombine.high %v1454, 0.0
        %v1465 = vcombine.high %v1461, 0.0
        %v1466 = vcombine.low %v1146, %v1389
        %v1467 = vcombine.high %v1146, %v1389
        %v1469 = vunpack.c.l.s4 1983009808
        %v1470 = vunpack.c.0.s8 %v1469
        %v1471 = vlaneseq
        %v1472 = vshrl.u32 %v1471, 7
        %v1473 = vsub.s32 %v1470, %v1472
        %v1474 = vrot.slane %v1466, %v1473
        %v1476 = vunpack.c.l.s4 1983009808
        %v1477 = vunpack.c.0.s8 %v1476
        %v1478 = vlaneseq
        %v1479 = vshrl.u32 %v1478, 7
        %v1480 = vsub.s32 %v1477, %v1479
        %v1481 = vrot.slane %v1467, %v1480
        %v1482 = vcombine.low %v1383, %v1395
        %v1483 = vcombine.high %v1383, %v1395
        %v1485 = vunpack.c.l.s4 1983009808
        %v1486 = vunpack.c.0.s8 %v1485
        %v1487 = vlaneseq
        %v1488 = vshrl.u32 %v1487, 7
        %v1489 = vsub.s32 %v1486, %v1488
        %v1490 = vrot.slane %v1482, %v1489
        %v1492 = vunpack.c.l.s4 1983009808
        %v1493 = vunpack.c.0.s8 %v1492
        %v1494 = vlaneseq
        %v1495 = vshrl.u32 %v1494, 7
        %v1496 = vsub.s32 %v1493, %v1495
        %v1497 = vrot.slane %v1483, %v1496
        %v1498 = vcombine.low %v1474, %v1490
        %v1499 = vcombine.high %v1474, %v1490
        %v1501 = vunpack.c.l.s4 1934713408
        %v1502 = vunpack.c.0.s8 %v1501
        %v1503 = vlaneseq
        %v1504 = vshrl.u32 %v1503, 7
        %v1505 = vsub.s32 %v1502, %v1504
        %v1506 = vrot.slane %v1498, %v1505
        %v1508 = vunpack.c.l.s4 1934713408
        %v1509 = vunpack.c.0.s8 %v1508
        %v1510 = vlaneseq
        %v1511 = vshrl.u32 %v1510, 7
        %v1512 = vsub.s32 %v1509, %v1511
        %v1513 = vrot.slane %v1499, %v1512
        %v1514 = vcombine.low %v1481, %v1497
        %v1515 = vcombine.high %v1481, %v1497
        %v1517 = vunpack.c.l.s4 1934713408
        %v1518 = vunpack.c.0.s8 %v1517
        %v1519 = vlaneseq
        %v1520 = vshrl.u32 %v1519, 7
        %v1521 = vsub.s32 %v1518, %v1520
        %v1522 = vrot.slane %v1514, %v1521
        %v1524 = vunpack.c.l.s4 1934713408
        %v1525 = vunpack.c.0.s8 %v1524
        %v1526 = vlaneseq
        %v1527 = vshrl.u32 %v1526, 7
        %v1528 = vsub.s32 %v1525, %v1527
        %v1529 = vrot.slane %v1515, %v1528
        %v1530 = vcombine.high %v1506, 0.0
        %v1531 = vcombine.high %v1513, 0.0
        %v1532 = vcombine.high %v1522, 0.0
        %v1533 = vcombine.high %v1529, 0.0
        %v1534 = vpack.c.bf16 %v1438, %v1438
        %v1535 = vpack.c.bf16 %v1462, %v1462
        %v1536 = vpack.c.bf16 %v1445, %v1445
        %v1537 = vpack.c.bf16 %v1463, %v1463
        %v1538 = vpack.c.bf16 %v1454, %v1454
        %v1539 = vpack.c.bf16 %v1464, %v1464
        %v1540 = vpack.c.bf16 %v1461, %v1461
        %v1541 = vpack.c.bf16 %v1465, %v1465
        %v1542 = vpack.c.bf16 %v1506, %v1506
        %v1543 = vpack.c.bf16 %v1530, %v1530
        %v1544 = vpack.c.bf16 %v1513, %v1513
        %v1545 = vpack.c.bf16 %v1531, %v1531
        %v1546 = vpack.c.bf16 %v1522, %v1522
        %v1547 = vpack.c.bf16 %v1532, %v1532
        %v1548 = vpack.c.bf16 %v1529, %v1529
        %v1549 = vpack.c.bf16 %v1533, %v1533
        %1552 = vrot.lane.b32.xlu0 %v1200, 120
        %v1553 = vpop.permute.xlu0 %1552
        %1554 = vrot.lane.b32.xlu0 %v1203, 120
        %v1555 = vpop.permute.xlu0 %1554
        %1558 = vrot.lane.b32.xlu0 %v1200, 112
        %v1559 = vpop.permute.xlu0 %1558
        %1560 = vrot.lane.b32.xlu0 %v1203, 112
        %v1561 = vpop.permute.xlu0 %1560
        %1564 = vrot.lane.b32.xlu0 %v1200, 104
        %v1565 = vpop.permute.xlu0 %1564
        %1566 = vrot.lane.b32.xlu0 %v1203, 104
        %v1567 = vpop.permute.xlu0 %1566
        %v1570 = vcombine.low %v1200, %v1559
        %v1571 = vcombine.high %v1200, %v1559
        %v1573 = vunpack.c.l.s4 1983009808
        %v1574 = vunpack.c.0.s8 %v1573
        %v1575 = vlaneseq
        %v1576 = vshrl.u32 %v1575, 7
        %v1577 = vsub.s32 %v1574, %v1576
        %v1578 = vrot.slane %v1570, %v1577
        %v1580 = vunpack.c.l.s4 1983009808
        %v1581 = vunpack.c.0.s8 %v1580
        %v1582 = vlaneseq
        %v1583 = vshrl.u32 %v1582, 7
        %v1584 = vsub.s32 %v1581, %v1583
        %v1585 = vrot.slane %v1571, %v1584
        %v1586 = vcombine.low %v1553, %v1565
        %v1587 = vcombine.high %v1553, %v1565
        %v1589 = vunpack.c.l.s4 1983009808
        %v1590 = vunpack.c.0.s8 %v1589
        %v1591 = vlaneseq
        %v1592 = vshrl.u32 %v1591, 7
        %v1593 = vsub.s32 %v1590, %v1592
        %v1594 = vrot.slane %v1586, %v1593
        %v1596 = vunpack.c.l.s4 1983009808
        %v1597 = vunpack.c.0.s8 %v1596
        %v1598 = vlaneseq
        %v1599 = vshrl.u32 %v1598, 7
        %v1600 = vsub.s32 %v1597, %v1599
        %v1601 = vrot.slane %v1587, %v1600
        %v1602 = vcombine.low %v1578, %v1594
        %v1603 = vcombine.high %v1578, %v1594
        %v1605 = vunpack.c.l.s4 1934713408
        %v1606 = vunpack.c.0.s8 %v1605
        %v1607 = vlaneseq
        %v1608 = vshrl.u32 %v1607, 7
        %v1609 = vsub.s32 %v1606, %v1608
        %v1610 = vrot.slane %v1602, %v1609
        %v1612 = vunpack.c.l.s4 1934713408
        %v1613 = vunpack.c.0.s8 %v1612
        %v1614 = vlaneseq
        %v1615 = vshrl.u32 %v1614, 7
        %v1616 = vsub.s32 %v1613, %v1615
        %v1617 = vrot.slane %v1603, %v1616
        %v1618 = vcombine.low %v1585, %v1601
        %v1619 = vcombine.high %v1585, %v1601
        %v1621 = vunpack.c.l.s4 1934713408
        %v1622 = vunpack.c.0.s8 %v1621
        %v1623 = vlaneseq
        %v1624 = vshrl.u32 %v1623, 7
        %v1625 = vsub.s32 %v1622, %v1624
        %v1626 = vrot.slane %v1618, %v1625
        %v1628 = vunpack.c.l.s4 1934713408
        %v1629 = vunpack.c.0.s8 %v1628
        %v1630 = vlaneseq
        %v1631 = vshrl.u32 %v1630, 7
        %v1632 = vsub.s32 %v1629, %v1631
        %v1633 = vrot.slane %v1619, %v1632
        %v1634 = vcombine.high %v1610, 0.0
        %v1635 = vcombine.high %v1617, 0.0
        %v1636 = vcombine.high %v1626, 0.0
        %v1637 = vcombine.high %v1633, 0.0
        %v1638 = vcombine.low %v1203, %v1561
        %v1639 = vcombine.high %v1203, %v1561
        %v1641 = vunpack.c.l.s4 1983009808
        %v1642 = vunpack.c.0.s8 %v1641
        %v1643 = vlaneseq
        %v1644 = vshrl.u32 %v1643, 7
        %v1645 = vsub.s32 %v1642, %v1644
        %v1646 = vrot.slane %v1638, %v1645
        %v1648 = vunpack.c.l.s4 1983009808
        %v1649 = vunpack.c.0.s8 %v1648
        %v1650 = vlaneseq
        %v1651 = vshrl.u32 %v1650, 7
        %v1652 = vsub.s32 %v1649, %v1651
        %v1653 = vrot.slane %v1639, %v1652
        %v1654 = vcombine.low %v1555, %v1567
        %v1655 = vcombine.high %v1555, %v1567
        %v1657 = vunpack.c.l.s4 1983009808
        %v1658 = vunpack.c.0.s8 %v1657
        %v1659 = vlaneseq
        %v1660 = vshrl.u32 %v1659, 7
        %v1661 = vsub.s32 %v1658, %v1660
        %v1662 = vrot.slane %v1654, %v1661
        %v1664 = vunpack.c.l.s4 1983009808
        %v1665 = vunpack.c.0.s8 %v1664
        %v1666 = vlaneseq
        %v1667 = vshrl.u32 %v1666, 7
        %v1668 = vsub.s32 %v1665, %v1667
        %v1669 = vrot.slane %v1655, %v1668
        %v1670 = vcombine.low %v1646, %v1662
        %v1671 = vcombine.high %v1646, %v1662
        %v1673 = vunpack.c.l.s4 1934713408
        %v1674 = vunpack.c.0.s8 %v1673
        %v1675 = vlaneseq
        %v1676 = vshrl.u32 %v1675, 7
        %v1677 = vsub.s32 %v1674, %v1676
        %v1678 = vrot.slane %v1670, %v1677
        %v1680 = vunpack.c.l.s4 1934713408
        %v1681 = vunpack.c.0.s8 %v1680
        %v1682 = vlaneseq
        %v1683 = vshrl.u32 %v1682, 7
        %v1684 = vsub.s32 %v1681, %v1683
        %v1685 = vrot.slane %v1671, %v1684
        %v1686 = vcombine.low %v1653, %v1669
        %v1687 = vcombine.high %v1653, %v1669
        %v1689 = vunpack.c.l.s4 1934713408
        %v1690 = vunpack.c.0.s8 %v1689
        %v1691 = vlaneseq
        %v1692 = vshrl.u32 %v1691, 7
        %v1693 = vsub.s32 %v1690, %v1692
        %v1694 = vrot.slane %v1686, %v1693
        %v1696 = vunpack.c.l.s4 1934713408
        %v1697 = vunpack.c.0.s8 %v1696
        %v1698 = vlaneseq
        %v1699 = vshrl.u32 %v1698, 7
        %v1700 = vsub.s32 %v1697, %v1699
        %v1701 = vrot.slane %v1687, %v1700
        %v1702 = vcombine.high %v1678, 0.0
        %v1703 = vcombine.high %v1685, 0.0
        %v1704 = vcombine.high %v1694, 0.0
        %v1705 = vcombine.high %v1701, 0.0
        %v1706 = vpack.c.bf16 %v1610, %v1610
        %v1707 = vpack.c.bf16 %v1634, %v1634
        %v1708 = vpack.c.bf16 %v1617, %v1617
        %v1709 = vpack.c.bf16 %v1635, %v1635
        %v1710 = vpack.c.bf16 %v1626, %v1626
        %v1711 = vpack.c.bf16 %v1636, %v1636
        %v1712 = vpack.c.bf16 %v1633, %v1633
        %v1713 = vpack.c.bf16 %v1637, %v1637
        %v1714 = vpack.c.bf16 %v1678, %v1678
        %v1715 = vpack.c.bf16 %v1702, %v1702
        %v1716 = vpack.c.bf16 %v1685, %v1685
        %v1717 = vpack.c.bf16 %v1703, %v1703
        %v1718 = vpack.c.bf16 %v1694, %v1694
        %v1719 = vpack.c.bf16 %v1704, %v1704
        %v1720 = vpack.c.bf16 %v1701, %v1701
        %v1721 = vpack.c.bf16 %v1705, %v1705
        %v1722 = vcombine.low %v1362, %v1366
        %v1724 = vunpack.c.l.s4 1983009808
        %v1725 = vunpack.c.0.s8 %v1724
        %v1726 = vlaneseq
        %v1727 = vshrl.u32 %v1726, 7
        %v1728 = vsub.s32 %v1725, %v1727
        %v1729 = vrot.slane %v1722, %v1728
        %v1730 = vcombine.low %v1364, %v1368
        %v1732 = vunpack.c.l.s4 1983009808
        %v1733 = vunpack.c.0.s8 %v1732
        %v1734 = vlaneseq
        %v1735 = vshrl.u32 %v1734, 7
        %v1736 = vsub.s32 %v1733, %v1735
        %v1737 = vrot.slane %v1730, %v1736
        %v1738 = vcombine.low %v1729, %v1737
        %v1740 = vunpack.c.l.s4 1934713408
        %v1741 = vunpack.c.0.s8 %v1740
        %v1742 = vlaneseq
        %v1743 = vshrl.u32 %v1742, 7
        %v1744 = vsub.s32 %v1741, %v1743
        %v1745 = vrot.slane %v1738, %v1744
        %v1746 = vcombine.high %v1745, 0
        %v1747 = vcombine.low %v1363, %v1367
        %v1749 = vunpack.c.l.s4 1983009808
        %v1750 = vunpack.c.0.s8 %v1749
        %v1751 = vlaneseq
        %v1752 = vshrl.u32 %v1751, 7
        %v1753 = vsub.s32 %v1750, %v1752
        %v1754 = vrot.slane %v1747, %v1753
        %v1755 = vcombine.low %v1365, %v1369
        %v1757 = vunpack.c.l.s4 1983009808
        %v1758 = vunpack.c.0.s8 %v1757
        %v1759 = vlaneseq
        %v1760 = vshrl.u32 %v1759, 7
        %v1761 = vsub.s32 %v1758, %v1760
        %v1762 = vrot.slane %v1755, %v1761
        %v1763 = vcombine.low %v1754, %v1762
        %v1765 = vunpack.c.l.s4 1934713408
        %v1766 = vunpack.c.0.s8 %v1765
        %v1767 = vlaneseq
        %v1768 = vshrl.u32 %v1767, 7
        %v1769 = vsub.s32 %v1766, %v1768
        %v1770 = vrot.slane %v1763, %v1769
        %v1771 = vcombine.high %v1770, 0
        %v1774 = vpack.i.b16 %v1770, %v1745
        %v1775 = vshrl.u32 %v1745, 16
        %v1776 = vshrl.u32 %v1770, 16
        %v1777 = vpack.i.b16 %v1776, %v1775
        %v1780 = vpack.i.b16 %v1771, %v1746
        %v1781 = vshrl.u32 %v1746, 16
        %v1782 = vshrl.u32 %v1771, 16
        %v1783 = vpack.i.b16 %v1782, %v1781
        %v1784 = vcombine.low %v1534, %v1538
        %v1786 = vunpack.c.l.s4 1983009808
        %v1787 = vunpack.c.0.s8 %v1786
        %v1788 = vlaneseq
        %v1789 = vshrl.u32 %v1788, 7
        %v1790 = vsub.s32 %v1787, %v1789
        %v1791 = vrot.slane %v1784, %v1790
        %v1792 = vcombine.low %v1536, %v1540
        %v1794 = vunpack.c.l.s4 1983009808
        %v1795 = vunpack.c.0.s8 %v1794
        %v1796 = vlaneseq
        %v1797 = vshrl.u32 %v1796, 7
        %v1798 = vsub.s32 %v1795, %v1797
        %v1799 = vrot.slane %v1792, %v1798
        %v1800 = vcombine.low %v1791, %v1799
        %v1802 = vunpack.c.l.s4 1934713408
        %v1803 = vunpack.c.0.s8 %v1802
        %v1804 = vlaneseq
        %v1805 = vshrl.u32 %v1804, 7
        %v1806 = vsub.s32 %v1803, %v1805
        %v1807 = vrot.slane %v1800, %v1806
        %v1808 = vcombine.high %v1807, 0
        %v1809 = vcombine.low %v1535, %v1539
        %v1811 = vunpack.c.l.s4 1983009808
        %v1812 = vunpack.c.0.s8 %v1811
        %v1813 = vlaneseq
        %v1814 = vshrl.u32 %v1813, 7
        %v1815 = vsub.s32 %v1812, %v1814
        %v1816 = vrot.slane %v1809, %v1815
        %v1817 = vcombine.low %v1537, %v1541
        %v1819 = vunpack.c.l.s4 1983009808
        %v1820 = vunpack.c.0.s8 %v1819
        %v1821 = vlaneseq
        %v1822 = vshrl.u32 %v1821, 7
        %v1823 = vsub.s32 %v1820, %v1822
        %v1824 = vrot.slane %v1817, %v1823
        %v1825 = vcombine.low %v1816, %v1824
        %v1827 = vunpack.c.l.s4 1934713408
        %v1828 = vunpack.c.0.s8 %v1827
        %v1829 = vlaneseq
        %v1830 = vshrl.u32 %v1829, 7
        %v1831 = vsub.s32 %v1828, %v1830
        %v1832 = vrot.slane %v1825, %v1831
        %v1833 = vcombine.high %v1832, 0
        %v1836 = vpack.i.b16 %v1832, %v1807
        %v1837 = vshrl.u32 %v1807, 16
        %v1838 = vshrl.u32 %v1832, 16
        %v1839 = vpack.i.b16 %v1838, %v1837
        %v1842 = vpack.i.b16 %v1833, %v1808
        %v1843 = vshrl.u32 %v1808, 16
        %v1844 = vshrl.u32 %v1833, 16
        %v1845 = vpack.i.b16 %v1844, %v1843
        %v1846 = vcombine.low %v1706, %v1710
        %v1848 = vunpack.c.l.s4 1983009808
        %v1849 = vunpack.c.0.s8 %v1848
        %v1850 = vlaneseq
        %v1851 = vshrl.u32 %v1850, 7
        %v1852 = vsub.s32 %v1849, %v1851
        %v1853 = vrot.slane %v1846, %v1852
        %v1854 = vcombine.low %v1708, %v1712
        %v1856 = vunpack.c.l.s4 1983009808
        %v1857 = vunpack.c.0.s8 %v1856
        %v1858 = vlaneseq
        %v1859 = vshrl.u32 %v1858, 7
        %v1860 = vsub.s32 %v1857, %v1859
        %v1861 = vrot.slane %v1854, %v1860
        %v1862 = vcombine.low %v1853, %v1861
        %v1864 = vunpack.c.l.s4 1934713408
        %v1865 = vunpack.c.0.s8 %v1864
        %v1866 = vlaneseq
        %v1867 = vshrl.u32 %v1866, 7
        %v1868 = vsub.s32 %v1865, %v1867
        %v1869 = vrot.slane %v1862, %v1868
        %v1870 = vcombine.high %v1869, 0
        %v1871 = vcombine.low %v1707, %v1711
        %v1873 = vunpack.c.l.s4 1983009808
        %v1874 = vunpack.c.0.s8 %v1873
        %v1875 = vlaneseq
        %v1876 = vshrl.u32 %v1875, 7
        %v1877 = vsub.s32 %v1874, %v1876
        %v1878 = vrot.slane %v1871, %v1877
        %v1879 = vcombine.low %v1709, %v1713
        %v1881 = vunpack.c.l.s4 1983009808
        %v1882 = vunpack.c.0.s8 %v1881
        %v1883 = vlaneseq
        %v1884 = vshrl.u32 %v1883, 7
        %v1885 = vsub.s32 %v1882, %v1884
        %v1886 = vrot.slane %v1879, %v1885
        %v1887 = vcombine.low %v1878, %v1886
        %v1889 = vunpack.c.l.s4 1934713408
        %v1890 = vunpack.c.0.s8 %v1889
        %v1891 = vlaneseq
        %v1892 = vshrl.u32 %v1891, 7
        %v1893 = vsub.s32 %v1890, %v1892
        %v1894 = vrot.slane %v1887, %v1893
        %v1895 = vcombine.high %v1894, 0
        %v1898 = vpack.i.b16 %v1894, %v1869
        %v1899 = vshrl.u32 %v1869, 16
        %v1900 = vshrl.u32 %v1894, 16
        %v1901 = vpack.i.b16 %v1900, %v1899
        %v1904 = vpack.i.b16 %v1895, %v1870
        %v1905 = vshrl.u32 %v1870, 16
        %v1906 = vshrl.u32 %v1895, 16
        %v1907 = vpack.i.b16 %v1906, %v1905
        %vm1908 = vcmask 64512
        %v1910 = vsel %vm1908, %v1774, 0
        %v1913 = vsel %vm1908, %v1836, 0
        %1915 = vmatprep.subr.bf16.mxu0 0
        %1916 = vmatpush1.bf16.xpose.msra.mxu0 %v1913
        %1917 = vmatprep.subr.bf16.mxu0 0
        %1918 = vmatpush1.bf16.xpose.msra.mxu0 0
        %1919 = vmatprep.subr.bf16.mxu0 0
        %1920 = vmatpush1.bf16.xpose.msra.mxu0 0
        %1921 = vmatprep.subr.bf16.mxu0 0
        %1922 = vmatpush1.bf16.xpose.msra.mxu0 0
        %1923 = vmatprep.subr.bf16.mxu0 0
        %1924 = vmatpush1.bf16.xpose.msra.mxu0 0
        %1925 = vmatprep.subr.bf16.mxu0 0
        %1926 = vmatpush1.bf16.xpose.msra.mxu0 0
        %1927 = vmatprep.subr.bf16.mxu0 0
        %1928 = vmatpush1.bf16.xpose.msra.mxu0 0
        %1929 = vmatprep.subr.bf16.mxu0 0
        %1930 = vmatpush1.bf16.xpose.msra.mxu0 0
        %1931 = vmatprep.subr.bf16.mxu0 0
        %1932 = vmatpush1.bf16.xpose.msra.mxu0 0
        %1933 = vmatprep.subr.bf16.mxu0 0
        %1934 = vmatpush1.bf16.xpose.msra.mxu0 0
        %1935 = vmatprep.subr.bf16.mxu0 0
        %1936 = vmatpush1.bf16.xpose.msra.mxu0 0
        %1937 = vmatprep.subr.bf16.mxu0 0
        %1938 = vmatpush1.bf16.xpose.msra.mxu0 0
        %1939 = vmatprep.subr.bf16.mxu0 0
        %1940 = vmatpush1.bf16.xpose.msra.mxu0 0
        %1941 = vmatprep.subr.bf16.mxu0 0
        %1942 = vmatpush1.bf16.xpose.msra.mxu0 0
        %1943 = vmatprep.subr.bf16.mxu0 0
        %1944 = vmatpush1.bf16.xpose.msra.mxu0 0
        %1945 = vmatprep.subr.bf16.mxu0 0
        %1946 = vmatpush1.bf16.xpose.msra.mxu0 0
        %1947 = vmatprep.mubr.bf16.mxu0 0
        %1948 = vmatmul.mubr.bf16.gmra.mrb[0].mxu0 %v1910
        %v1949 = vpop.f32.mrb[0].mxu0
        %v1950 = vadd.f32 0.0, %v1949
        %v1951 = vpop.f32.mrb[0].mxu0
        %v1952 = vpop.f32.mrb[0].mxu0
        %v1953 = vpop.f32.mrb[0].mxu0
        %1954 = vdwg.mxu0
        %v1956 = vsel %vm1908, %v1777, 0
        %v1959 = vsel %vm1908, %v1839, 0
        %1961 = vmatprep.subr.bf16.mxu0 0
        %1962 = vmatpush1.bf16.xpose.msra.mxu0 %v1959
        %1963 = vmatprep.subr.bf16.mxu0 0
        %1964 = vmatpush1.bf16.xpose.msra.mxu0 0
        %1965 = vmatprep.subr.bf16.mxu0 0
        %1966 = vmatpush1.bf16.xpose.msra.mxu0 0
        %1967 = vmatprep.subr.bf16.mxu0 0
        %1968 = vmatpush1.bf16.xpose.msra.mxu0 0
        %1969 = vmatprep.subr.bf16.mxu0 0
        %1970 = vmatpush1.bf16.xpose.msra.mxu0 0
        %1971 = vmatprep.subr.bf16.mxu0 0
        %1972 = vmatpush1.bf16.xpose.msra.mxu0 0
        %1973 = vmatprep.subr.bf16.mxu0 0
        %1974 = vmatpush1.bf16.xpose.msra.mxu0 0
        %1975 = vmatprep.subr.bf16.mxu0 0
        %1976 = vmatpush1.bf16.xpose.msra.mxu0 0
        %1977 = vmatprep.subr.bf16.mxu0 0
        %1978 = vmatpush1.bf16.xpose.msra.mxu0 0
        %1979 = vmatprep.subr.bf16.mxu0 0
        %1980 = vmatpush1.bf16.xpose.msra.mxu0 0
        %1981 = vmatprep.subr.bf16.mxu0 0
        %1982 = vmatpush1.bf16.xpose.msra.mxu0 0
        %1983 = vmatprep.subr.bf16.mxu0 0
        %1984 = vmatpush1.bf16.xpose.msra.mxu0 0
        %1985 = vmatprep.subr.bf16.mxu0 0
        %1986 = vmatpush1.bf16.xpose.msra.mxu0 0
        %1987 = vmatprep.subr.bf16.mxu0 0
        %1988 = vmatpush1.bf16.xpose.msra.mxu0 0
        %1989 = vmatprep.subr.bf16.mxu0 0
        %1990 = vmatpush1.bf16.xpose.msra.mxu0 0
        %1991 = vmatprep.subr.bf16.mxu0 0
        %1992 = vmatpush1.bf16.xpose.msra.mxu0 0
        %1993 = vmatprep.mubr.bf16.mxu0 0
        %1994 = vmatmul.mubr.bf16.gmra.mrb[0].mxu0 %v1956
        %v1995 = vpop.f32.mrb[0].mxu0
        %v1996 = vadd.f32 0.0, %v1995
        %v1997 = vpop.f32.mrb[0].mxu0
        %v1998 = vpop.f32.mrb[0].mxu0
        %v1999 = vpop.f32.mrb[0].mxu0
        %2000 = vdwg.mxu0
        %v2002 = vsel %vm1908, %v1780, 0
        %v2005 = vsel %vm1908, %v1842, 0
        %2007 = vmatprep.subr.bf16.mxu0 0
        %2008 = vmatpush1.bf16.xpose.msra.mxu0 %v2005
        %2009 = vmatprep.subr.bf16.mxu0 0
        %2010 = vmatpush1.bf16.xpose.msra.mxu0 0
        %2011 = vmatprep.subr.bf16.mxu0 0
        %2012 = vmatpush1.bf16.xpose.msra.mxu0 0
        %2013 = vmatprep.subr.bf16.mxu0 0
        %2014 = vmatpush1.bf16.xpose.msra.mxu0 0
        %2015 = vmatprep.subr.bf16.mxu0 0
        %2016 = vmatpush1.bf16.xpose.msra.mxu0 0
        %2017 = vmatprep.subr.bf16.mxu0 0
        %2018 = vmatpush1.bf16.xpose.msra.mxu0 0
        %2019 = vmatprep.subr.bf16.mxu0 0
        %2020 = vmatpush1.bf16.xpose.msra.mxu0 0
        %2021 = vmatprep.subr.bf16.mxu0 0
        %2022 = vmatpush1.bf16.xpose.msra.mxu0 0
        %2023 = vmatprep.subr.bf16.mxu0 0
        %2024 = vmatpush1.bf16.xpose.msra.mxu0 0
        %2025 = vmatprep.subr.bf16.mxu0 0
        %2026 = vmatpush1.bf16.xpose.msra.mxu0 0
        %2027 = vmatprep.subr.bf16.mxu0 0
        %2028 = vmatpush1.bf16.xpose.msra.mxu0 0
        %2029 = vmatprep.subr.bf16.mxu0 0
        %2030 = vmatpush1.bf16.xpose.msra.mxu0 0
        %2031 = vmatprep.subr.bf16.mxu0 0
        %2032 = vmatpush1.bf16.xpose.msra.mxu0 0
        %2033 = vmatprep.subr.bf16.mxu0 0
        %2034 = vmatpush1.bf16.xpose.msra.mxu0 0
        %2035 = vmatprep.subr.bf16.mxu0 0
        %2036 = vmatpush1.bf16.xpose.msra.mxu0 0
        %2037 = vmatprep.subr.bf16.mxu0 0
        %2038 = vmatpush1.bf16.xpose.msra.mxu0 0
        %2039 = vmatprep.mubr.bf16.mxu0 0
        %2040 = vmatmul.mubr.bf16.gmra.mrb[0].mxu0 %v2002
        %v2041 = vpop.f32.mrb[0].mxu0
        %v2042 = vadd.f32 0.0, %v2041
        %v2043 = vpop.f32.mrb[0].mxu0
        %v2044 = vpop.f32.mrb[0].mxu0
        %v2045 = vpop.f32.mrb[0].mxu0
        %2046 = vdwg.mxu0
        %v2048 = vsel %vm1908, %v1783, 0
        %v2051 = vsel %vm1908, %v1845, 0
        %2053 = vmatprep.subr.bf16.mxu0 0
        %2054 = vmatpush1.bf16.xpose.msra.mxu0 %v2051
        %2055 = vmatprep.subr.bf16.mxu0 0
        %2056 = vmatpush1.bf16.xpose.msra.mxu0 0
        %2057 = vmatprep.subr.bf16.mxu0 0
        %2058 = vmatpush1.bf16.xpose.msra.mxu0 0
        %2059 = vmatprep.subr.bf16.mxu0 0
        %2060 = vmatpush1.bf16.xpose.msra.mxu0 0
        %2061 = vmatprep.subr.bf16.mxu0 0
        %2062 = vmatpush1.bf16.xpose.msra.mxu0 0
        %2063 = vmatprep.subr.bf16.mxu0 0
        %2064 = vmatpush1.bf16.xpose.msra.mxu0 0
        %2065 = vmatprep.subr.bf16.mxu0 0
        %2066 = vmatpush1.bf16.xpose.msra.mxu0 0
        %2067 = vmatprep.subr.bf16.mxu0 0
        %2068 = vmatpush1.bf16.xpose.msra.mxu0 0
        %2069 = vmatprep.subr.bf16.mxu0 0
        %2070 = vmatpush1.bf16.xpose.msra.mxu0 0
        %2071 = vmatprep.subr.bf16.mxu0 0
        %2072 = vmatpush1.bf16.xpose.msra.mxu0 0
        %2073 = vmatprep.subr.bf16.mxu0 0
        %2074 = vmatpush1.bf16.xpose.msra.mxu0 0
        %2075 = vmatprep.subr.bf16.mxu0 0
        %2076 = vmatpush1.bf16.xpose.msra.mxu0 0
        %2077 = vmatprep.subr.bf16.mxu0 0
        %2078 = vmatpush1.bf16.xpose.msra.mxu0 0
        %2079 = vmatprep.subr.bf16.mxu0 0
        %2080 = vmatpush1.bf16.xpose.msra.mxu0 0
        %2081 = vmatprep.subr.bf16.mxu0 0
        %2082 = vmatpush1.bf16.xpose.msra.mxu0 0
        %2083 = vmatprep.subr.bf16.mxu0 0
        %2084 = vmatpush1.bf16.xpose.msra.mxu0 0
        %2085 = vmatprep.mubr.bf16.mxu0 0
        %2086 = vmatmul.mubr.bf16.gmra.mrb[0].mxu0 %v2048
        %v2087 = vpop.f32.mrb[0].mxu0
        %v2088 = vadd.f32 0.0, %v2087
        %v2089 = vpop.f32.mrb[0].mxu0
        %v2090 = vpop.f32.mrb[0].mxu0
        %v2091 = vpop.f32.mrb[0].mxu0
        %2092 = vdwg.mxu0
        %v2093 = vmul.f32 %v1950, 0.35355338
        %v2094 = vmul.f32 %v1996, 0.35355338
        %v2095 = vmul.f32 %v2042, 0.35355338
        %v2096 = vmul.f32 %v2088, 0.35355338
        %v2097 = vadd.f32 %v2093, %v950
        %v2098 = vadd.f32 %v2094, %v950
        %v2099 = vadd.f32 %v2095, %v950
        %v2100 = vadd.f32 %v2096, %v950
        %v2101 = vsel %vm1908, %v2097, -inf
        %2102 = vmax.xlane.f32.xlu0 %v2101
        %v2103 = vpop.xlane.xlu0 %2102
        %v2104 = vsel %vm1908, %v2098, -inf
        %2105 = vmax.xlane.f32.xlu0 %v2104
        %v2106 = vpop.xlane.xlu0 %2105
        %v2107 = vsel %vm1908, %v2099, -inf
        %2108 = vmax.xlane.f32.xlu0 %v2107
        %v2109 = vpop.xlane.xlu0 %2108
        %v2110 = vsel %vm1908, %v2100, -inf
        %2111 = vmax.xlane.f32.xlu0 %v2110
        %v2112 = vpop.xlane.xlu0 %2111
        %v2113 = vsub.f32 %v2097, %v2103
        %v2114 = vsub.f32 %v2098, %v2106
        %v2115 = vsub.f32 %v2099, %v2109
        %v2116 = vsub.f32 %v2100, %v2112
        %v2117 = vmul.f32 %v2113, 1.442695
        %v2118 = vpow.pop %v2117
        %v2119 = vmul.f32 %v2114, 1.442695
        %v2120 = vpow.pop %v2119
        %v2121 = vmul.f32 %v2115, 1.442695
        %v2122 = vpow.pop %v2121
        %v2123 = vmul.f32 %v2116, 1.442695
        %v2124 = vpow.pop %v2123
        %v2125 = vsel %vm1908, %v2118, 0.0
        %2126 = vadd.xlane.f32.xlu0 %v2125
        %v2127 = vpop.xlane.xlu0 %2126
        %v2128 = vsel %vm1908, %v2120, 0.0
        %2129 = vadd.xlane.f32.xlu0 %v2128
        %v2130 = vpop.xlane.xlu0 %2129
        %v2131 = vsel %vm1908, %v2122, 0.0
        %2132 = vadd.xlane.f32.xlu0 %v2131
        %v2133 = vpop.xlane.xlu0 %2132
        %v2134 = vsel %vm1908, %v2124, 0.0
        %2135 = vadd.xlane.f32.xlu0 %v2134
        %v2136 = vpop.xlane.xlu0 %2135
        %v2137 = vrcp.pop %v2127
        %v2138 = vrcp.pop %v2130
        %v2139 = vrcp.pop %v2133
        %v2140 = vrcp.pop %v2136
        %v2141 = vmul.f32 %v2118, %v2137
        %v2142 = vmul.f32 %v2120, %v2138
        %v2143 = vmul.f32 %v2122, %v2139
        %v2144 = vmul.f32 %v2124, %v2140
        %v2145 = vpack.c.bf16 %v2141, %v2141
        %v2146 = vpack.c.bf16 %v2142, %v2142
        %v2147 = vpack.c.bf16 %v2143, %v2143
        %v2148 = vpack.c.bf16 %v2144, %v2144
        %v2150 = vsel %vm1908, %v2145, 0
        %vm2152 = vcmask 1043456
        %v2154 = vsel %vm2152, %v1898, 0
        %2156 = vmatprep.subr.bf16.mxu0 0
        %2157 = vmatpush1.bf16.msra.mxu0 %v2154
        %2158 = vmatprep.subr.bf16.mxu0 0
        %2159 = vmatpush1.bf16.msra.mxu0 0
        %2160 = vmatprep.subr.bf16.mxu0 0
        %2161 = vmatpush1.bf16.msra.mxu0 0
        %2162 = vmatprep.subr.bf16.mxu0 0
        %2163 = vmatpush1.bf16.msra.mxu0 0
        %2164 = vmatprep.subr.bf16.mxu0 0
        %2165 = vmatpush1.bf16.msra.mxu0 0
        %2166 = vmatprep.subr.bf16.mxu0 0
        %2167 = vmatpush1.bf16.msra.mxu0 0
        %2168 = vmatprep.subr.bf16.mxu0 0
        %2169 = vmatpush1.bf16.msra.mxu0 0
        %2170 = vmatprep.subr.bf16.mxu0 0
        %2171 = vmatpush1.bf16.msra.mxu0 0
        %2172 = vmatprep.subr.bf16.mxu0 0
        %2173 = vmatpush1.bf16.msra.mxu0 0
        %2174 = vmatprep.subr.bf16.mxu0 0
        %2175 = vmatpush1.bf16.msra.mxu0 0
        %2176 = vmatprep.subr.bf16.mxu0 0
        %2177 = vmatpush1.bf16.msra.mxu0 0
        %2178 = vmatprep.subr.bf16.mxu0 0
        %2179 = vmatpush1.bf16.msra.mxu0 0
        %2180 = vmatprep.subr.bf16.mxu0 0
        %2181 = vmatpush1.bf16.msra.mxu0 0
        %2182 = vmatprep.subr.bf16.mxu0 0
        %2183 = vmatpush1.bf16.msra.mxu0 0
        %2184 = vmatprep.subr.bf16.mxu0 0
        %2185 = vmatpush1.bf16.msra.mxu0 0
        %2186 = vmatprep.subr.bf16.mxu0 0
        %2187 = vmatpush1.bf16.msra.mxu0 0
        %2188 = vmatprep.mubr.bf16.mxu0 0
        %2189 = vmatmul.mubr.bf16.gmra.mrb[0].mxu0 %v2150
        %v2190 = vpop.f32.mrb[0].mxu0
        %v2191 = vadd.f32 0.0, %v2190
        %v2192 = vpop.f32.mrb[0].mxu0
        %v2193 = vpop.f32.mrb[0].mxu0
        %v2194 = vpop.f32.mrb[0].mxu0
        %2195 = vdwg.mxu0
        %v2197 = vsel %vm1908, %v2146, 0
        %v2200 = vsel %vm2152, %v1901, 0
        %2202 = vmatprep.subr.bf16.mxu0 0
        %2203 = vmatpush1.bf16.msra.mxu0 %v2200
        %2204 = vmatprep.subr.bf16.mxu0 0
        %2205 = vmatpush1.bf16.msra.mxu0 0
        %2206 = vmatprep.subr.bf16.mxu0 0
        %2207 = vmatpush1.bf16.msra.mxu0 0
        %2208 = vmatprep.subr.bf16.mxu0 0
        %2209 = vmatpush1.bf16.msra.mxu0 0
        %2210 = vmatprep.subr.bf16.mxu0 0
        %2211 = vmatpush1.bf16.msra.mxu0 0
        %2212 = vmatprep.subr.bf16.mxu0 0
        %2213 = vmatpush1.bf16.msra.mxu0 0
        %2214 = vmatprep.subr.bf16.mxu0 0
        %2215 = vmatpush1.bf16.msra.mxu0 0
        %2216 = vmatprep.subr.bf16.mxu0 0
        %2217 = vmatpush1.bf16.msra.mxu0 0
        %2218 = vmatprep.subr.bf16.mxu0 0
        %2219 = vmatpush1.bf16.msra.mxu0 0
        %2220 = vmatprep.subr.bf16.mxu0 0
        %2221 = vmatpush1.bf16.msra.mxu0 0
        %2222 = vmatprep.subr.bf16.mxu0 0
        %2223 = vmatpush1.bf16.msra.mxu0 0
        %2224 = vmatprep.subr.bf16.mxu0 0
        %2225 = vmatpush1.bf16.msra.mxu0 0
        %2226 = vmatprep.subr.bf16.mxu0 0
        %2227 = vmatpush1.bf16.msra.mxu0 0
        %2228 = vmatprep.subr.bf16.mxu0 0
        %2229 = vmatpush1.bf16.msra.mxu0 0
        %2230 = vmatprep.subr.bf16.mxu0 0
        %2231 = vmatpush1.bf16.msra.mxu0 0
        %2232 = vmatprep.subr.bf16.mxu0 0
        %2233 = vmatpush1.bf16.msra.mxu0 0
        %2234 = vmatprep.mubr.bf16.mxu0 0
        %2235 = vmatmul.mubr.bf16.gmra.mrb[0].mxu0 %v2197
        %v2236 = vpop.f32.mrb[0].mxu0
        %v2237 = vadd.f32 0.0, %v2236
        %v2238 = vpop.f32.mrb[0].mxu0
        %v2239 = vpop.f32.mrb[0].mxu0
        %v2240 = vpop.f32.mrb[0].mxu0
        %2241 = vdwg.mxu0
        %v2243 = vsel %vm1908, %v2147, 0
        %v2246 = vsel %vm2152, %v1904, 0
        %2248 = vmatprep.subr.bf16.mxu0 0
        %2249 = vmatpush1.bf16.msra.mxu0 %v2246
        %2250 = vmatprep.subr.bf16.mxu0 0
        %2251 = vmatpush1.bf16.msra.mxu0 0
        %2252 = vmatprep.subr.bf16.mxu0 0
        %2253 = vmatpush1.bf16.msra.mxu0 0
        %2254 = vmatprep.subr.bf16.mxu0 0
        %2255 = vmatpush1.bf16.msra.mxu0 0
        %2256 = vmatprep.subr.bf16.mxu0 0
        %2257 = vmatpush1.bf16.msra.mxu0 0
        %2258 = vmatprep.subr.bf16.mxu0 0
        %2259 = vmatpush1.bf16.msra.mxu0 0
        %2260 = vmatprep.subr.bf16.mxu0 0
        %2261 = vmatpush1.bf16.msra.mxu0 0
        %2262 = vmatprep.subr.bf16.mxu0 0
        %2263 = vmatpush1.bf16.msra.mxu0 0
        %2264 = vmatprep.subr.bf16.mxu0 0
        %2265 = vmatpush1.bf16.msra.mxu0 0
        %2266 = vmatprep.subr.bf16.mxu0 0
        %2267 = vmatpush1.bf16.msra.mxu0 0
        %2268 = vmatprep.subr.bf16.mxu0 0
        %2269 = vmatpush1.bf16.msra.mxu0 0
        %2270 = vmatprep.subr.bf16.mxu0 0
        %2271 = vmatpush1.bf16.msra.mxu0 0
        %2272 = vmatprep.subr.bf16.mxu0 0
        %2273 = vmatpush1.bf16.msra.mxu0 0
        %2274 = vmatprep.subr.bf16.mxu0 0
        %2275 = vmatpush1.bf16.msra.mxu0 0
        %2276 = vmatprep.subr.bf16.mxu0 0
        %2277 = vmatpush1.bf16.msra.mxu0 0
        %2278 = vmatprep.subr.bf16.mxu0 0
        %2279 = vmatpush1.bf16.msra.mxu0 0
        %2280 = vmatprep.mubr.bf16.mxu0 0
        %2281 = vmatmul.mubr.bf16.gmra.mrb[0].mxu0 %v2243
        %v2282 = vpop.f32.mrb[0].mxu0
        %v2283 = vadd.f32 0.0, %v2282
        %v2284 = vpop.f32.mrb[0].mxu0
        %v2285 = vpop.f32.mrb[0].mxu0
        %v2286 = vpop.f32.mrb[0].mxu0
        %2287 = vdwg.mxu0
        %v2289 = vsel %vm1908, %v2148, 0
        %v2292 = vsel %vm2152, %v1907, 0
        %2294 = vmatprep.subr.bf16.mxu0 0
        %2295 = vmatpush1.bf16.msra.mxu0 %v2292
        %2296 = vmatprep.subr.bf16.mxu0 0
        %2297 = vmatpush1.bf16.msra.mxu0 0
        %2298 = vmatprep.subr.bf16.mxu0 0
        %2299 = vmatpush1.bf16.msra.mxu0 0
        %2300 = vmatprep.subr.bf16.mxu0 0
        %2301 = vmatpush1.bf16.msra.mxu0 0
        %2302 = vmatprep.subr.bf16.mxu0 0
        %2303 = vmatpush1.bf16.msra.mxu0 0
        %2304 = vmatprep.subr.bf16.mxu0 0
        %2305 = vmatpush1.bf16.msra.mxu0 0
        %2306 = vmatprep.subr.bf16.mxu0 0
        %2307 = vmatpush1.bf16.msra.mxu0 0
        %2308 = vmatprep.subr.bf16.mxu0 0
        %2309 = vmatpush1.bf16.msra.mxu0 0
        %2310 = vmatprep.subr.bf16.mxu0 0
        %2311 = vmatpush1.bf16.msra.mxu0 0
        %2312 = vmatprep.subr.bf16.mxu0 0
        %2313 = vmatpush1.bf16.msra.mxu0 0
        %2314 = vmatprep.subr.bf16.mxu0 0
        %2315 = vmatpush1.bf16.msra.mxu0 0
        %2316 = vmatprep.subr.bf16.mxu0 0
        %2317 = vmatpush1.bf16.msra.mxu0 0
        %2318 = vmatprep.subr.bf16.mxu0 0
        %2319 = vmatpush1.bf16.msra.mxu0 0
        %2320 = vmatprep.subr.bf16.mxu0 0
        %2321 = vmatpush1.bf16.msra.mxu0 0
        %2322 = vmatprep.subr.bf16.mxu0 0
        %2323 = vmatpush1.bf16.msra.mxu0 0
        %2324 = vmatprep.subr.bf16.mxu0 0
        %2325 = vmatpush1.bf16.msra.mxu0 0
        %2326 = vmatprep.mubr.bf16.mxu0 0
        %2327 = vmatmul.mubr.bf16.gmra.mrb[0].mxu0 %v2289
        %v2328 = vpop.f32.mrb[0].mxu0
        %v2329 = vadd.f32 0.0, %v2328
        %v2330 = vpop.f32.mrb[0].mxu0
        %v2331 = vpop.f32.mrb[0].mxu0
        %v2332 = vpop.f32.mrb[0].mxu0
        %2333 = vdwg.mxu0
        %v2334 = vcombine.low %v2191, %v2283
        %v2335 = vcombine.high %v2191, %v2283
        %v2337 = vunpack.c.l.s4 1983009808
        %v2338 = vunpack.c.0.s8 %v2337
        %v2339 = vlaneseq
        %v2340 = vshrl.u32 %v2339, 7
        %v2341 = vsub.s32 %v2338, %v2340
        %v2342 = vrot.slane %v2334, %v2341
        %v2344 = vunpack.c.l.s4 1983009808
        %v2345 = vunpack.c.0.s8 %v2344
        %v2346 = vlaneseq
        %v2347 = vshrl.u32 %v2346, 7
        %v2348 = vsub.s32 %v2345, %v2347
        %v2349 = vrot.slane %v2335, %v2348
        %v2350 = vcombine.low %v2237, %v2329
        %v2351 = vcombine.high %v2237, %v2329
        %v2353 = vunpack.c.l.s4 1983009808
        %v2354 = vunpack.c.0.s8 %v2353
        %v2355 = vlaneseq
        %v2356 = vshrl.u32 %v2355, 7
        %v2357 = vsub.s32 %v2354, %v2356
        %v2358 = vrot.slane %v2350, %v2357
        %v2360 = vunpack.c.l.s4 1983009808
        %v2361 = vunpack.c.0.s8 %v2360
        %v2362 = vlaneseq
        %v2363 = vshrl.u32 %v2362, 7
        %v2364 = vsub.s32 %v2361, %v2363
        %v2365 = vrot.slane %v2351, %v2364
        %v2366 = vcombine.low %v2342, %v2358
        %v2367 = vcombine.high %v2342, %v2358
        %v2369 = vunpack.c.l.s4 1934713408
        %v2370 = vunpack.c.0.s8 %v2369
        %v2371 = vlaneseq
        %v2372 = vshrl.u32 %v2371, 7
        %v2373 = vsub.s32 %v2370, %v2372
        %v2374 = vrot.slane %v2366, %v2373
        %v2376 = vunpack.c.l.s4 1934713408
        %v2377 = vunpack.c.0.s8 %v2376
        %v2378 = vlaneseq
        %v2379 = vshrl.u32 %v2378, 7
        %v2380 = vsub.s32 %v2377, %v2379
        %v2381 = vrot.slane %v2367, %v2380
        %v2382 = vcombine.low %v2349, %v2365
        %v2383 = vcombine.high %v2349, %v2365
        %v2385 = vunpack.c.l.s4 1934713408
        %v2386 = vunpack.c.0.s8 %v2385
        %v2387 = vlaneseq
        %v2388 = vshrl.u32 %v2387, 7
        %v2389 = vsub.s32 %v2386, %v2388
        %v2390 = vrot.slane %v2382, %v2389
        %v2392 = vunpack.c.l.s4 1934713408
        %v2393 = vunpack.c.0.s8 %v2392
        %v2394 = vlaneseq
        %v2395 = vshrl.u32 %v2394, 7
        %v2396 = vsub.s32 %v2393, %v2395
        %v2397 = vrot.slane %v2383, %v2396
        %v2398 = vcombine.high %v2374, 0.0
        %v2399 = vcombine.high %v2381, 0.0
        %v2400 = vcombine.high %v2390, 0.0
        %v2401 = vcombine.high %v2397, 0.0
        %v2402 = vcombine.low %v2374, %v2381
        %v2404 = vunpack.c.l.s4 1983009808
        %v2405 = vunpack.c.0.s8 %v2404
        %v2406 = vlaneseq
        %v2407 = vshrl.u32 %v2406, 7
        %v2408 = vsub.s32 %v2405, %v2407
        %v2409 = vrot.slane %v2402, %v2408
        %v2410 = vcombine.low %v2398, %v2399
        %v2412 = vunpack.c.l.s4 1983009808
        %v2413 = vunpack.c.0.s8 %v2412
        %v2414 = vlaneseq
        %v2415 = vshrl.u32 %v2414, 7
        %v2416 = vsub.s32 %v2413, %v2415
        %v2417 = vrot.slane %v2410, %v2416
        %v2418 = vcombine.low %v2390, %v2397
        %v2420 = vunpack.c.l.s4 1983009808
        %v2421 = vunpack.c.0.s8 %v2420
        %v2422 = vlaneseq
        %v2423 = vshrl.u32 %v2422, 7
        %v2424 = vsub.s32 %v2421, %v2423
        %v2425 = vrot.slane %v2418, %v2424
        %v2426 = vcombine.low %v2400, %v2401
        %v2428 = vunpack.c.l.s4 1983009808
        %v2429 = vunpack.c.0.s8 %v2428
        %v2430 = vlaneseq
        %v2431 = vshrl.u32 %v2430, 7
        %v2432 = vsub.s32 %v2429, %v2431
        %v2433 = vrot.slane %v2426, %v2432
        %v2434 = vcombine.low %v2409, %v2417
        %v2435 = vcombine.high %v2409, %v2417
        %v2437 = vunpack.c.l.s4 1934713408
        %v2438 = vunpack.c.0.s8 %v2437
        %v2439 = vlaneseq
        %v2440 = vshrl.u32 %v2439, 7
        %v2441 = vsub.s32 %v2438, %v2440
        %v2442 = vrot.slane %v2434, %v2441
        %v2444 = vunpack.c.l.s4 1934713408
        %v2445 = vunpack.c.0.s8 %v2444
        %v2446 = vlaneseq
        %v2447 = vshrl.u32 %v2446, 7
        %v2448 = vsub.s32 %v2445, %v2447
        %v2449 = vrot.slane %v2435, %v2448
        %v2450 = vcombine.low %v2425, %v2433
        %v2451 = vcombine.high %v2425, %v2433
        %v2453 = vunpack.c.l.s4 1934713408
        %v2454 = vunpack.c.0.s8 %v2453
        %v2455 = vlaneseq
        %v2456 = vshrl.u32 %v2455, 7
        %v2457 = vsub.s32 %v2454, %v2456
        %v2458 = vrot.slane %v2450, %v2457
        %v2460 = vunpack.c.l.s4 1934713408
        %v2461 = vunpack.c.0.s8 %v2460
        %v2462 = vlaneseq
        %v2463 = vshrl.u32 %v2462, 7
        %v2464 = vsub.s32 %v2461, %v2463
        %v2465 = vrot.slane %v2451, %v2464
        %v2466 = vcombine.low %v2442, %v2458
        %v2467 = vcombine.high %v2442, %v2458
        %v2468 = vcombine.low %v2449, %v2465
        %v2469 = vcombine.high %v2449, %v2465
        %2471 = vrot.lane.b32.xlu0 %v2467, 8
        %v2472 = vpop.permute.xlu0 %2471
        %2475 = vrot.lane.b32.xlu0 %v2468, 16
        %v2476 = vpop.permute.xlu0 %2475
        %2479 = vrot.lane.b32.xlu0 %v2469, 24
        %v2480 = vpop.permute.xlu0 %2479
        %v2482 = vsel %vm1908, %v2466, %v2472
        %vm2483 = vcmask 130048
        %v2484 = vsel %vm2483, %v2482, %v2476
        %vm2485 = vcmask 195584
        %v2486 = vsel %vm2485, %v2484, %v2480
        %v2487 = vcombine.low %v1370, %v1374
        %v2489 = vunpack.c.l.s4 1983009808
        %v2490 = vunpack.c.0.s8 %v2489
        %v2491 = vlaneseq
        %v2492 = vshrl.u32 %v2491, 7
        %v2493 = vsub.s32 %v2490, %v2492
        %v2494 = vrot.slane %v2487, %v2493
        %v2495 = vcombine.low %v1372, %v1376
        %v2497 = vunpack.c.l.s4 1983009808
        %v2498 = vunpack.c.0.s8 %v2497
        %v2499 = vlaneseq
        %v2500 = vshrl.u32 %v2499, 7
        %v2501 = vsub.s32 %v2498, %v2500
        %v2502 = vrot.slane %v2495, %v2501
        %v2503 = vcombine.low %v2494, %v2502
        %v2505 = vunpack.c.l.s4 1934713408
        %v2506 = vunpack.c.0.s8 %v2505
        %v2507 = vlaneseq
        %v2508 = vshrl.u32 %v2507, 7
        %v2509 = vsub.s32 %v2506, %v2508
        %v2510 = vrot.slane %v2503, %v2509
        %v2511 = vcombine.high %v2510, 0
        %v2512 = vcombine.low %v1371, %v1375
        %v2514 = vunpack.c.l.s4 1983009808
        %v2515 = vunpack.c.0.s8 %v2514
        %v2516 = vlaneseq
        %v2517 = vshrl.u32 %v2516, 7
        %v2518 = vsub.s32 %v2515, %v2517
        %v2519 = vrot.slane %v2512, %v2518
        %v2520 = vcombine.low %v1373, %v1377
        %v2522 = vunpack.c.l.s4 1983009808
        %v2523 = vunpack.c.0.s8 %v2522
        %v2524 = vlaneseq
        %v2525 = vshrl.u32 %v2524, 7
        %v2526 = vsub.s32 %v2523, %v2525
        %v2527 = vrot.slane %v2520, %v2526
        %v2528 = vcombine.low %v2519, %v2527
        %v2530 = vunpack.c.l.s4 1934713408
        %v2531 = vunpack.c.0.s8 %v2530
        %v2532 = vlaneseq
        %v2533 = vshrl.u32 %v2532, 7
        %v2534 = vsub.s32 %v2531, %v2533
        %v2535 = vrot.slane %v2528, %v2534
        %v2536 = vcombine.high %v2535, 0
        %v2539 = vpack.i.b16 %v2535, %v2510
        %v2540 = vshrl.u32 %v2510, 16
        %v2541 = vshrl.u32 %v2535, 16
        %v2542 = vpack.i.b16 %v2541, %v2540
        %v2545 = vpack.i.b16 %v2536, %v2511
        %v2546 = vshrl.u32 %v2511, 16
        %v2547 = vshrl.u32 %v2536, 16
        %v2548 = vpack.i.b16 %v2547, %v2546
        %v2549 = vcombine.low %v1542, %v1546
        %v2551 = vunpack.c.l.s4 1983009808
        %v2552 = vunpack.c.0.s8 %v2551
        %v2553 = vlaneseq
        %v2554 = vshrl.u32 %v2553, 7
        %v2555 = vsub.s32 %v2552, %v2554
        %v2556 = vrot.slane %v2549, %v2555
        %v2557 = vcombine.low %v1544, %v1548
        %v2559 = vunpack.c.l.s4 1983009808
        %v2560 = vunpack.c.0.s8 %v2559
        %v2561 = vlaneseq
        %v2562 = vshrl.u32 %v2561, 7
        %v2563 = vsub.s32 %v2560, %v2562
        %v2564 = vrot.slane %v2557, %v2563
        %v2565 = vcombine.low %v2556, %v2564
        %v2567 = vunpack.c.l.s4 1934713408
        %v2568 = vunpack.c.0.s8 %v2567
        %v2569 = vlaneseq
        %v2570 = vshrl.u32 %v2569, 7
        %v2571 = vsub.s32 %v2568, %v2570
        %v2572 = vrot.slane %v2565, %v2571
        %v2573 = vcombine.high %v2572, 0
        %v2574 = vcombine.low %v1543, %v1547
        %v2576 = vunpack.c.l.s4 1983009808
        %v2577 = vunpack.c.0.s8 %v2576
        %v2578 = vlaneseq
        %v2579 = vshrl.u32 %v2578, 7
        %v2580 = vsub.s32 %v2577, %v2579
        %v2581 = vrot.slane %v2574, %v2580
        %v2582 = vcombine.low %v1545, %v1549
        %v2584 = vunpack.c.l.s4 1983009808
        %v2585 = vunpack.c.0.s8 %v2584
        %v2586 = vlaneseq
        %v2587 = vshrl.u32 %v2586, 7
        %v2588 = vsub.s32 %v2585, %v2587
        %v2589 = vrot.slane %v2582, %v2588
        %v2590 = vcombine.low %v2581, %v2589
        %v2592 = vunpack.c.l.s4 1934713408
        %v2593 = vunpack.c.0.s8 %v2592
        %v2594 = vlaneseq
        %v2595 = vshrl.u32 %v2594, 7
        %v2596 = vsub.s32 %v2593, %v2595
        %v2597 = vrot.slane %v2590, %v2596
        %v2598 = vcombine.high %v2597, 0
        %v2601 = vpack.i.b16 %v2597, %v2572
        %v2602 = vshrl.u32 %v2572, 16
        %v2603 = vshrl.u32 %v2597, 16
        %v2604 = vpack.i.b16 %v2603, %v2602
        %v2607 = vpack.i.b16 %v2598, %v2573
        %v2608 = vshrl.u32 %v2573, 16
        %v2609 = vshrl.u32 %v2598, 16
        %v2610 = vpack.i.b16 %v2609, %v2608
        %v2611 = vcombine.low %v1714, %v1718
        %v2613 = vunpack.c.l.s4 1983009808
        %v2614 = vunpack.c.0.s8 %v2613
        %v2615 = vlaneseq
        %v2616 = vshrl.u32 %v2615, 7
        %v2617 = vsub.s32 %v2614, %v2616
        %v2618 = vrot.slane %v2611, %v2617
        %v2619 = vcombine.low %v1716, %v1720
        %v2621 = vunpack.c.l.s4 1983009808
        %v2622 = vunpack.c.0.s8 %v2621
        %v2623 = vlaneseq
        %v2624 = vshrl.u32 %v2623, 7
        %v2625 = vsub.s32 %v2622, %v2624
        %v2626 = vrot.slane %v2619, %v2625
        %v2627 = vcombine.low %v2618, %v2626
        %v2629 = vunpack.c.l.s4 1934713408
        %v2630 = vunpack.c.0.s8 %v2629
        %v2631 = vlaneseq
        %v2632 = vshrl.u32 %v2631, 7
        %v2633 = vsub.s32 %v2630, %v2632
        %v2634 = vrot.slane %v2627, %v2633
        %v2635 = vcombine.high %v2634, 0
        %v2636 = vcombine.low %v1715, %v1719
        %v2638 = vunpack.c.l.s4 1983009808
        %v2639 = vunpack.c.0.s8 %v2638
        %v2640 = vlaneseq
        %v2641 = vshrl.u32 %v2640, 7
        %v2642 = vsub.s32 %v2639, %v2641
        %v2643 = vrot.slane %v2636, %v2642
        %v2644 = vcombine.low %v1717, %v1721
        %v2646 = vunpack.c.l.s4 1983009808
        %v2647 = vunpack.c.0.s8 %v2646
        %v2648 = vlaneseq
        %v2649 = vshrl.u32 %v2648, 7
        %v2650 = vsub.s32 %v2647, %v2649
        %v2651 = vrot.slane %v2644, %v2650
        %v2652 = vcombine.low %v2643, %v2651
        %v2654 = vunpack.c.l.s4 1934713408
        %v2655 = vunpack.c.0.s8 %v2654
        %v2656 = vlaneseq
        %v2657 = vshrl.u32 %v2656, 7
        %v2658 = vsub.s32 %v2655, %v2657
        %v2659 = vrot.slane %v2652, %v2658
        %v2660 = vcombine.high %v2659, 0
        %v2663 = vpack.i.b16 %v2659, %v2634
        %v2664 = vshrl.u32 %v2634, 16
        %v2665 = vshrl.u32 %v2659, 16
        %v2666 = vpack.i.b16 %v2665, %v2664
        %v2669 = vpack.i.b16 %v2660, %v2635
        %v2670 = vshrl.u32 %v2635, 16
        %v2671 = vshrl.u32 %v2660, 16
        %v2672 = vpack.i.b16 %v2671, %v2670
        %v2674 = vsel %vm1908, %v2539, 0
        %v2677 = vsel %vm1908, %v2601, 0
        %2679 = vmatprep.subr.bf16.mxu0 0
        %2680 = vmatpush1.bf16.xpose.msra.mxu0 %v2677
        %2681 = vmatprep.subr.bf16.mxu0 0
        %2682 = vmatpush1.bf16.xpose.msra.mxu0 0
        %2683 = vmatprep.subr.bf16.mxu0 0
        %2684 = vmatpush1.bf16.xpose.msra.mxu0 0
        %2685 = vmatprep.subr.bf16.mxu0 0
        %2686 = vmatpush1.bf16.xpose.msra.mxu0 0
        %2687 = vmatprep.subr.bf16.mxu0 0
        %2688 = vmatpush1.bf16.xpose.msra.mxu0 0
        %2689 = vmatprep.subr.bf16.mxu0 0
        %2690 = vmatpush1.bf16.xpose.msra.mxu0 0
        %2691 = vmatprep.subr.bf16.mxu0 0
        %2692 = vmatpush1.bf16.xpose.msra.mxu0 0
        %2693 = vmatprep.subr.bf16.mxu0 0
        %2694 = vmatpush1.bf16.xpose.msra.mxu0 0
        %2695 = vmatprep.subr.bf16.mxu0 0
        %2696 = vmatpush1.bf16.xpose.msra.mxu0 0
        %2697 = vmatprep.subr.bf16.mxu0 0
        %2698 = vmatpush1.bf16.xpose.msra.mxu0 0
        %2699 = vmatprep.subr.bf16.mxu0 0
        %2700 = vmatpush1.bf16.xpose.msra.mxu0 0
        %2701 = vmatprep.subr.bf16.mxu0 0
        %2702 = vmatpush1.bf16.xpose.msra.mxu0 0
        %2703 = vmatprep.subr.bf16.mxu0 0
        %2704 = vmatpush1.bf16.xpose.msra.mxu0 0
        %2705 = vmatprep.subr.bf16.mxu0 0
        %2706 = vmatpush1.bf16.xpose.msra.mxu0 0
        %2707 = vmatprep.subr.bf16.mxu0 0
        %2708 = vmatpush1.bf16.xpose.msra.mxu0 0
        %2709 = vmatprep.subr.bf16.mxu0 0
        %2710 = vmatpush1.bf16.xpose.msra.mxu0 0
        %2711 = vmatprep.mubr.bf16.mxu0 0
        %2712 = vmatmul.mubr.bf16.gmra.mrb[0].mxu0 %v2674
        %v2713 = vpop.f32.mrb[0].mxu0
        %v2714 = vadd.f32 0.0, %v2713
        %v2715 = vpop.f32.mrb[0].mxu0
        %v2716 = vpop.f32.mrb[0].mxu0
        %v2717 = vpop.f32.mrb[0].mxu0
        %2718 = vdwg.mxu0
        %v2720 = vsel %vm1908, %v2542, 0
        %v2723 = vsel %vm1908, %v2604, 0
        %2725 = vmatprep.subr.bf16.mxu0 0
        %2726 = vmatpush1.bf16.xpose.msra.mxu0 %v2723
        %2727 = vmatprep.subr.bf16.mxu0 0
        %2728 = vmatpush1.bf16.xpose.msra.mxu0 0
        %2729 = vmatprep.subr.bf16.mxu0 0
        %2730 = vmatpush1.bf16.xpose.msra.mxu0 0
        %2731 = vmatprep.subr.bf16.mxu0 0
        %2732 = vmatpush1.bf16.xpose.msra.mxu0 0
        %2733 = vmatprep.subr.bf16.mxu0 0
        %2734 = vmatpush1.bf16.xpose.msra.mxu0 0
        %2735 = vmatprep.subr.bf16.mxu0 0
        %2736 = vmatpush1.bf16.xpose.msra.mxu0 0
        %2737 = vmatprep.subr.bf16.mxu0 0
        %2738 = vmatpush1.bf16.xpose.msra.mxu0 0
        %2739 = vmatprep.subr.bf16.mxu0 0
        %2740 = vmatpush1.bf16.xpose.msra.mxu0 0
        %2741 = vmatprep.subr.bf16.mxu0 0
        %2742 = vmatpush1.bf16.xpose.msra.mxu0 0
        %2743 = vmatprep.subr.bf16.mxu0 0
        %2744 = vmatpush1.bf16.xpose.msra.mxu0 0
        %2745 = vmatprep.subr.bf16.mxu0 0
        %2746 = vmatpush1.bf16.xpose.msra.mxu0 0
        %2747 = vmatprep.subr.bf16.mxu0 0
        %2748 = vmatpush1.bf16.xpose.msra.mxu0 0
        %2749 = vmatprep.subr.bf16.mxu0 0
        %2750 = vmatpush1.bf16.xpose.msra.mxu0 0
        %2751 = vmatprep.subr.bf16.mxu0 0
        %2752 = vmatpush1.bf16.xpose.msra.mxu0 0
        %2753 = vmatprep.subr.bf16.mxu0 0
        %2754 = vmatpush1.bf16.xpose.msra.mxu0 0
        %2755 = vmatprep.subr.bf16.mxu0 0
        %2756 = vmatpush1.bf16.xpose.msra.mxu0 0
        %2757 = vmatprep.mubr.bf16.mxu0 0
        %2758 = vmatmul.mubr.bf16.gmra.mrb[0].mxu0 %v2720
        %v2759 = vpop.f32.mrb[0].mxu0
        %v2760 = vadd.f32 0.0, %v2759
        %v2761 = vpop.f32.mrb[0].mxu0
        %v2762 = vpop.f32.mrb[0].mxu0
        %v2763 = vpop.f32.mrb[0].mxu0
        %2764 = vdwg.mxu0
        %v2766 = vsel %vm1908, %v2545, 0
        %v2769 = vsel %vm1908, %v2607, 0
        %2771 = vmatprep.subr.bf16.mxu0 0
        %2772 = vmatpush1.bf16.xpose.msra.mxu0 %v2769
        %2773 = vmatprep.subr.bf16.mxu0 0
        %2774 = vmatpush1.bf16.xpose.msra.mxu0 0
        %2775 = vmatprep.subr.bf16.mxu0 0
        %2776 = vmatpush1.bf16.xpose.msra.mxu0 0
        %2777 = vmatprep.subr.bf16.mxu0 0
        %2778 = vmatpush1.bf16.xpose.msra.mxu0 0
        %2779 = vmatprep.subr.bf16.mxu0 0
        %2780 = vmatpush1.bf16.xpose.msra.mxu0 0
        %2781 = vmatprep.subr.bf16.mxu0 0
        %2782 = vmatpush1.bf16.xpose.msra.mxu0 0
        %2783 = vmatprep.subr.bf16.mxu0 0
        %2784 = vmatpush1.bf16.xpose.msra.mxu0 0
        %2785 = vmatprep.subr.bf16.mxu0 0
        %2786 = vmatpush1.bf16.xpose.msra.mxu0 0
        %2787 = vmatprep.subr.bf16.mxu0 0
        %2788 = vmatpush1.bf16.xpose.msra.mxu0 0
        %2789 = vmatprep.subr.bf16.mxu0 0
        %2790 = vmatpush1.bf16.xpose.msra.mxu0 0
        %2791 = vmatprep.subr.bf16.mxu0 0
        %2792 = vmatpush1.bf16.xpose.msra.mxu0 0
        %2793 = vmatprep.subr.bf16.mxu0 0
        %2794 = vmatpush1.bf16.xpose.msra.mxu0 0
        %2795 = vmatprep.subr.bf16.mxu0 0
        %2796 = vmatpush1.bf16.xpose.msra.mxu0 0
        %2797 = vmatprep.subr.bf16.mxu0 0
        %2798 = vmatpush1.bf16.xpose.msra.mxu0 0
        %2799 = vmatprep.subr.bf16.mxu0 0
        %2800 = vmatpush1.bf16.xpose.msra.mxu0 0
        %2801 = vmatprep.subr.bf16.mxu0 0
        %2802 = vmatpush1.bf16.xpose.msra.mxu0 0
        %2803 = vmatprep.mubr.bf16.mxu0 0
        %2804 = vmatmul.mubr.bf16.gmra.mrb[0].mxu0 %v2766
        %v2805 = vpop.f32.mrb[0].mxu0
        %v2806 = vadd.f32 0.0, %v2805
        %v2807 = vpop.f32.mrb[0].mxu0
        %v2808 = vpop.f32.mrb[0].mxu0
        %v2809 = vpop.f32.mrb[0].mxu0
        %2810 = vdwg.mxu0
        %v2812 = vsel %vm1908, %v2548, 0
        %v2815 = vsel %vm1908, %v2610, 0
        %2817 = vmatprep.subr.bf16.mxu0 0
        %2818 = vmatpush1.bf16.xpose.msra.mxu0 %v2815
        %2819 = vmatprep.subr.bf16.mxu0 0
        %2820 = vmatpush1.bf16.xpose.msra.mxu0 0
        %2821 = vmatprep.subr.bf16.mxu0 0
        %2822 = vmatpush1.bf16.xpose.msra.mxu0 0
        %2823 = vmatprep.subr.bf16.mxu0 0
        %2824 = vmatpush1.bf16.xpose.msra.mxu0 0
        %2825 = vmatprep.subr.bf16.mxu0 0
        %2826 = vmatpush1.bf16.xpose.msra.mxu0 0
        %2827 = vmatprep.subr.bf16.mxu0 0
        %2828 = vmatpush1.bf16.xpose.msra.mxu0 0
        %2829 = vmatprep.subr.bf16.mxu0 0
        %2830 = vmatpush1.bf16.xpose.msra.mxu0 0
        %2831 = vmatprep.subr.bf16.mxu0 0
        %2832 = vmatpush1.bf16.xpose.msra.mxu0 0
        %2833 = vmatprep.subr.bf16.mxu0 0
        %2834 = vmatpush1.bf16.xpose.msra.mxu0 0
        %2835 = vmatprep.subr.bf16.mxu0 0
        %2836 = vmatpush1.bf16.xpose.msra.mxu0 0
        %2837 = vmatprep.subr.bf16.mxu0 0
        %2838 = vmatpush1.bf16.xpose.msra.mxu0 0
        %2839 = vmatprep.subr.bf16.mxu0 0
        %2840 = vmatpush1.bf16.xpose.msra.mxu0 0
        %2841 = vmatprep.subr.bf16.mxu0 0
        %2842 = vmatpush1.bf16.xpose.msra.mxu0 0
        %2843 = vmatprep.subr.bf16.mxu0 0
        %2844 = vmatpush1.bf16.xpose.msra.mxu0 0
        %2845 = vmatprep.subr.bf16.mxu0 0
        %2846 = vmatpush1.bf16.xpose.msra.mxu0 0
        %2847 = vmatprep.subr.bf16.mxu0 0
        %2848 = vmatpush1.bf16.xpose.msra.mxu0 0
        %2849 = vmatprep.mubr.bf16.mxu0 0
        %2850 = vmatmul.mubr.bf16.gmra.mrb[0].mxu0 %v2812
        %v2851 = vpop.f32.mrb[0].mxu0
        %v2852 = vadd.f32 0.0, %v2851
        %v2853 = vpop.f32.mrb[0].mxu0
        %v2854 = vpop.f32.mrb[0].mxu0
        %v2855 = vpop.f32.mrb[0].mxu0
        %2856 = vdwg.mxu0
        %v2857 = vmul.f32 %v2714, 0.35355338
        %v2858 = vmul.f32 %v2760, 0.35355338
        %v2859 = vmul.f32 %v2806, 0.35355338
        %v2860 = vmul.f32 %v2852, 0.35355338
        %v2861 = vadd.f32 %v2857, %v951
        %v2862 = vadd.f32 %v2858, %v951
        %v2863 = vadd.f32 %v2859, %v951
        %v2864 = vadd.f32 %v2860, %v951
        %v2865 = vsel %vm1908, %v2861, -inf
        %2866 = vmax.xlane.f32.xlu0 %v2865
        %v2867 = vpop.xlane.xlu0 %2866
        %v2868 = vsel %vm1908, %v2862, -inf
        %2869 = vmax.xlane.f32.xlu0 %v2868
        %v2870 = vpop.xlane.xlu0 %2869
        %v2871 = vsel %vm1908, %v2863, -inf
        %2872 = vmax.xlane.f32.xlu0 %v2871
        %v2873 = vpop.xlane.xlu0 %2872
        %v2874 = vsel %vm1908, %v2864, -inf
        %2875 = vmax.xlane.f32.xlu0 %v2874
        %v2876 = vpop.xlane.xlu0 %2875
        %v2877 = vsub.f32 %v2861, %v2867
        %v2878 = vsub.f32 %v2862, %v2870
        %v2879 = vsub.f32 %v2863, %v2873
        %v2880 = vsub.f32 %v2864, %v2876
        %v2881 = vmul.f32 %v2877, 1.442695
        %v2882 = vpow.pop %v2881
        %v2883 = vmul.f32 %v2878, 1.442695
        %v2884 = vpow.pop %v2883
        %v2885 = vmul.f32 %v2879, 1.442695
        %v2886 = vpow.pop %v2885
        %v2887 = vmul.f32 %v2880, 1.442695
        %v2888 = vpow.pop %v2887
        %v2889 = vsel %vm1908, %v2882, 0.0
        %2890 = vadd.xlane.f32.xlu0 %v2889
        %v2891 = vpop.xlane.xlu0 %2890
        %v2892 = vsel %vm1908, %v2884, 0.0
        %2893 = vadd.xlane.f32.xlu0 %v2892
        %v2894 = vpop.xlane.xlu0 %2893
        %v2895 = vsel %vm1908, %v2886, 0.0
        %2896 = vadd.xlane.f32.xlu0 %v2895
        %v2897 = vpop.xlane.xlu0 %2896
        %v2898 = vsel %vm1908, %v2888, 0.0
        %2899 = vadd.xlane.f32.xlu0 %v2898
        %v2900 = vpop.xlane.xlu0 %2899
        %v2901 = vrcp.pop %v2891
        %v2902 = vrcp.pop %v2894
        %v2903 = vrcp.pop %v2897
        %v2904 = vrcp.pop %v2900
        %v2905 = vmul.f32 %v2882, %v2901
        %v2906 = vmul.f32 %v2884, %v2902
        %v2907 = vmul.f32 %v2886, %v2903
        %v2908 = vmul.f32 %v2888, %v2904
        %v2909 = vpack.c.bf16 %v2905, %v2905
        %v2910 = vpack.c.bf16 %v2906, %v2906
        %v2911 = vpack.c.bf16 %v2907, %v2907
        %v2912 = vpack.c.bf16 %v2908, %v2908
        %v2914 = vsel %vm1908, %v2909, 0
        %v2917 = vsel %vm2152, %v2663, 0
        %2919 = vmatprep.subr.bf16.mxu0 0
        %2920 = vmatpush1.bf16.msra.mxu0 %v2917
        %2921 = vmatprep.subr.bf16.mxu0 0
        %2922 = vmatpush1.bf16.msra.mxu0 0
        %2923 = vmatprep.subr.bf16.mxu0 0
        %2924 = vmatpush1.bf16.msra.mxu0 0
        %2925 = vmatprep.subr.bf16.mxu0 0
        %2926 = vmatpush1.bf16.msra.mxu0 0
        %2927 = vmatprep.subr.bf16.mxu0 0
        %2928 = vmatpush1.bf16.msra.mxu0 0
        %2929 = vmatprep.subr.bf16.mxu0 0
        %2930 = vmatpush1.bf16.msra.mxu0 0
        %2931 = vmatprep.subr.bf16.mxu0 0
        %2932 = vmatpush1.bf16.msra.mxu0 0
        %2933 = vmatprep.subr.bf16.mxu0 0
        %2934 = vmatpush1.bf16.msra.mxu0 0
        %2935 = vmatprep.subr.bf16.mxu0 0
        %2936 = vmatpush1.bf16.msra.mxu0 0
        %2937 = vmatprep.subr.bf16.mxu0 0
        %2938 = vmatpush1.bf16.msra.mxu0 0
        %2939 = vmatprep.subr.bf16.mxu0 0
        %2940 = vmatpush1.bf16.msra.mxu0 0
        %2941 = vmatprep.subr.bf16.mxu0 0
        %2942 = vmatpush1.bf16.msra.mxu0 0
        %2943 = vmatprep.subr.bf16.mxu0 0
        %2944 = vmatpush1.bf16.msra.mxu0 0
        %2945 = vmatprep.subr.bf16.mxu0 0
        %2946 = vmatpush1.bf16.msra.mxu0 0
        %2947 = vmatprep.subr.bf16.mxu0 0
        %2948 = vmatpush1.bf16.msra.mxu0 0
        %2949 = vmatprep.subr.bf16.mxu0 0
        %2950 = vmatpush1.bf16.msra.mxu0 0
        %2951 = vmatprep.mubr.bf16.mxu0 0
        %2952 = vmatmul.mubr.bf16.gmra.mrb[0].mxu0 %v2914
        %v2953 = vpop.f32.mrb[0].mxu0
        %v2954 = vadd.f32 0.0, %v2953
        %v2955 = vpop.f32.mrb[0].mxu0
        %v2956 = vpop.f32.mrb[0].mxu0
        %v2957 = vpop.f32.mrb[0].mxu0
        %2958 = vdwg.mxu0
        %v2960 = vsel %vm1908, %v2910, 0
        %v2963 = vsel %vm2152, %v2666, 0
        %2965 = vmatprep.subr.bf16.mxu0 0
        %2966 = vmatpush1.bf16.msra.mxu0 %v2963
        %2967 = vmatprep.subr.bf16.mxu0 0
        %2968 = vmatpush1.bf16.msra.mxu0 0
        %2969 = vmatprep.subr.bf16.mxu0 0
        %2970 = vmatpush1.bf16.msra.mxu0 0
        %2971 = vmatprep.subr.bf16.mxu0 0
        %2972 = vmatpush1.bf16.msra.mxu0 0
        %2973 = vmatprep.subr.bf16.mxu0 0
        %2974 = vmatpush1.bf16.msra.mxu0 0
        %2975 = vmatprep.subr.bf16.mxu0 0
        %2976 = vmatpush1.bf16.msra.mxu0 0
        %2977 = vmatprep.subr.bf16.mxu0 0
        %2978 = vmatpush1.bf16.msra.mxu0 0
        %2979 = vmatprep.subr.bf16.mxu0 0
        %2980 = vmatpush1.bf16.msra.mxu0 0
        %2981 = vmatprep.subr.bf16.mxu0 0
        %2982 = vmatpush1.bf16.msra.mxu0 0
        %2983 = vmatprep.subr.bf16.mxu0 0
        %2984 = vmatpush1.bf16.msra.mxu0 0
        %2985 = vmatprep.subr.bf16.mxu0 0
        %2986 = vmatpush1.bf16.msra.mxu0 0
        %2987 = vmatprep.subr.bf16.mxu0 0
        %2988 = vmatpush1.bf16.msra.mxu0 0
        %2989 = vmatprep.subr.bf16.mxu0 0
        %2990 = vmatpush1.bf16.msra.mxu0 0
        %2991 = vmatprep.subr.bf16.mxu0 0
        %2992 = vmatpush1.bf16.msra.mxu0 0
        %2993 = vmatprep.subr.bf16.mxu0 0
        %2994 = vmatpush1.bf16.msra.mxu0 0
        %2995 = vmatprep.subr.bf16.mxu0 0
        %2996 = vmatpush1.bf16.msra.mxu0 0
        %2997 = vmatprep.mubr.bf16.mxu0 0
        %2998 = vmatmul.mubr.bf16.gmra.mrb[0].mxu0 %v2960
        %v2999 = vpop.f32.mrb[0].mxu0
        %v3000 = vadd.f32 0.0, %v2999
        %v3001 = vpop.f32.mrb[0].mxu0
        %v3002 = vpop.f32.mrb[0].mxu0
        %v3003 = vpop.f32.mrb[0].mxu0
        %3004 = vdwg.mxu0
        %v3006 = vsel %vm1908, %v2911, 0
        %v3009 = vsel %vm2152, %v2669, 0
        %3011 = vmatprep.subr.bf16.mxu0 0
        %3012 = vmatpush1.bf16.msra.mxu0 %v3009
        %3013 = vmatprep.subr.bf16.mxu0 0
        %3014 = vmatpush1.bf16.msra.mxu0 0
        %3015 = vmatprep.subr.bf16.mxu0 0
        %3016 = vmatpush1.bf16.msra.mxu0 0
        %3017 = vmatprep.subr.bf16.mxu0 0
        %3018 = vmatpush1.bf16.msra.mxu0 0
        %3019 = vmatprep.subr.bf16.mxu0 0
        %3020 = vmatpush1.bf16.msra.mxu0 0
        %3021 = vmatprep.subr.bf16.mxu0 0
        %3022 = vmatpush1.bf16.msra.mxu0 0
        %3023 = vmatprep.subr.bf16.mxu0 0
        %3024 = vmatpush1.bf16.msra.mxu0 0
        %3025 = vmatprep.subr.bf16.mxu0 0
        %3026 = vmatpush1.bf16.msra.mxu0 0
        %3027 = vmatprep.subr.bf16.mxu0 0
        %3028 = vmatpush1.bf16.msra.mxu0 0
        %3029 = vmatprep.subr.bf16.mxu0 0
        %3030 = vmatpush1.bf16.msra.mxu0 0
        %3031 = vmatprep.subr.bf16.mxu0 0
        %3032 = vmatpush1.bf16.msra.mxu0 0
        %3033 = vmatprep.subr.bf16.mxu0 0
        %3034 = vmatpush1.bf16.msra.mxu0 0
        %3035 = vmatprep.subr.bf16.mxu0 0
        %3036 = vmatpush1.bf16.msra.mxu0 0
        %3037 = vmatprep.subr.bf16.mxu0 0
        %3038 = vmatpush1.bf16.msra.mxu0 0
        %3039 = vmatprep.subr.bf16.mxu0 0
        %3040 = vmatpush1.bf16.msra.mxu0 0
        %3041 = vmatprep.subr.bf16.mxu0 0
        %3042 = vmatpush1.bf16.msra.mxu0 0
        %3043 = vmatprep.mubr.bf16.mxu0 0
        %3044 = vmatmul.mubr.bf16.gmra.mrb[0].mxu0 %v3006
        %v3045 = vpop.f32.mrb[0].mxu0
        %v3046 = vadd.f32 0.0, %v3045
        %v3047 = vpop.f32.mrb[0].mxu0
        %v3048 = vpop.f32.mrb[0].mxu0
        %v3049 = vpop.f32.mrb[0].mxu0
        %3050 = vdwg.mxu0
        %v3052 = vsel %vm1908, %v2912, 0
        %v3055 = vsel %vm2152, %v2672, 0
        %3057 = vmatprep.subr.bf16.mxu0 0
        %3058 = vmatpush1.bf16.msra.mxu0 %v3055
        %3059 = vmatprep.subr.bf16.mxu0 0
        %3060 = vmatpush1.bf16.msra.mxu0 0
        %3061 = vmatprep.subr.bf16.mxu0 0
        %3062 = vmatpush1.bf16.msra.mxu0 0
        %3063 = vmatprep.subr.bf16.mxu0 0
        %3064 = vmatpush1.bf16.msra.mxu0 0
        %3065 = vmatprep.subr.bf16.mxu0 0
        %3066 = vmatpush1.bf16.msra.mxu0 0
        %3067 = vmatprep.subr.bf16.mxu0 0
        %3068 = vmatpush1.bf16.msra.mxu0 0
        %3069 = vmatprep.subr.bf16.mxu0 0
        %3070 = vmatpush1.bf16.msra.mxu0 0
        %3071 = vmatprep.subr.bf16.mxu0 0
        %3072 = vmatpush1.bf16.msra.mxu0 0
        %3073 = vmatprep.subr.bf16.mxu0 0
        %3074 = vmatpush1.bf16.msra.mxu0 0
        %3075 = vmatprep.subr.bf16.mxu0 0
        %3076 = vmatpush1.bf16.msra.mxu0 0
        %3077 = vmatprep.subr.bf16.mxu0 0
        %3078 = vmatpush1.bf16.msra.mxu0 0
        %3079 = vmatprep.subr.bf16.mxu0 0
        %3080 = vmatpush1.bf16.msra.mxu0 0
        %3081 = vmatprep.subr.bf16.mxu0 0
        %3082 = vmatpush1.bf16.msra.mxu0 0
        %3083 = vmatprep.subr.bf16.mxu0 0
        %3084 = vmatpush1.bf16.msra.mxu0 0
        %3085 = vmatprep.subr.bf16.mxu0 0
        %3086 = vmatpush1.bf16.msra.mxu0 0
        %3087 = vmatprep.subr.bf16.mxu0 0
        %3088 = vmatpush1.bf16.msra.mxu0 0
        %3089 = vmatprep.mubr.bf16.mxu0 0
        %3090 = vmatmul.mubr.bf16.gmra.mrb[0].mxu0 %v3052
        %v3091 = vpop.f32.mrb[0].mxu0
        %v3092 = vadd.f32 0.0, %v3091
        %v3093 = vpop.f32.mrb[0].mxu0
        %v3094 = vpop.f32.mrb[0].mxu0
        %v3095 = vpop.f32.mrb[0].mxu0
        %3096 = vdwg.mxu0
        %v3097 = vcombine.low %v2954, %v3046
        %v3098 = vcombine.high %v2954, %v3046
        %v3100 = vunpack.c.l.s4 1983009808
        %v3101 = vunpack.c.0.s8 %v3100
        %v3102 = vlaneseq
        %v3103 = vshrl.u32 %v3102, 7
        %v3104 = vsub.s32 %v3101, %v3103
        %v3105 = vrot.slane %v3097, %v3104
        %v3107 = vunpack.c.l.s4 1983009808
        %v3108 = vunpack.c.0.s8 %v3107
        %v3109 = vlaneseq
        %v3110 = vshrl.u32 %v3109, 7
        %v3111 = vsub.s32 %v3108, %v3110
        %v3112 = vrot.slane %v3098, %v3111
        %v3113 = vcombine.low %v3000, %v3092
        %v3114 = vcombine.high %v3000, %v3092
        %v3116 = vunpack.c.l.s4 1983009808
        %v3117 = vunpack.c.0.s8 %v3116
        %v3118 = vlaneseq
        %v3119 = vshrl.u32 %v3118, 7
        %v3120 = vsub.s32 %v3117, %v3119
        %v3121 = vrot.slane %v3113, %v3120
        %v3123 = vunpack.c.l.s4 1983009808
        %v3124 = vunpack.c.0.s8 %v3123
        %v3125 = vlaneseq
        %v3126 = vshrl.u32 %v3125, 7
        %v3127 = vsub.s32 %v3124, %v3126
        %v3128 = vrot.slane %v3114, %v3127
        %v3129 = vcombine.low %v3105, %v3121
        %v3130 = vcombine.high %v3105, %v3121
        %v3132 = vunpack.c.l.s4 1934713408
        %v3133 = vunpack.c.0.s8 %v3132
        %v3134 = vlaneseq
        %v3135 = vshrl.u32 %v3134, 7
        %v3136 = vsub.s32 %v3133, %v3135
        %v3137 = vrot.slane %v3129, %v3136
        %v3139 = vunpack.c.l.s4 1934713408
        %v3140 = vunpack.c.0.s8 %v3139
        %v3141 = vlaneseq
        %v3142 = vshrl.u32 %v3141, 7
        %v3143 = vsub.s32 %v3140, %v3142
        %v3144 = vrot.slane %v3130, %v3143
        %v3145 = vcombine.low %v3112, %v3128
        %v3146 = vcombine.high %v3112, %v3128
        %v3148 = vunpack.c.l.s4 1934713408
        %v3149 = vunpack.c.0.s8 %v3148
        %v3150 = vlaneseq
        %v3151 = vshrl.u32 %v3150, 7
        %v3152 = vsub.s32 %v3149, %v3151
        %v3153 = vrot.slane %v3145, %v3152
        %v3155 = vunpack.c.l.s4 1934713408
        %v3156 = vunpack.c.0.s8 %v3155
        %v3157 = vlaneseq
        %v3158 = vshrl.u32 %v3157, 7
        %v3159 = vsub.s32 %v3156, %v3158
        %v3160 = vrot.slane %v3146, %v3159
        %v3161 = vcombine.high %v3137, 0.0
        %v3162 = vcombine.high %v3144, 0.0
        %v3163 = vcombine.high %v3153, 0.0
        %v3164 = vcombine.high %v3160, 0.0
        %v3165 = vcombine.low %v3137, %v3144
        %v3167 = vunpack.c.l.s4 1983009808
        %v3168 = vunpack.c.0.s8 %v3167
        %v3169 = vlaneseq
        %v3170 = vshrl.u32 %v3169, 7
        %v3171 = vsub.s32 %v3168, %v3170
        %v3172 = vrot.slane %v3165, %v3171
        %v3173 = vcombine.low %v3161, %v3162
        %v3175 = vunpack.c.l.s4 1983009808
        %v3176 = vunpack.c.0.s8 %v3175
        %v3177 = vlaneseq
        %v3178 = vshrl.u32 %v3177, 7
        %v3179 = vsub.s32 %v3176, %v3178
        %v3180 = vrot.slane %v3173, %v3179
        %v3181 = vcombine.low %v3153, %v3160
        %v3183 = vunpack.c.l.s4 1983009808
        %v3184 = vunpack.c.0.s8 %v3183
        %v3185 = vlaneseq
        %v3186 = vshrl.u32 %v3185, 7
        %v3187 = vsub.s32 %v3184, %v3186
        %v3188 = vrot.slane %v3181, %v3187
        %v3189 = vcombine.low %v3163, %v3164
        %v3191 = vunpack.c.l.s4 1983009808
        %v3192 = vunpack.c.0.s8 %v3191
        %v3193 = vlaneseq
        %v3194 = vshrl.u32 %v3193, 7
        %v3195 = vsub.s32 %v3192, %v3194
        %v3196 = vrot.slane %v3189, %v3195
        %v3197 = vcombine.low %v3172, %v3180
        %v3198 = vcombine.high %v3172, %v3180
        %v3200 = vunpack.c.l.s4 1934713408
        %v3201 = vunpack.c.0.s8 %v3200
        %v3202 = vlaneseq
        %v3203 = vshrl.u32 %v3202, 7
        %v3204 = vsub.s32 %v3201, %v3203
        %v3205 = vrot.slane %v3197, %v3204
        %v3207 = vunpack.c.l.s4 1934713408
        %v3208 = vunpack.c.0.s8 %v3207
        %v3209 = vlaneseq
        %v3210 = vshrl.u32 %v3209, 7
        %v3211 = vsub.s32 %v3208, %v3210
        %v3212 = vrot.slane %v3198, %v3211
        %v3213 = vcombine.low %v3188, %v3196
        %v3214 = vcombine.high %v3188, %v3196
        %v3216 = vunpack.c.l.s4 1934713408
        %v3217 = vunpack.c.0.s8 %v3216
        %v3218 = vlaneseq
        %v3219 = vshrl.u32 %v3218, 7
        %v3220 = vsub.s32 %v3217, %v3219
        %v3221 = vrot.slane %v3213, %v3220
        %v3223 = vunpack.c.l.s4 1934713408
        %v3224 = vunpack.c.0.s8 %v3223
        %v3225 = vlaneseq
        %v3226 = vshrl.u32 %v3225, 7
        %v3227 = vsub.s32 %v3224, %v3226
        %v3228 = vrot.slane %v3214, %v3227
        %v3229 = vcombine.low %v3205, %v3221
        %v3230 = vcombine.high %v3205, %v3221
        %v3231 = vcombine.low %v3212, %v3228
        %v3232 = vcombine.high %v3212, %v3228
        %3234 = vrot.lane.b32.xlu0 %v3230, 8
        %v3235 = vpop.permute.xlu0 %3234
        %3238 = vrot.lane.b32.xlu0 %v3231, 16
        %v3239 = vpop.permute.xlu0 %3238
        %3242 = vrot.lane.b32.xlu0 %v3232, 24
        %v3243 = vpop.permute.xlu0 %3242
        %v3245 = vsel %vm1908, %v3229, %v3235
        %v3246 = vsel %vm2483, %v3245, %v3239
        %v3247 = vsel %vm2485, %v3246, %v3243
        %v3248 = vpack.c.bf16 %v3247, %v2486
        %v3249 = vlaneseq
        %v3250 = vshrl.u32 %v3249, 7
        %v3251 = vsub.s32 0, %v3250
        %v3252 = vrot.slane %v1030, %v3251
        %v3257 = vunpack.c.l.b16 %v1023
        %v3258 = vunpack.c.l.b16 %v1024
        %v3259 = vunpack.c.l.b16 %v1025
        %v3260 = vunpack.c.l.b16 %v1026
        %v3261 = vpack.c.b16 %v3258, %v3257
        %v3262 = vpack.c.b16 %v3260, %v3259
        %v3266 = vsel %vm954, %v3248, 0
        %3268 = vmatprep.subr.bf16.mxu0 0
        %3269 = vmatpush1.bf16.msra.mxu0 %v3261
        %3270 = vmatprep.subr.bf16.mxu0 0
        %3271 = vmatpush1.bf16.msra.mxu0 %v3262
        %3272 = vmatprep.subr.bf16.mxu0 0
        %3273 = vmatpush1.bf16.msra.mxu0 0
        %3274 = vmatprep.subr.bf16.mxu0 0
        %3275 = vmatpush1.bf16.msra.mxu0 0
        %3276 = vmatprep.subr.bf16.mxu0 0
        %3277 = vmatpush1.bf16.msra.mxu0 0
        %3278 = vmatprep.subr.bf16.mxu0 0
        %3279 = vmatpush1.bf16.msra.mxu0 0
        %3280 = vmatprep.subr.bf16.mxu0 0
        %3281 = vmatpush1.bf16.msra.mxu0 0
        %3282 = vmatprep.subr.bf16.mxu0 0
        %3283 = vmatpush1.bf16.msra.mxu0 0
        %3284 = vmatprep.subr.bf16.mxu0 0
        %3285 = vmatpush1.bf16.msra.mxu0 0
        %3286 = vmatprep.subr.bf16.mxu0 0
        %3287 = vmatpush1.bf16.msra.mxu0 0
        %3288 = vmatprep.subr.bf16.mxu0 0
        %3289 = vmatpush1.bf16.msra.mxu0 0
        %3290 = vmatprep.subr.bf16.mxu0 0
        %3291 = vmatpush1.bf16.msra.mxu0 0
        %3292 = vmatprep.subr.bf16.mxu0 0
        %3293 = vmatpush1.bf16.msra.mxu0 0
        %3294 = vmatprep.subr.bf16.mxu0 0
        %3295 = vmatpush1.bf16.msra.mxu0 0
        %3296 = vmatprep.subr.bf16.mxu0 0
        %3297 = vmatpush1.bf16.msra.mxu0 0
        %3298 = vmatprep.subr.bf16.mxu0 0
        %3299 = vmatpush1.bf16.msra.mxu0 0
        %3300 = vmatprep.mubr.bf16.mxu0 0
        %3301 = vmatmul.mubr.bf16.gmra.mrb[0].mxu0 %v3266
        %v3302 = vpop.f32.mrb[0].mxu0
        %v3303 = vadd.f32 %v3252, %v3302
        %v3304 = vpop.f32.mrb[0].mxu0
        %v3305 = vpop.f32.mrb[0].mxu0
        %v3306 = vadd.f32 %v3252, %v3305
        %v3307 = vpop.f32.mrb[0].mxu0
        %3308 = vdwg.mxu0
        %v3309 = vadd.f32 %v944, %v3303
        %v3310 = vadd.f32 %v945, %v3306
        %v3311 = vsel %vm954, %v3309, 0.0
        %3312 = vadd.xlane.f32.xlu0 %v3311
        %v3313 = vpop.xlane.xlu0 %3312
        %v3314 = vsel %vm954, %v3310, 0.0
        %3315 = vadd.xlane.f32.xlu0 %v3314
        %v3316 = vpop.xlane.xlu0 %3315
        %v3317 = vmul.f32 %v3313, %v961
        %v3318 = vmul.f32 %v3316, %v961
        %v3319 = vsub.f32 %v3309, %v3317
        %v3320 = vsub.f32 %v3310, %v3318
        %v3321 = vmul.f32 %v3319, %v3319
        %v3322 = vmul.f32 %v3320, %v3320
        %v3323 = vsel %vm954, %v3321, 0.0
        %3324 = vadd.xlane.f32.xlu0 %v3323
        %v3325 = vpop.xlane.xlu0 %3324
        %v3326 = vsel %vm954, %v3322, 0.0
        %3327 = vadd.xlane.f32.xlu0 %v3326
        %v3328 = vpop.xlane.xlu0 %3327
        %v3329 = vmul.f32 %v3325, 0.032258064
        %v3330 = vmul.f32 %v3328, 0.032258064
        %v3331 = vrsqrt.pop %v3329
        %v3332 = vmul.f32 %v3329, %v3331
        %vm3333 = vcmp.eq.f32.partialorder %v3329, inf
        %v3334 = vsel %vm3333, %v3329, %v3332
        %vm3335 = vcmp.eq.f32.partialorder %v3329, 0.0
        %v3336 = vand.u32 %v3329, 2147483648
        %v3337 = vsel %vm3335, %v3336, %v3334
        %v3338 = vrsqrt.pop %v3330
        %v3339 = vmul.f32 %v3330, %v3338
        %vm3340 = vcmp.eq.f32.partialorder %v3330, inf
        %v3341 = vsel %vm3340, %v3330, %v3339
        %vm3342 = vcmp.eq.f32.partialorder %v3330, 0.0
        %v3343 = vand.u32 %v3330, 2147483648
        %v3344 = vsel %vm3342, %v3343, %v3341
        %v3345 = vadd.f32 %v3337, 1e-06
        %v3346 = vadd.f32 %v3344, 1e-06
        %v3347 = vrcp.pop %v3345
        %v3348 = vrcp.pop %v3346
        %v3349 = vmul.f32 %v3319, %v3347
        %v3350 = vmul.f32 %v3320, %v3348
        %v3351 = vlaneseq
        %v3352 = vshrl.u32 %v3351, 7
        %v3353 = vsub.s32 1, %v3352
        %v3354 = vrot.slane %v952, %v3353
        %v3355 = vmul.f32 %v3354, %v3349
        %v3356 = vmul.f32 %v3354, %v3350
        %v3357 = vlaneseq
        %v3358 = vshrl.u32 %v3357, 7
        %v3359 = vsub.s32 1, %v3358
        %v3360 = vrot.slane %v953, %v3359
        %v3361 = vadd.f32 %v3355, %v3360
        %v3362 = vadd.f32 %v3356, %v3360
        %s3363 = scalar_lea.vmem %s761, 64 [#allocation11]
        %v3364 = vld [vmem:[%s3363] sm:$0xf]
        %v3365 = vld [vmem:[%s3363 + $0x4] sm:$0xf]
        %v3366 = vld [vmem:[%s3363 + $0x8] sm:$0xf]
        %v3367 = vld [vmem:[%s3363 + $0xc] sm:$0xf]
        %s3368 = scalar_lea.vmem %s761, 80 [#allocation11]
        %v3369 = vld [vmem:[%s3368] sm:$0xf]
        %v3370 = vld [vmem:[%s3368 + $0x4] sm:$0xf]
        %v3371 = vld [vmem:[%s3368 + $0x8] sm:$0xf]
        %v3372 = vld [vmem:[%s3368 + $0xc] sm:$0xf]
        %s3373 = scalar_lea.vmem %s761, 96 [#allocation11]
        %v3374 = vld [vmem:[%s3373] sm:$0xf]
        %v3375 = vld [vmem:[%s3373 + $0x4] sm:$0xf]
        %v3376 = vld [vmem:[%s3373 + $0x8] sm:$0xf]
        %v3377 = vld [vmem:[%s3373 + $0xc] sm:$0xf]
        %s3378 = scalar_lea.vmem %s761, 112 [#allocation11]
        %v3379 = vld [vmem:[%s3378] sm:$0xf]
        %v3380 = vld [vmem:[%s3378 + $0x4] sm:$0xf]
        %v3381 = vld [vmem:[%s3378 + $0x8] sm:$0xf]
        %v3382 = vld [vmem:[%s3378 + $0xc] sm:$0xf]
        %v3383 = vld [vmem:[%s770 + $0x4] sm:$0x1]
        %v3384 = vld [vmem:[%s770 + $0x5] sm:$0x1]
        %v3385 = vld [vmem:[%s770 + $0x6] sm:$0x1]
        %v3386 = vld [vmem:[%s770 + $0x7] sm:$0x1]
        %v3387 = vpack.c.bf16 %v3362, %v3361
        %v3388 = vpack.c.bf16 %v947, %v946
        %v3389 = vlaneseq
        %v3390 = vshrl.u32 %v3389, 7
        %v3391 = vsub.s32 0, %v3390
        %v3392 = vrot.slane %v3383, %v3391
        %v3397 = vunpack.c.l.b16 %v3364
        %v3398 = vunpack.c.l.b16 %v3365
        %v3399 = vunpack.c.l.b16 %v3366
        %v3400 = vunpack.c.l.b16 %v3367
        %v3401 = vpack.c.b16 %v3398, %v3397
        %v3402 = vpack.c.b16 %v3400, %v3399
        %v3406 = vsel %vm954, %v3387, 0
        %3408 = vmatprep.subr.bf16.mxu0 0
        %3409 = vmatpush1.bf16.msra.mxu0 %v3401
        %3410 = vmatprep.subr.bf16.mxu0 0
        %3411 = vmatpush1.bf16.msra.mxu0 %v3402
        %3412 = vmatprep.subr.bf16.mxu0 0
        %3413 = vmatpush1.bf16.msra.mxu0 0
        %3414 = vmatprep.subr.bf16.mxu0 0
        %3415 = vmatpush1.bf16.msra.mxu0 0
        %3416 = vmatprep.subr.bf16.mxu0 0
        %3417 = vmatpush1.bf16.msra.mxu0 0
        %3418 = vmatprep.subr.bf16.mxu0 0
        %3419 = vmatpush1.bf16.msra.mxu0 0
        %3420 = vmatprep.subr.bf16.mxu0 0
        %3421 = vmatpush1.bf16.msra.mxu0 0
        %3422 = vmatprep.subr.bf16.mxu0 0
        %3423 = vmatpush1.bf16.msra.mxu0 0
        %3424 = vmatprep.subr.bf16.mxu0 0
        %3425 = vmatpush1.bf16.msra.mxu0 0
        %3426 = vmatprep.subr.bf16.mxu0 0
        %3427 = vmatpush1.bf16.msra.mxu0 0
        %3428 = vmatprep.subr.bf16.mxu0 0
        %3429 = vmatpush1.bf16.msra.mxu0 0
        %3430 = vmatprep.subr.bf16.mxu0 0
        %3431 = vmatpush1.bf16.msra.mxu0 0
        %3432 = vmatprep.subr.bf16.mxu0 0
        %3433 = vmatpush1.bf16.msra.mxu0 0
        %3434 = vmatprep.subr.bf16.mxu0 0
        %3435 = vmatpush1.bf16.msra.mxu0 0
        %3436 = vmatprep.subr.bf16.mxu0 0
        %3437 = vmatpush1.bf16.msra.mxu0 0
        %3438 = vmatprep.subr.bf16.mxu0 0
        %3439 = vmatpush1.bf16.msra.mxu0 0
        %3440 = vmatprep.mubr.bf16.mxu0 0
        %3441 = vmatmul.mubr.bf16.gmra.mrb[0].mxu0 %v3406
        %v3442 = vpop.f32.mrb[0].mxu0
        %v3443 = vadd.f32 %v3392, %v3442
        %v3444 = vpop.f32.mrb[0].mxu0
        %v3445 = vpop.f32.mrb[0].mxu0
        %v3446 = vadd.f32 %v3392, %v3445
        %v3447 = vpop.f32.mrb[0].mxu0
        %3448 = vdwg.mxu0
        %v3449 = vlaneseq
        %v3450 = vshrl.u32 %v3449, 7
        %v3451 = vsub.s32 0, %v3450
        %v3452 = vrot.slane %v3384, %v3451
        %v3457 = vunpack.c.l.b16 %v3369
        %v3458 = vunpack.c.l.b16 %v3370
        %v3459 = vunpack.c.l.b16 %v3371
        %v3460 = vunpack.c.l.b16 %v3372
        %v3461 = vpack.c.b16 %v3458, %v3457
        %v3462 = vpack.c.b16 %v3460, %v3459
        %v3466 = vsel %vm954, %v3388, 0
        %3468 = vmatprep.subr.bf16.mxu0 0
        %3469 = vmatpush1.bf16.msra.mxu0 %v3461
        %3470 = vmatprep.subr.bf16.mxu0 0
        %3471 = vmatpush1.bf16.msra.mxu0 %v3462
        %3472 = vmatprep.subr.bf16.mxu0 0
        %3473 = vmatpush1.bf16.msra.mxu0 0
        %3474 = vmatprep.subr.bf16.mxu0 0
        %3475 = vmatpush1.bf16.msra.mxu0 0
        %3476 = vmatprep.subr.bf16.mxu0 0
        %3477 = vmatpush1.bf16.msra.mxu0 0
        %3478 = vmatprep.subr.bf16.mxu0 0
        %3479 = vmatpush1.bf16.msra.mxu0 0
        %3480 = vmatprep.subr.bf16.mxu0 0
        %3481 = vmatpush1.bf16.msra.mxu0 0
        %3482 = vmatprep.subr.bf16.mxu0 0
        %3483 = vmatpush1.bf16.msra.mxu0 0
        %3484 = vmatprep.subr.bf16.mxu0 0
        %3485 = vmatpush1.bf16.msra.mxu0 0
        %3486 = vmatprep.subr.bf16.mxu0 0
        %3487 = vmatpush1.bf16.msra.mxu0 0
        %3488 = vmatprep.subr.bf16.mxu0 0
        %3489 = vmatpush1.bf16.msra.mxu0 0
        %3490 = vmatprep.subr.bf16.mxu0 0
        %3491 = vmatpush1.bf16.msra.mxu0 0
        %3492 = vmatprep.subr.bf16.mxu0 0
        %3493 = vmatpush1.bf16.msra.mxu0 0
        %3494 = vmatprep.subr.bf16.mxu0 0
        %3495 = vmatpush1.bf16.msra.mxu0 0
        %3496 = vmatprep.subr.bf16.mxu0 0
        %3497 = vmatpush1.bf16.msra.mxu0 0
        %3498 = vmatprep.subr.bf16.mxu0 0
        %3499 = vmatpush1.bf16.msra.mxu0 0
        %3500 = vmatprep.mubr.bf16.mxu0 0
        %3501 = vmatmul.mubr.bf16.gmra.mrb[0].mxu0 %v3466
        %v3502 = vpop.f32.mrb[0].mxu0
        %v3503 = vadd.f32 %v3452, %v3502
        %v3504 = vpop.f32.mrb[0].mxu0
        %v3505 = vpop.f32.mrb[0].mxu0
        %v3506 = vadd.f32 %v3452, %v3505
        %v3507 = vpop.f32.mrb[0].mxu0
        %3508 = vdwg.mxu0
        %v3509 = vlaneseq
        %v3510 = vshrl.u32 %v3509, 7
        %v3511 = vsub.s32 0, %v3510
        %v3512 = vrot.slane %v3385, %v3511
        %v3517 = vunpack.c.l.b16 %v3374
        %v3518 = vunpack.c.l.b16 %v3375
        %v3519 = vunpack.c.l.b16 %v3376
        %v3520 = vunpack.c.l.b16 %v3377
        %v3521 = vpack.c.b16 %v3518, %v3517
        %v3522 = vpack.c.b16 %v3520, %v3519
        %3525 = vmatprep.subr.bf16.mxu0 0
        %3526 = vmatpush1.bf16.msra.mxu0 %v3521
        %3527 = vmatprep.subr.bf16.mxu0 0
        %3528 = vmatpush1.bf16.msra.mxu0 %v3522
        %3529 = vmatprep.subr.bf16.mxu0 0
        %3530 = vmatpush1.bf16.msra.mxu0 0
        %3531 = vmatprep.subr.bf16.mxu0 0
        %3532 = vmatpush1.bf16.msra.mxu0 0
        %3533 = vmatprep.subr.bf16.mxu0 0
        %3534 = vmatpush1.bf16.msra.mxu0 0
        %3535 = vmatprep.subr.bf16.mxu0 0
        %3536 = vmatpush1.bf16.msra.mxu0 0
        %3537 = vmatprep.subr.bf16.mxu0 0
        %3538 = vmatpush1.bf16.msra.mxu0 0
        %3539 = vmatprep.subr.bf16.mxu0 0
        %3540 = vmatpush1.bf16.msra.mxu0 0
        %3541 = vmatprep.subr.bf16.mxu0 0
        %3542 = vmatpush1.bf16.msra.mxu0 0
        %3543 = vmatprep.subr.bf16.mxu0 0
        %3544 = vmatpush1.bf16.msra.mxu0 0
        %3545 = vmatprep.subr.bf16.mxu0 0
        %3546 = vmatpush1.bf16.msra.mxu0 0
        %3547 = vmatprep.subr.bf16.mxu0 0
        %3548 = vmatpush1.bf16.msra.mxu0 0
        %3549 = vmatprep.subr.bf16.mxu0 0
        %3550 = vmatpush1.bf16.msra.mxu0 0
        %3551 = vmatprep.subr.bf16.mxu0 0
        %3552 = vmatpush1.bf16.msra.mxu0 0
        %3553 = vmatprep.subr.bf16.mxu0 0
        %3554 = vmatpush1.bf16.msra.mxu0 0
        %3555 = vmatprep.subr.bf16.mxu0 0
        %3556 = vmatpush1.bf16.msra.mxu0 0
        %3557 = vmatprep.mubr.bf16.mxu0 0
        %3558 = vmatmul.mubr.bf16.gmra.mrb[0].mxu0 %v3466
        %v3559 = vpop.f32.mrb[0].mxu0
        %v3560 = vadd.f32 %v3512, %v3559
        %v3561 = vpop.f32.mrb[0].mxu0
        %v3562 = vpop.f32.mrb[0].mxu0
        %v3563 = vadd.f32 %v3512, %v3562
        %v3564 = vpop.f32.mrb[0].mxu0
        %3565 = vdwg.mxu0
        %3568 = vrot.lane.b32.xlu0 %v3443, 120
        %v3569 = vpop.permute.xlu0 %3568
        %3570 = vrot.lane.b32.xlu0 %v3446, 120
        %v3571 = vpop.permute.xlu0 %3570
        %3574 = vrot.lane.b32.xlu0 %v3443, 112
        %v3575 = vpop.permute.xlu0 %3574
        %3576 = vrot.lane.b32.xlu0 %v3446, 112
        %v3577 = vpop.permute.xlu0 %3576
        %3580 = vrot.lane.b32.xlu0 %v3443, 104
        %v3581 = vpop.permute.xlu0 %3580
        %3582 = vrot.lane.b32.xlu0 %v3446, 104
        %v3583 = vpop.permute.xlu0 %3582
        %v3586 = vcombine.low %v3443, %v3575
        %v3587 = vcombine.high %v3443, %v3575
        %v3589 = vunpack.c.l.s4 1983009808
        %v3590 = vunpack.c.0.s8 %v3589
        %v3591 = vlaneseq
        %v3592 = vshrl.u32 %v3591, 7
        %v3593 = vsub.s32 %v3590, %v3592
        %v3594 = vrot.slane %v3586, %v3593
        %v3596 = vunpack.c.l.s4 1983009808
        %v3597 = vunpack.c.0.s8 %v3596
        %v3598 = vlaneseq
        %v3599 = vshrl.u32 %v3598, 7
        %v3600 = vsub.s32 %v3597, %v3599
        %v3601 = vrot.slane %v3587, %v3600
        %v3602 = vcombine.low %v3569, %v3581
        %v3603 = vcombine.high %v3569, %v3581
        %v3605 = vunpack.c.l.s4 1983009808
        %v3606 = vunpack.c.0.s8 %v3605
        %v3607 = vlaneseq
        %v3608 = vshrl.u32 %v3607, 7
        %v3609 = vsub.s32 %v3606, %v3608
        %v3610 = vrot.slane %v3602, %v3609
        %v3612 = vunpack.c.l.s4 1983009808
        %v3613 = vunpack.c.0.s8 %v3612
        %v3614 = vlaneseq
        %v3615 = vshrl.u32 %v3614, 7
        %v3616 = vsub.s32 %v3613, %v3615
        %v3617 = vrot.slane %v3603, %v3616
        %v3618 = vcombine.low %v3594, %v3610
        %v3619 = vcombine.high %v3594, %v3610
        %v3621 = vunpack.c.l.s4 1934713408
        %v3622 = vunpack.c.0.s8 %v3621
        %v3623 = vlaneseq
        %v3624 = vshrl.u32 %v3623, 7
        %v3625 = vsub.s32 %v3622, %v3624
        %v3626 = vrot.slane %v3618, %v3625
        %v3628 = vunpack.c.l.s4 1934713408
        %v3629 = vunpack.c.0.s8 %v3628
        %v3630 = vlaneseq
        %v3631 = vshrl.u32 %v3630, 7
        %v3632 = vsub.s32 %v3629, %v3631
        %v3633 = vrot.slane %v3619, %v3632
        %v3634 = vcombine.low %v3601, %v3617
        %v3635 = vcombine.high %v3601, %v3617
        %v3637 = vunpack.c.l.s4 1934713408
        %v3638 = vunpack.c.0.s8 %v3637
        %v3639 = vlaneseq
        %v3640 = vshrl.u32 %v3639, 7
        %v3641 = vsub.s32 %v3638, %v3640
        %v3642 = vrot.slane %v3634, %v3641
        %v3644 = vunpack.c.l.s4 1934713408
        %v3645 = vunpack.c.0.s8 %v3644
        %v3646 = vlaneseq
        %v3647 = vshrl.u32 %v3646, 7
        %v3648 = vsub.s32 %v3645, %v3647
        %v3649 = vrot.slane %v3635, %v3648
        %v3650 = vcombine.high %v3626, 0.0
        %v3651 = vcombine.high %v3633, 0.0
        %v3652 = vcombine.high %v3642, 0.0
        %v3653 = vcombine.high %v3649, 0.0
        %v3654 = vcombine.low %v3446, %v3577
        %v3655 = vcombine.high %v3446, %v3577
        %v3657 = vunpack.c.l.s4 1983009808
        %v3658 = vunpack.c.0.s8 %v3657
        %v3659 = vlaneseq
        %v3660 = vshrl.u32 %v3659, 7
        %v3661 = vsub.s32 %v3658, %v3660
        %v3662 = vrot.slane %v3654, %v3661
        %v3664 = vunpack.c.l.s4 1983009808
        %v3665 = vunpack.c.0.s8 %v3664
        %v3666 = vlaneseq
        %v3667 = vshrl.u32 %v3666, 7
        %v3668 = vsub.s32 %v3665, %v3667
        %v3669 = vrot.slane %v3655, %v3668
        %v3670 = vcombine.low %v3571, %v3583
        %v3671 = vcombine.high %v3571, %v3583
        %v3673 = vunpack.c.l.s4 1983009808
        %v3674 = vunpack.c.0.s8 %v3673
        %v3675 = vlaneseq
        %v3676 = vshrl.u32 %v3675, 7
        %v3677 = vsub.s32 %v3674, %v3676
        %v3678 = vrot.slane %v3670, %v3677
        %v3680 = vunpack.c.l.s4 1983009808
        %v3681 = vunpack.c.0.s8 %v3680
        %v3682 = vlaneseq
        %v3683 = vshrl.u32 %v3682, 7
        %v3684 = vsub.s32 %v3681, %v3683
        %v3685 = vrot.slane %v3671, %v3684
        %v3686 = vcombine.low %v3662, %v3678
        %v3687 = vcombine.high %v3662, %v3678
        %v3689 = vunpack.c.l.s4 1934713408
        %v3690 = vunpack.c.0.s8 %v3689
        %v3691 = vlaneseq
        %v3692 = vshrl.u32 %v3691, 7
        %v3693 = vsub.s32 %v3690, %v3692
        %v3694 = vrot.slane %v3686, %v3693
        %v3696 = vunpack.c.l.s4 1934713408
        %v3697 = vunpack.c.0.s8 %v3696
        %v3698 = vlaneseq
        %v3699 = vshrl.u32 %v3698, 7
        %v3700 = vsub.s32 %v3697, %v3699
        %v3701 = vrot.slane %v3687, %v3700
        %v3702 = vcombine.low %v3669, %v3685
        %v3703 = vcombine.high %v3669, %v3685
        %v3705 = vunpack.c.l.s4 1934713408
        %v3706 = vunpack.c.0.s8 %v3705
        %v3707 = vlaneseq
        %v3708 = vshrl.u32 %v3707, 7
        %v3709 = vsub.s32 %v3706, %v3708
        %v3710 = vrot.slane %v3702, %v3709
        %v3712 = vunpack.c.l.s4 1934713408
        %v3713 = vunpack.c.0.s8 %v3712
        %v3714 = vlaneseq
        %v3715 = vshrl.u32 %v3714, 7
        %v3716 = vsub.s32 %v3713, %v3715
        %v3717 = vrot.slane %v3703, %v3716
        %v3718 = vcombine.high %v3694, 0.0
        %v3719 = vcombine.high %v3701, 0.0
        %v3720 = vcombine.high %v3710, 0.0
        %v3721 = vcombine.high %v3717, 0.0
        %v3722 = vpack.c.bf16 %v3626, %v3626
        %v3723 = vpack.c.bf16 %v3650, %v3650
        %v3724 = vpack.c.bf16 %v3633, %v3633
        %v3725 = vpack.c.bf16 %v3651, %v3651
        %v3726 = vpack.c.bf16 %v3642, %v3642
        %v3727 = vpack.c.bf16 %v3652, %v3652
        %v3728 = vpack.c.bf16 %v3649, %v3649
        %v3729 = vpack.c.bf16 %v3653, %v3653
        %v3730 = vpack.c.bf16 %v3694, %v3694
        %v3731 = vpack.c.bf16 %v3718, %v3718
        %v3732 = vpack.c.bf16 %v3701, %v3701
        %v3733 = vpack.c.bf16 %v3719, %v3719
        %v3734 = vpack.c.bf16 %v3710, %v3710
        %v3735 = vpack.c.bf16 %v3720, %v3720
        %v3736 = vpack.c.bf16 %v3717, %v3717
        %v3737 = vpack.c.bf16 %v3721, %v3721
        %3740 = vrot.lane.b32.xlu0 %v3503, 120
        %v3741 = vpop.permute.xlu0 %3740
        %3742 = vrot.lane.b32.xlu0 %v3506, 120
        %v3743 = vpop.permute.xlu0 %3742
        %3746 = vrot.lane.b32.xlu0 %v3503, 112
        %v3747 = vpop.permute.xlu0 %3746
        %3748 = vrot.lane.b32.xlu0 %v3506, 112
        %v3749 = vpop.permute.xlu0 %3748
        %3752 = vrot.lane.b32.xlu0 %v3503, 104
        %v3753 = vpop.permute.xlu0 %3752
        %3754 = vrot.lane.b32.xlu0 %v3506, 104
        %v3755 = vpop.permute.xlu0 %3754
        %v3758 = vcombine.low %v3503, %v3747
        %v3759 = vcombine.high %v3503, %v3747
        %v3761 = vunpack.c.l.s4 1983009808
        %v3762 = vunpack.c.0.s8 %v3761
        %v3763 = vlaneseq
        %v3764 = vshrl.u32 %v3763, 7
        %v3765 = vsub.s32 %v3762, %v3764
        %v3766 = vrot.slane %v3758, %v3765
        %v3768 = vunpack.c.l.s4 1983009808
        %v3769 = vunpack.c.0.s8 %v3768
        %v3770 = vlaneseq
        %v3771 = vshrl.u32 %v3770, 7
        %v3772 = vsub.s32 %v3769, %v3771
        %v3773 = vrot.slane %v3759, %v3772
        %v3774 = vcombine.low %v3741, %v3753
        %v3775 = vcombine.high %v3741, %v3753
        %v3777 = vunpack.c.l.s4 1983009808
        %v3778 = vunpack.c.0.s8 %v3777
        %v3779 = vlaneseq
        %v3780 = vshrl.u32 %v3779, 7
        %v3781 = vsub.s32 %v3778, %v3780
        %v3782 = vrot.slane %v3774, %v3781
        %v3784 = vunpack.c.l.s4 1983009808
        %v3785 = vunpack.c.0.s8 %v3784
        %v3786 = vlaneseq
        %v3787 = vshrl.u32 %v3786, 7
        %v3788 = vsub.s32 %v3785, %v3787
        %v3789 = vrot.slane %v3775, %v3788
        %v3790 = vcombine.low %v3766, %v3782
        %v3791 = vcombine.high %v3766, %v3782
        %v3793 = vunpack.c.l.s4 1934713408
        %v3794 = vunpack.c.0.s8 %v3793
        %v3795 = vlaneseq
        %v3796 = vshrl.u32 %v3795, 7
        %v3797 = vsub.s32 %v3794, %v3796
        %v3798 = vrot.slane %v3790, %v3797
        %v3800 = vunpack.c.l.s4 1934713408
        %v3801 = vunpack.c.0.s8 %v3800
        %v3802 = vlaneseq
        %v3803 = vshrl.u32 %v3802, 7
        %v3804 = vsub.s32 %v3801, %v3803
        %v3805 = vrot.slane %v3791, %v3804
        %v3806 = vcombine.low %v3773, %v3789
        %v3807 = vcombine.high %v3773, %v3789
        %v3809 = vunpack.c.l.s4 1934713408
        %v3810 = vunpack.c.0.s8 %v3809
        %v3811 = vlaneseq
        %v3812 = vshrl.u32 %v3811, 7
        %v3813 = vsub.s32 %v3810, %v3812
        %v3814 = vrot.slane %v3806, %v3813
        %v3816 = vunpack.c.l.s4 1934713408
        %v3817 = vunpack.c.0.s8 %v3816
        %v3818 = vlaneseq
        %v3819 = vshrl.u32 %v3818, 7
        %v3820 = vsub.s32 %v3817, %v3819
        %v3821 = vrot.slane %v3807, %v3820
        %v3822 = vcombine.high %v3798, 0.0
        %v3823 = vcombine.high %v3805, 0.0
        %v3824 = vcombine.high %v3814, 0.0
        %v3825 = vcombine.high %v3821, 0.0
        %v3826 = vcombine.low %v3506, %v3749
        %v3827 = vcombine.high %v3506, %v3749
        %v3829 = vunpack.c.l.s4 1983009808
        %v3830 = vunpack.c.0.s8 %v3829
        %v3831 = vlaneseq
        %v3832 = vshrl.u32 %v3831, 7
        %v3833 = vsub.s32 %v3830, %v3832
        %v3834 = vrot.slane %v3826, %v3833
        %v3836 = vunpack.c.l.s4 1983009808
        %v3837 = vunpack.c.0.s8 %v3836
        %v3838 = vlaneseq
        %v3839 = vshrl.u32 %v3838, 7
        %v3840 = vsub.s32 %v3837, %v3839
        %v3841 = vrot.slane %v3827, %v3840
        %v3842 = vcombine.low %v3743, %v3755
        %v3843 = vcombine.high %v3743, %v3755
        %v3845 = vunpack.c.l.s4 1983009808
        %v3846 = vunpack.c.0.s8 %v3845
        %v3847 = vlaneseq
        %v3848 = vshrl.u32 %v3847, 7
        %v3849 = vsub.s32 %v3846, %v3848
        %v3850 = vrot.slane %v3842, %v3849
        %v3852 = vunpack.c.l.s4 1983009808
        %v3853 = vunpack.c.0.s8 %v3852
        %v3854 = vlaneseq
        %v3855 = vshrl.u32 %v3854, 7
        %v3856 = vsub.s32 %v3853, %v3855
        %v3857 = vrot.slane %v3843, %v3856
        %v3858 = vcombine.low %v3834, %v3850
        %v3859 = vcombine.high %v3834, %v3850
        %v3861 = vunpack.c.l.s4 1934713408
        %v3862 = vunpack.c.0.s8 %v3861
        %v3863 = vlaneseq
        %v3864 = vshrl.u32 %v3863, 7
        %v3865 = vsub.s32 %v3862, %v3864
        %v3866 = vrot.slane %v3858, %v3865
        %v3868 = vunpack.c.l.s4 1934713408
        %v3869 = vunpack.c.0.s8 %v3868
        %v3870 = vlaneseq
        %v3871 = vshrl.u32 %v3870, 7
        %v3872 = vsub.s32 %v3869, %v3871
        %v3873 = vrot.slane %v3859, %v3872
        %v3874 = vcombine.low %v3841, %v3857
        %v3875 = vcombine.high %v3841, %v3857
        %v3877 = vunpack.c.l.s4 1934713408
        %v3878 = vunpack.c.0.s8 %v3877
        %v3879 = vlaneseq
        %v3880 = vshrl.u32 %v3879, 7
        %v3881 = vsub.s32 %v3878, %v3880
        %v3882 = vrot.slane %v3874, %v3881
        %v3884 = vunpack.c.l.s4 1934713408
        %v3885 = vunpack.c.0.s8 %v3884
        %v3886 = vlaneseq
        %v3887 = vshrl.u32 %v3886, 7
        %v3888 = vsub.s32 %v3885, %v3887
        %v3889 = vrot.slane %v3875, %v3888
        %v3890 = vcombine.high %v3866, 0.0
        %v3891 = vcombine.high %v3873, 0.0
        %v3892 = vcombine.high %v3882, 0.0
        %v3893 = vcombine.high %v3889, 0.0
        %v3894 = vpack.c.bf16 %v3798, %v3798
        %v3895 = vpack.c.bf16 %v3822, %v3822
        %v3896 = vpack.c.bf16 %v3805, %v3805
        %v3897 = vpack.c.bf16 %v3823, %v3823
        %v3898 = vpack.c.bf16 %v3814, %v3814
        %v3899 = vpack.c.bf16 %v3824, %v3824
        %v3900 = vpack.c.bf16 %v3821, %v3821
        %v3901 = vpack.c.bf16 %v3825, %v3825
        %v3902 = vpack.c.bf16 %v3866, %v3866
        %v3903 = vpack.c.bf16 %v3890, %v3890
        %v3904 = vpack.c.bf16 %v3873, %v3873
        %v3905 = vpack.c.bf16 %v3891, %v3891
        %v3906 = vpack.c.bf16 %v3882, %v3882
        %v3907 = vpack.c.bf16 %v3892, %v3892
        %v3908 = vpack.c.bf16 %v3889, %v3889
        %v3909 = vpack.c.bf16 %v3893, %v3893
        %3912 = vrot.lane.b32.xlu0 %v3560, 120
        %v3913 = vpop.permute.xlu0 %3912
        %3914 = vrot.lane.b32.xlu0 %v3563, 120
        %v3915 = vpop.permute.xlu0 %3914
        %3918 = vrot.lane.b32.xlu0 %v3560, 112
        %v3919 = vpop.permute.xlu0 %3918
        %3920 = vrot.lane.b32.xlu0 %v3563, 112
        %v3921 = vpop.permute.xlu0 %3920
        %3924 = vrot.lane.b32.xlu0 %v3560, 104
        %v3925 = vpop.permute.xlu0 %3924
        %3926 = vrot.lane.b32.xlu0 %v3563, 104
        %v3927 = vpop.permute.xlu0 %3926
        %v3930 = vcombine.low %v3560, %v3919
        %v3931 = vcombine.high %v3560, %v3919
        %v3933 = vunpack.c.l.s4 1983009808
        %v3934 = vunpack.c.0.s8 %v3933
        %v3935 = vlaneseq
        %v3936 = vshrl.u32 %v3935, 7
        %v3937 = vsub.s32 %v3934, %v3936
        %v3938 = vrot.slane %v3930, %v3937
        %v3940 = vunpack.c.l.s4 1983009808
        %v3941 = vunpack.c.0.s8 %v3940
        %v3942 = vlaneseq
        %v3943 = vshrl.u32 %v3942, 7
        %v3944 = vsub.s32 %v3941, %v3943
        %v3945 = vrot.slane %v3931, %v3944
        %v3946 = vcombine.low %v3913, %v3925
        %v3947 = vcombine.high %v3913, %v3925
        %v3949 = vunpack.c.l.s4 1983009808
        %v3950 = vunpack.c.0.s8 %v3949
        %v3951 = vlaneseq
        %v3952 = vshrl.u32 %v3951, 7
        %v3953 = vsub.s32 %v3950, %v3952
        %v3954 = vrot.slane %v3946, %v3953
        %v3956 = vunpack.c.l.s4 1983009808
        %v3957 = vunpack.c.0.s8 %v3956
        %v3958 = vlaneseq
        %v3959 = vshrl.u32 %v3958, 7
        %v3960 = vsub.s32 %v3957, %v3959
        %v3961 = vrot.slane %v3947, %v3960
        %v3962 = vcombine.low %v3938, %v3954
        %v3963 = vcombine.high %v3938, %v3954
        %v3965 = vunpack.c.l.s4 1934713408
        %v3966 = vunpack.c.0.s8 %v3965
        %v3967 = vlaneseq
        %v3968 = vshrl.u32 %v3967, 7
        %v3969 = vsub.s32 %v3966, %v3968
        %v3970 = vrot.slane %v3962, %v3969
        %v3972 = vunpack.c.l.s4 1934713408
        %v3973 = vunpack.c.0.s8 %v3972
        %v3974 = vlaneseq
        %v3975 = vshrl.u32 %v3974, 7
        %v3976 = vsub.s32 %v3973, %v3975
        %v3977 = vrot.slane %v3963, %v3976
        %v3978 = vcombine.low %v3945, %v3961
        %v3979 = vcombine.high %v3945, %v3961
        %v3981 = vunpack.c.l.s4 1934713408
        %v3982 = vunpack.c.0.s8 %v3981
        %v3983 = vlaneseq
        %v3984 = vshrl.u32 %v3983, 7
        %v3985 = vsub.s32 %v3982, %v3984
        %v3986 = vrot.slane %v3978, %v3985
        %v3988 = vunpack.c.l.s4 1934713408
        %v3989 = vunpack.c.0.s8 %v3988
        %v3990 = vlaneseq
        %v3991 = vshrl.u32 %v3990, 7
        %v3992 = vsub.s32 %v3989, %v3991
        %v3993 = vrot.slane %v3979, %v3992
        %v3994 = vcombine.high %v3970, 0.0
        %v3995 = vcombine.high %v3977, 0.0
        %v3996 = vcombine.high %v3986, 0.0
        %v3997 = vcombine.high %v3993, 0.0
        %v3998 = vcombine.low %v3563, %v3921
        %v3999 = vcombine.high %v3563, %v3921
        %v4001 = vunpack.c.l.s4 1983009808
        %v4002 = vunpack.c.0.s8 %v4001
        %v4003 = vlaneseq
        %v4004 = vshrl.u32 %v4003, 7
        %v4005 = vsub.s32 %v4002, %v4004
        %v4006 = vrot.slane %v3998, %v4005
        %v4008 = vunpack.c.l.s4 1983009808
        %v4009 = vunpack.c.0.s8 %v4008
        %v4010 = vlaneseq
        %v4011 = vshrl.u32 %v4010, 7
        %v4012 = vsub.s32 %v4009, %v4011
        %v4013 = vrot.slane %v3999, %v4012
        %v4014 = vcombine.low %v3915, %v3927
        %v4015 = vcombine.high %v3915, %v3927
        %v4017 = vunpack.c.l.s4 1983009808
        %v4018 = vunpack.c.0.s8 %v4017
        %v4019 = vlaneseq
        %v4020 = vshrl.u32 %v4019, 7
        %v4021 = vsub.s32 %v4018, %v4020
        %v4022 = vrot.slane %v4014, %v4021
        %v4024 = vunpack.c.l.s4 1983009808
        %v4025 = vunpack.c.0.s8 %v4024
        %v4026 = vlaneseq
        %v4027 = vshrl.u32 %v4026, 7
        %v4028 = vsub.s32 %v4025, %v4027
        %v4029 = vrot.slane %v4015, %v4028
        %v4030 = vcombine.low %v4006, %v4022
        %v4031 = vcombine.high %v4006, %v4022
        %v4033 = vunpack.c.l.s4 1934713408
        %v4034 = vunpack.c.0.s8 %v4033
        %v4035 = vlaneseq
        %v4036 = vshrl.u32 %v4035, 7
        %v4037 = vsub.s32 %v4034, %v4036
        %v4038 = vrot.slane %v4030, %v4037
        %v4040 = vunpack.c.l.s4 1934713408
        %v4041 = vunpack.c.0.s8 %v4040
        %v4042 = vlaneseq
        %v4043 = vshrl.u32 %v4042, 7
        %v4044 = vsub.s32 %v4041, %v4043
        %v4045 = vrot.slane %v4031, %v4044
        %v4046 = vcombine.low %v4013, %v4029
        %v4047 = vcombine.high %v4013, %v4029
        %v4049 = vunpack.c.l.s4 1934713408
        %v4050 = vunpack.c.0.s8 %v4049
        %v4051 = vlaneseq
        %v4052 = vshrl.u32 %v4051, 7
        %v4053 = vsub.s32 %v4050, %v4052
        %v4054 = vrot.slane %v4046, %v4053
        %v4056 = vunpack.c.l.s4 1934713408
        %v4057 = vunpack.c.0.s8 %v4056
        %v4058 = vlaneseq
        %v4059 = vshrl.u32 %v4058, 7
        %v4060 = vsub.s32 %v4057, %v4059
        %v4061 = vrot.slane %v4047, %v4060
        %v4062 = vcombine.high %v4038, 0.0
        %v4063 = vcombine.high %v4045, 0.0
        %v4064 = vcombine.high %v4054, 0.0
        %v4065 = vcombine.high %v4061, 0.0
        %v4066 = vpack.c.bf16 %v3970, %v3970
        %v4067 = vpack.c.bf16 %v3994, %v3994
        %v4068 = vpack.c.bf16 %v3977, %v3977
        %v4069 = vpack.c.bf16 %v3995, %v3995
        %v4070 = vpack.c.bf16 %v3986, %v3986
        %v4071 = vpack.c.bf16 %v3996, %v3996
        %v4072 = vpack.c.bf16 %v3993, %v3993
        %v4073 = vpack.c.bf16 %v3997, %v3997
        %v4074 = vpack.c.bf16 %v4038, %v4038
        %v4075 = vpack.c.bf16 %v4062, %v4062
        %v4076 = vpack.c.bf16 %v4045, %v4045
        %v4077 = vpack.c.bf16 %v4063, %v4063
        %v4078 = vpack.c.bf16 %v4054, %v4054
        %v4079 = vpack.c.bf16 %v4064, %v4064
        %v4080 = vpack.c.bf16 %v4061, %v4061
        %v4081 = vpack.c.bf16 %v4065, %v4065
        %v4082 = vcombine.low %v3722, %v3726
        %v4084 = vunpack.c.l.s4 1983009808
        %v4085 = vunpack.c.0.s8 %v4084
        %v4086 = vlaneseq
        %v4087 = vshrl.u32 %v4086, 7
        %v4088 = vsub.s32 %v4085, %v4087
        %v4089 = vrot.slane %v4082, %v4088
        %v4090 = vcombine.low %v3724, %v3728
        %v4092 = vunpack.c.l.s4 1983009808
        %v4093 = vunpack.c.0.s8 %v4092
        %v4094 = vlaneseq
        %v4095 = vshrl.u32 %v4094, 7
        %v4096 = vsub.s32 %v4093, %v4095
        %v4097 = vrot.slane %v4090, %v4096
        %v4098 = vcombine.low %v4089, %v4097
        %v4100 = vunpack.c.l.s4 1934713408
        %v4101 = vunpack.c.0.s8 %v4100
        %v4102 = vlaneseq
        %v4103 = vshrl.u32 %v4102, 7
        %v4104 = vsub.s32 %v4101, %v4103
        %v4105 = vrot.slane %v4098, %v4104
        %v4106 = vcombine.high %v4105, 0
        %v4107 = vcombine.low %v3723, %v3727
        %v4109 = vunpack.c.l.s4 1983009808
        %v4110 = vunpack.c.0.s8 %v4109
        %v4111 = vlaneseq
        %v4112 = vshrl.u32 %v4111, 7
        %v4113 = vsub.s32 %v4110, %v4112
        %v4114 = vrot.slane %v4107, %v4113
        %v4115 = vcombine.low %v3725, %v3729
        %v4117 = vunpack.c.l.s4 1983009808
        %v4118 = vunpack.c.0.s8 %v4117
        %v4119 = vlaneseq
        %v4120 = vshrl.u32 %v4119, 7
        %v4121 = vsub.s32 %v4118, %v4120
        %v4122 = vrot.slane %v4115, %v4121
        %v4123 = vcombine.low %v4114, %v4122
        %v4125 = vunpack.c.l.s4 1934713408
        %v4126 = vunpack.c.0.s8 %v4125
        %v4127 = vlaneseq
        %v4128 = vshrl.u32 %v4127, 7
        %v4129 = vsub.s32 %v4126, %v4128
        %v4130 = vrot.slane %v4123, %v4129
        %v4131 = vcombine.high %v4130, 0
        %v4134 = vpack.i.b16 %v4130, %v4105
        %v4135 = vshrl.u32 %v4105, 16
        %v4136 = vshrl.u32 %v4130, 16
        %v4137 = vpack.i.b16 %v4136, %v4135
        %v4140 = vpack.i.b16 %v4131, %v4106
        %v4141 = vshrl.u32 %v4106, 16
        %v4142 = vshrl.u32 %v4131, 16
        %v4143 = vpack.i.b16 %v4142, %v4141
        %v4144 = vcombine.low %v3894, %v3898
        %v4146 = vunpack.c.l.s4 1983009808
        %v4147 = vunpack.c.0.s8 %v4146
        %v4148 = vlaneseq
        %v4149 = vshrl.u32 %v4148, 7
        %v4150 = vsub.s32 %v4147, %v4149
        %v4151 = vrot.slane %v4144, %v4150
        %v4152 = vcombine.low %v3896, %v3900
        %v4154 = vunpack.c.l.s4 1983009808
        %v4155 = vunpack.c.0.s8 %v4154
        %v4156 = vlaneseq
        %v4157 = vshrl.u32 %v4156, 7
        %v4158 = vsub.s32 %v4155, %v4157
        %v4159 = vrot.slane %v4152, %v4158
        %v4160 = vcombine.low %v4151, %v4159
        %v4162 = vunpack.c.l.s4 1934713408
        %v4163 = vunpack.c.0.s8 %v4162
        %v4164 = vlaneseq
        %v4165 = vshrl.u32 %v4164, 7
        %v4166 = vsub.s32 %v4163, %v4165
        %v4167 = vrot.slane %v4160, %v4166
        %v4168 = vcombine.high %v4167, 0
        %v4169 = vcombine.low %v3895, %v3899
        %v4171 = vunpack.c.l.s4 1983009808
        %v4172 = vunpack.c.0.s8 %v4171
        %v4173 = vlaneseq
        %v4174 = vshrl.u32 %v4173, 7
        %v4175 = vsub.s32 %v4172, %v4174
        %v4176 = vrot.slane %v4169, %v4175
        %v4177 = vcombine.low %v3897, %v3901
        %v4179 = vunpack.c.l.s4 1983009808
        %v4180 = vunpack.c.0.s8 %v4179
        %v4181 = vlaneseq
        %v4182 = vshrl.u32 %v4181, 7
        %v4183 = vsub.s32 %v4180, %v4182
        %v4184 = vrot.slane %v4177, %v4183
        %v4185 = vcombine.low %v4176, %v4184
        %v4187 = vunpack.c.l.s4 1934713408
        %v4188 = vunpack.c.0.s8 %v4187
        %v4189 = vlaneseq
        %v4190 = vshrl.u32 %v4189, 7
        %v4191 = vsub.s32 %v4188, %v4190
        %v4192 = vrot.slane %v4185, %v4191
        %v4193 = vcombine.high %v4192, 0
        %v4196 = vpack.i.b16 %v4192, %v4167
        %v4197 = vshrl.u32 %v4167, 16
        %v4198 = vshrl.u32 %v4192, 16
        %v4199 = vpack.i.b16 %v4198, %v4197
        %v4202 = vpack.i.b16 %v4193, %v4168
        %v4203 = vshrl.u32 %v4168, 16
        %v4204 = vshrl.u32 %v4193, 16
        %v4205 = vpack.i.b16 %v4204, %v4203
        %v4206 = vcombine.low %v4066, %v4070
        %v4208 = vunpack.c.l.s4 1983009808
        %v4209 = vunpack.c.0.s8 %v4208
        %v4210 = vlaneseq
        %v4211 = vshrl.u32 %v4210, 7
        %v4212 = vsub.s32 %v4209, %v4211
        %v4213 = vrot.slane %v4206, %v4212
        %v4214 = vcombine.low %v4068, %v4072
        %v4216 = vunpack.c.l.s4 1983009808
        %v4217 = vunpack.c.0.s8 %v4216
        %v4218 = vlaneseq
        %v4219 = vshrl.u32 %v4218, 7
        %v4220 = vsub.s32 %v4217, %v4219
        %v4221 = vrot.slane %v4214, %v4220
        %v4222 = vcombine.low %v4213, %v4221
        %v4224 = vunpack.c.l.s4 1934713408
        %v4225 = vunpack.c.0.s8 %v4224
        %v4226 = vlaneseq
        %v4227 = vshrl.u32 %v4226, 7
        %v4228 = vsub.s32 %v4225, %v4227
        %v4229 = vrot.slane %v4222, %v4228
        %v4230 = vcombine.high %v4229, 0
        %v4231 = vcombine.low %v4067, %v4071
        %v4233 = vunpack.c.l.s4 1983009808
        %v4234 = vunpack.c.0.s8 %v4233
        %v4235 = vlaneseq
        %v4236 = vshrl.u32 %v4235, 7
        %v4237 = vsub.s32 %v4234, %v4236
        %v4238 = vrot.slane %v4231, %v4237
        %v4239 = vcombine.low %v4069, %v4073
        %v4241 = vunpack.c.l.s4 1983009808
        %v4242 = vunpack.c.0.s8 %v4241
        %v4243 = vlaneseq
        %v4244 = vshrl.u32 %v4243, 7
        %v4245 = vsub.s32 %v4242, %v4244
        %v4246 = vrot.slane %v4239, %v4245
        %v4247 = vcombine.low %v4238, %v4246
        %v4249 = vunpack.c.l.s4 1934713408
        %v4250 = vunpack.c.0.s8 %v4249
        %v4251 = vlaneseq
        %v4252 = vshrl.u32 %v4251, 7
        %v4253 = vsub.s32 %v4250, %v4252
        %v4254 = vrot.slane %v4247, %v4253
        %v4255 = vcombine.high %v4254, 0
        %v4258 = vpack.i.b16 %v4254, %v4229
        %v4259 = vshrl.u32 %v4229, 16
        %v4260 = vshrl.u32 %v4254, 16
        %v4261 = vpack.i.b16 %v4260, %v4259
        %v4264 = vpack.i.b16 %v4255, %v4230
        %v4265 = vshrl.u32 %v4230, 16
        %v4266 = vshrl.u32 %v4255, 16
        %v4267 = vpack.i.b16 %v4266, %v4265
        %v4269 = vsel %vm1908, %v4134, 0
        %v4272 = vsel %vm1908, %v4196, 0
        %4274 = vmatprep.subr.bf16.mxu0 0
        %4275 = vmatpush1.bf16.xpose.msra.mxu0 %v4272
        %4276 = vmatprep.subr.bf16.mxu0 0
        %4277 = vmatpush1.bf16.xpose.msra.mxu0 0
        %4278 = vmatprep.subr.bf16.mxu0 0
        %4279 = vmatpush1.bf16.xpose.msra.mxu0 0
        %4280 = vmatprep.subr.bf16.mxu0 0
        %4281 = vmatpush1.bf16.xpose.msra.mxu0 0
        %4282 = vmatprep.subr.bf16.mxu0 0
        %4283 = vmatpush1.bf16.xpose.msra.mxu0 0
        %4284 = vmatprep.subr.bf16.mxu0 0
        %4285 = vmatpush1.bf16.xpose.msra.mxu0 0
        %4286 = vmatprep.subr.bf16.mxu0 0
        %4287 = vmatpush1.bf16.xpose.msra.mxu0 0
        %4288 = vmatprep.subr.bf16.mxu0 0
        %4289 = vmatpush1.bf16.xpose.msra.mxu0 0
        %4290 = vmatprep.subr.bf16.mxu0 0
        %4291 = vmatpush1.bf16.xpose.msra.mxu0 0
        %4292 = vmatprep.subr.bf16.mxu0 0
        %4293 = vmatpush1.bf16.xpose.msra.mxu0 0
        %4294 = vmatprep.subr.bf16.mxu0 0
        %4295 = vmatpush1.bf16.xpose.msra.mxu0 0
        %4296 = vmatprep.subr.bf16.mxu0 0
        %4297 = vmatpush1.bf16.xpose.msra.mxu0 0
        %4298 = vmatprep.subr.bf16.mxu0 0
        %4299 = vmatpush1.bf16.xpose.msra.mxu0 0
        %4300 = vmatprep.subr.bf16.mxu0 0
        %4301 = vmatpush1.bf16.xpose.msra.mxu0 0
        %4302 = vmatprep.subr.bf16.mxu0 0
        %4303 = vmatpush1.bf16.xpose.msra.mxu0 0
        %4304 = vmatprep.subr.bf16.mxu0 0
        %4305 = vmatpush1.bf16.xpose.msra.mxu0 0
        %4306 = vmatprep.mubr.bf16.mxu0 0
        %4307 = vmatmul.mubr.bf16.gmra.mrb[0].mxu0 %v4269
        %v4308 = vpop.f32.mrb[0].mxu0
        %v4309 = vadd.f32 0.0, %v4308
        %v4310 = vpop.f32.mrb[0].mxu0
        %v4311 = vpop.f32.mrb[0].mxu0
        %v4312 = vpop.f32.mrb[0].mxu0
        %4313 = vdwg.mxu0
        %v4315 = vsel %vm1908, %v4137, 0
        %v4318 = vsel %vm1908, %v4199, 0
        %4320 = vmatprep.subr.bf16.mxu0 0
        %4321 = vmatpush1.bf16.xpose.msra.mxu0 %v4318
        %4322 = vmatprep.subr.bf16.mxu0 0
        %4323 = vmatpush1.bf16.xpose.msra.mxu0 0
        %4324 = vmatprep.subr.bf16.mxu0 0
        %4325 = vmatpush1.bf16.xpose.msra.mxu0 0
        %4326 = vmatprep.subr.bf16.mxu0 0
        %4327 = vmatpush1.bf16.xpose.msra.mxu0 0
        %4328 = vmatprep.subr.bf16.mxu0 0
        %4329 = vmatpush1.bf16.xpose.msra.mxu0 0
        %4330 = vmatprep.subr.bf16.mxu0 0
        %4331 = vmatpush1.bf16.xpose.msra.mxu0 0
        %4332 = vmatprep.subr.bf16.mxu0 0
        %4333 = vmatpush1.bf16.xpose.msra.mxu0 0
        %4334 = vmatprep.subr.bf16.mxu0 0
        %4335 = vmatpush1.bf16.xpose.msra.mxu0 0
        %4336 = vmatprep.subr.bf16.mxu0 0
        %4337 = vmatpush1.bf16.xpose.msra.mxu0 0
        %4338 = vmatprep.subr.bf16.mxu0 0
        %4339 = vmatpush1.bf16.xpose.msra.mxu0 0
        %4340 = vmatprep.subr.bf16.mxu0 0
        %4341 = vmatpush1.bf16.xpose.msra.mxu0 0
        %4342 = vmatprep.subr.bf16.mxu0 0
        %4343 = vmatpush1.bf16.xpose.msra.mxu0 0
        %4344 = vmatprep.subr.bf16.mxu0 0
        %4345 = vmatpush1.bf16.xpose.msra.mxu0 0
        %4346 = vmatprep.subr.bf16.mxu0 0
        %4347 = vmatpush1.bf16.xpose.msra.mxu0 0
        %4348 = vmatprep.subr.bf16.mxu0 0
        %4349 = vmatpush1.bf16.xpose.msra.mxu0 0
        %4350 = vmatprep.subr.bf16.mxu0 0
        %4351 = vmatpush1.bf16.xpose.msra.mxu0 0
        %4352 = vmatprep.mubr.bf16.mxu0 0
        %4353 = vmatmul.mubr.bf16.gmra.mrb[0].mxu0 %v4315
        %v4354 = vpop.f32.mrb[0].mxu0
        %v4355 = vadd.f32 0.0, %v4354
        %v4356 = vpop.f32.mrb[0].mxu0
        %v4357 = vpop.f32.mrb[0].mxu0
        %v4358 = vpop.f32.mrb[0].mxu0
        %4359 = vdwg.mxu0
        %v4361 = vsel %vm1908, %v4140, 0
        %v4364 = vsel %vm1908, %v4202, 0
        %4366 = vmatprep.subr.bf16.mxu0 0
        %4367 = vmatpush1.bf16.xpose.msra.mxu0 %v4364
        %4368 = vmatprep.subr.bf16.mxu0 0
        %4369 = vmatpush1.bf16.xpose.msra.mxu0 0
        %4370 = vmatprep.subr.bf16.mxu0 0
        %4371 = vmatpush1.bf16.xpose.msra.mxu0 0
        %4372 = vmatprep.subr.bf16.mxu0 0
        %4373 = vmatpush1.bf16.xpose.msra.mxu0 0
        %4374 = vmatprep.subr.bf16.mxu0 0
        %4375 = vmatpush1.bf16.xpose.msra.mxu0 0
        %4376 = vmatprep.subr.bf16.mxu0 0
        %4377 = vmatpush1.bf16.xpose.msra.mxu0 0
        %4378 = vmatprep.subr.bf16.mxu0 0
        %4379 = vmatpush1.bf16.xpose.msra.mxu0 0
        %4380 = vmatprep.subr.bf16.mxu0 0
        %4381 = vmatpush1.bf16.xpose.msra.mxu0 0
        %4382 = vmatprep.subr.bf16.mxu0 0
        %4383 = vmatpush1.bf16.xpose.msra.mxu0 0
        %4384 = vmatprep.subr.bf16.mxu0 0
        %4385 = vmatpush1.bf16.xpose.msra.mxu0 0
        %4386 = vmatprep.subr.bf16.mxu0 0
        %4387 = vmatpush1.bf16.xpose.msra.mxu0 0
        %4388 = vmatprep.subr.bf16.mxu0 0
        %4389 = vmatpush1.bf16.xpose.msra.mxu0 0
        %4390 = vmatprep.subr.bf16.mxu0 0
        %4391 = vmatpush1.bf16.xpose.msra.mxu0 0
        %4392 = vmatprep.subr.bf16.mxu0 0
        %4393 = vmatpush1.bf16.xpose.msra.mxu0 0
        %4394 = vmatprep.subr.bf16.mxu0 0
        %4395 = vmatpush1.bf16.xpose.msra.mxu0 0
        %4396 = vmatprep.subr.bf16.mxu0 0
        %4397 = vmatpush1.bf16.xpose.msra.mxu0 0
        %4398 = vmatprep.mubr.bf16.mxu0 0
        %4399 = vmatmul.mubr.bf16.gmra.mrb[0].mxu0 %v4361
        %v4400 = vpop.f32.mrb[0].mxu0
        %v4401 = vadd.f32 0.0, %v4400
        %v4402 = vpop.f32.mrb[0].mxu0
        %v4403 = vpop.f32.mrb[0].mxu0
        %v4404 = vpop.f32.mrb[0].mxu0
        %4405 = vdwg.mxu0
        %v4407 = vsel %vm1908, %v4143, 0
        %v4410 = vsel %vm1908, %v4205, 0
        %4412 = vmatprep.subr.bf16.mxu0 0
        %4413 = vmatpush1.bf16.xpose.msra.mxu0 %v4410
        %4414 = vmatprep.subr.bf16.mxu0 0
        %4415 = vmatpush1.bf16.xpose.msra.mxu0 0
        %4416 = vmatprep.subr.bf16.mxu0 0
        %4417 = vmatpush1.bf16.xpose.msra.mxu0 0
        %4418 = vmatprep.subr.bf16.mxu0 0
        %4419 = vmatpush1.bf16.xpose.msra.mxu0 0
        %4420 = vmatprep.subr.bf16.mxu0 0
        %4421 = vmatpush1.bf16.xpose.msra.mxu0 0
        %4422 = vmatprep.subr.bf16.mxu0 0
        %4423 = vmatpush1.bf16.xpose.msra.mxu0 0
        %4424 = vmatprep.subr.bf16.mxu0 0
        %4425 = vmatpush1.bf16.xpose.msra.mxu0 0
        %4426 = vmatprep.subr.bf16.mxu0 0
        %4427 = vmatpush1.bf16.xpose.msra.mxu0 0
        %4428 = vmatprep.subr.bf16.mxu0 0
        %4429 = vmatpush1.bf16.xpose.msra.mxu0 0
        %4430 = vmatprep.subr.bf16.mxu0 0
        %4431 = vmatpush1.bf16.xpose.msra.mxu0 0
        %4432 = vmatprep.subr.bf16.mxu0 0
        %4433 = vmatpush1.bf16.xpose.msra.mxu0 0
        %4434 = vmatprep.subr.bf16.mxu0 0
        %4435 = vmatpush1.bf16.xpose.msra.mxu0 0
        %4436 = vmatprep.subr.bf16.mxu0 0
        %4437 = vmatpush1.bf16.xpose.msra.mxu0 0
        %4438 = vmatprep.subr.bf16.mxu0 0
        %4439 = vmatpush1.bf16.xpose.msra.mxu0 0
        %4440 = vmatprep.subr.bf16.mxu0 0
        %4441 = vmatpush1.bf16.xpose.msra.mxu0 0
        %4442 = vmatprep.subr.bf16.mxu0 0
        %4443 = vmatpush1.bf16.xpose.msra.mxu0 0
        %4444 = vmatprep.mubr.bf16.mxu0 0
        %4445 = vmatmul.mubr.bf16.gmra.mrb[0].mxu0 %v4407
        %v4446 = vpop.f32.mrb[0].mxu0
        %v4447 = vadd.f32 0.0, %v4446
        %v4448 = vpop.f32.mrb[0].mxu0
        %v4449 = vpop.f32.mrb[0].mxu0
        %v4450 = vpop.f32.mrb[0].mxu0
        %4451 = vdwg.mxu0
        %v4452 = vmul.f32 %v4309, 0.35355338
        %v4453 = vmul.f32 %v4355, 0.35355338
        %v4454 = vmul.f32 %v4401, 0.35355338
        %v4455 = vmul.f32 %v4447, 0.35355338
        %v4457 = vlaneseq
        %v4458 = vshrl.u32 %v4457, 7
        %v4459 = vsub.s32 0, %v4458
        %v4460 = vrot.slane %v948, %v4459
        %v4462 = vadd.f32 %v4452, %v4460
        %v4463 = vadd.f32 %v4453, %v4460
        %v4464 = vadd.f32 %v4454, %v4460
        %v4465 = vadd.f32 %v4455, %v4460
        %v4466 = vsel %vm1908, %v4462, -inf
        %4467 = vmax.xlane.f32.xlu0 %v4466
        %v4468 = vpop.xlane.xlu0 %4467
        %v4469 = vsel %vm1908, %v4463, -inf
        %4470 = vmax.xlane.f32.xlu0 %v4469
        %v4471 = vpop.xlane.xlu0 %4470
        %v4472 = vsel %vm1908, %v4464, -inf
        %4473 = vmax.xlane.f32.xlu0 %v4472
        %v4474 = vpop.xlane.xlu0 %4473
        %v4475 = vsel %vm1908, %v4465, -inf
        %4476 = vmax.xlane.f32.xlu0 %v4475
        %v4477 = vpop.xlane.xlu0 %4476
        %v4478 = vsub.f32 %v4462, %v4468
        %v4479 = vsub.f32 %v4463, %v4471
        %v4480 = vsub.f32 %v4464, %v4474
        %v4481 = vsub.f32 %v4465, %v4477
        %v4482 = vmul.f32 %v4478, 1.442695
        %v4483 = vpow.pop %v4482
        %v4484 = vmul.f32 %v4479, 1.442695
        %v4485 = vpow.pop %v4484
        %v4486 = vmul.f32 %v4480, 1.442695
        %v4487 = vpow.pop %v4486
        %v4488 = vmul.f32 %v4481, 1.442695
        %v4489 = vpow.pop %v4488
        %v4490 = vsel %vm1908, %v4483, 0.0
        %4491 = vadd.xlane.f32.xlu0 %v4490
        %v4492 = vpop.xlane.xlu0 %4491
        %v4493 = vsel %vm1908, %v4485, 0.0
        %4494 = vadd.xlane.f32.xlu0 %v4493
        %v4495 = vpop.xlane.xlu0 %4494
        %v4496 = vsel %vm1908, %v4487, 0.0
        %4497 = vadd.xlane.f32.xlu0 %v4496
        %v4498 = vpop.xlane.xlu0 %4497
        %v4499 = vsel %vm1908, %v4489, 0.0
        %4500 = vadd.xlane.f32.xlu0 %v4499
        %v4501 = vpop.xlane.xlu0 %4500
        %v4502 = vrcp.pop %v4492
        %v4503 = vrcp.pop %v4495
        %v4504 = vrcp.pop %v4498
        %v4505 = vrcp.pop %v4501
        %v4506 = vmul.f32 %v4483, %v4502
        %v4507 = vmul.f32 %v4485, %v4503
        %v4508 = vmul.f32 %v4487, %v4504
        %v4509 = vmul.f32 %v4489, %v4505
        %v4510 = vpack.c.bf16 %v4506, %v4506
        %v4511 = vpack.c.bf16 %v4507, %v4507
        %v4512 = vpack.c.bf16 %v4508, %v4508
        %v4513 = vpack.c.bf16 %v4509, %v4509
        %v4515 = vsel %vm1908, %v4510, 0
        %v4518 = vsel %vm2152, %v4258, 0
        %4520 = vmatprep.subr.bf16.mxu0 0
        %4521 = vmatpush1.bf16.msra.mxu0 %v4518
        %4522 = vmatprep.subr.bf16.mxu0 0
        %4523 = vmatpush1.bf16.msra.mxu0 0
        %4524 = vmatprep.subr.bf16.mxu0 0
        %4525 = vmatpush1.bf16.msra.mxu0 0
        %4526 = vmatprep.subr.bf16.mxu0 0
        %4527 = vmatpush1.bf16.msra.mxu0 0
        %4528 = vmatprep.subr.bf16.mxu0 0
        %4529 = vmatpush1.bf16.msra.mxu0 0
        %4530 = vmatprep.subr.bf16.mxu0 0
        %4531 = vmatpush1.bf16.msra.mxu0 0
        %4532 = vmatprep.subr.bf16.mxu0 0
        %4533 = vmatpush1.bf16.msra.mxu0 0
        %4534 = vmatprep.subr.bf16.mxu0 0
        %4535 = vmatpush1.bf16.msra.mxu0 0
        %4536 = vmatprep.subr.bf16.mxu0 0
        %4537 = vmatpush1.bf16.msra.mxu0 0
        %4538 = vmatprep.subr.bf16.mxu0 0
        %4539 = vmatpush1.bf16.msra.mxu0 0
        %4540 = vmatprep.subr.bf16.mxu0 0
        %4541 = vmatpush1.bf16.msra.mxu0 0
        %4542 = vmatprep.subr.bf16.mxu0 0
        %4543 = vmatpush1.bf16.msra.mxu0 0
        %4544 = vmatprep.subr.bf16.mxu0 0
        %4545 = vmatpush1.bf16.msra.mxu0 0
        %4546 = vmatprep.subr.bf16.mxu0 0
        %4547 = vmatpush1.bf16.msra.mxu0 0
        %4548 = vmatprep.subr.bf16.mxu0 0
        %4549 = vmatpush1.bf16.msra.mxu0 0
        %4550 = vmatprep.subr.bf16.mxu0 0
        %4551 = vmatpush1.bf16.msra.mxu0 0
        %4552 = vmatprep.mubr.bf16.mxu0 0
        %4553 = vmatmul.mubr.bf16.gmra.mrb[0].mxu0 %v4515
        %v4554 = vpop.f32.mrb[0].mxu0
        %v4555 = vadd.f32 0.0, %v4554
        %v4556 = vpop.f32.mrb[0].mxu0
        %v4557 = vpop.f32.mrb[0].mxu0
        %v4558 = vpop.f32.mrb[0].mxu0
        %4559 = vdwg.mxu0
        %v4561 = vsel %vm1908, %v4511, 0
        %v4564 = vsel %vm2152, %v4261, 0
        %4566 = vmatprep.subr.bf16.mxu0 0
        %4567 = vmatpush1.bf16.msra.mxu0 %v4564
        %4568 = vmatprep.subr.bf16.mxu0 0
        %4569 = vmatpush1.bf16.msra.mxu0 0
        %4570 = vmatprep.subr.bf16.mxu0 0
        %4571 = vmatpush1.bf16.msra.mxu0 0
        %4572 = vmatprep.subr.bf16.mxu0 0
        %4573 = vmatpush1.bf16.msra.mxu0 0
        %4574 = vmatprep.subr.bf16.mxu0 0
        %4575 = vmatpush1.bf16.msra.mxu0 0
        %4576 = vmatprep.subr.bf16.mxu0 0
        %4577 = vmatpush1.bf16.msra.mxu0 0
        %4578 = vmatprep.subr.bf16.mxu0 0
        %4579 = vmatpush1.bf16.msra.mxu0 0
        %4580 = vmatprep.subr.bf16.mxu0 0
        %4581 = vmatpush1.bf16.msra.mxu0 0
        %4582 = vmatprep.subr.bf16.mxu0 0
        %4583 = vmatpush1.bf16.msra.mxu0 0
        %4584 = vmatprep.subr.bf16.mxu0 0
        %4585 = vmatpush1.bf16.msra.mxu0 0
        %4586 = vmatprep.subr.bf16.mxu0 0
        %4587 = vmatpush1.bf16.msra.mxu0 0
        %4588 = vmatprep.subr.bf16.mxu0 0
        %4589 = vmatpush1.bf16.msra.mxu0 0
        %4590 = vmatprep.subr.bf16.mxu0 0
        %4591 = vmatpush1.bf16.msra.mxu0 0
        %4592 = vmatprep.subr.bf16.mxu0 0
        %4593 = vmatpush1.bf16.msra.mxu0 0
        %4594 = vmatprep.subr.bf16.mxu0 0
        %4595 = vmatpush1.bf16.msra.mxu0 0
        %4596 = vmatprep.subr.bf16.mxu0 0
        %4597 = vmatpush1.bf16.msra.mxu0 0
        %4598 = vmatprep.mubr.bf16.mxu0 0
        %4599 = vmatmul.mubr.bf16.gmra.mrb[0].mxu0 %v4561
        %v4600 = vpop.f32.mrb[0].mxu0
        %v4601 = vadd.f32 0.0, %v4600
        %v4602 = vpop.f32.mrb[0].mxu0
        %v4603 = vpop.f32.mrb[0].mxu0
        %v4604 = vpop.f32.mrb[0].mxu0
        %4605 = vdwg.mxu0
        %v4607 = vsel %vm1908, %v4512, 0
        %v4610 = vsel %vm2152, %v4264, 0
        %4612 = vmatprep.subr.bf16.mxu0 0
        %4613 = vmatpush1.bf16.msra.mxu0 %v4610
        %4614 = vmatprep.subr.bf16.mxu0 0
        %4615 = vmatpush1.bf16.msra.mxu0 0
        %4616 = vmatprep.subr.bf16.mxu0 0
        %4617 = vmatpush1.bf16.msra.mxu0 0
        %4618 = vmatprep.subr.bf16.mxu0 0
        %4619 = vmatpush1.bf16.msra.mxu0 0
        %4620 = vmatprep.subr.bf16.mxu0 0
        %4621 = vmatpush1.bf16.msra.mxu0 0
        %4622 = vmatprep.subr.bf16.mxu0 0
        %4623 = vmatpush1.bf16.msra.mxu0 0
        %4624 = vmatprep.subr.bf16.mxu0 0
        %4625 = vmatpush1.bf16.msra.mxu0 0
        %4626 = vmatprep.subr.bf16.mxu0 0
        %4627 = vmatpush1.bf16.msra.mxu0 0
        %4628 = vmatprep.subr.bf16.mxu0 0
        %4629 = vmatpush1.bf16.msra.mxu0 0
        %4630 = vmatprep.subr.bf16.mxu0 0
        %4631 = vmatpush1.bf16.msra.mxu0 0
        %4632 = vmatprep.subr.bf16.mxu0 0
        %4633 = vmatpush1.bf16.msra.mxu0 0
        %4634 = vmatprep.subr.bf16.mxu0 0
        %4635 = vmatpush1.bf16.msra.mxu0 0
        %4636 = vmatprep.subr.bf16.mxu0 0
        %4637 = vmatpush1.bf16.msra.mxu0 0
        %4638 = vmatprep.subr.bf16.mxu0 0
        %4639 = vmatpush1.bf16.msra.mxu0 0
        %4640 = vmatprep.subr.bf16.mxu0 0
        %4641 = vmatpush1.bf16.msra.mxu0 0
        %4642 = vmatprep.subr.bf16.mxu0 0
        %4643 = vmatpush1.bf16.msra.mxu0 0
        %4644 = vmatprep.mubr.bf16.mxu0 0
        %4645 = vmatmul.mubr.bf16.gmra.mrb[0].mxu0 %v4607
        %v4646 = vpop.f32.mrb[0].mxu0
        %v4647 = vadd.f32 0.0, %v4646
        %v4648 = vpop.f32.mrb[0].mxu0
        %v4649 = vpop.f32.mrb[0].mxu0
        %v4650 = vpop.f32.mrb[0].mxu0
        %4651 = vdwg.mxu0
        %v4653 = vsel %vm1908, %v4513, 0
        %v4656 = vsel %vm2152, %v4267, 0
        %4658 = vmatprep.subr.bf16.mxu0 0
        %4659 = vmatpush1.bf16.msra.mxu0 %v4656
        %4660 = vmatprep.subr.bf16.mxu0 0
        %4661 = vmatpush1.bf16.msra.mxu0 0
        %4662 = vmatprep.subr.bf16.mxu0 0
        %4663 = vmatpush1.bf16.msra.mxu0 0
        %4664 = vmatprep.subr.bf16.mxu0 0
        %4665 = vmatpush1.bf16.msra.mxu0 0
        %4666 = vmatprep.subr.bf16.mxu0 0
        %4667 = vmatpush1.bf16.msra.mxu0 0
        %4668 = vmatprep.subr.bf16.mxu0 0
        %4669 = vmatpush1.bf16.msra.mxu0 0
        %4670 = vmatprep.subr.bf16.mxu0 0
        %4671 = vmatpush1.bf16.msra.mxu0 0
        %4672 = vmatprep.subr.bf16.mxu0 0
        %4673 = vmatpush1.bf16.msra.mxu0 0
        %4674 = vmatprep.subr.bf16.mxu0 0
        %4675 = vmatpush1.bf16.msra.mxu0 0
        %4676 = vmatprep.subr.bf16.mxu0 0
        %4677 = vmatpush1.bf16.msra.mxu0 0
        %4678 = vmatprep.subr.bf16.mxu0 0
        %4679 = vmatpush1.bf16.msra.mxu0 0
        %4680 = vmatprep.subr.bf16.mxu0 0
        %4681 = vmatpush1.bf16.msra.mxu0 0
        %4682 = vmatprep.subr.bf16.mxu0 0
        %4683 = vmatpush1.bf16.msra.mxu0 0
        %4684 = vmatprep.subr.bf16.mxu0 0
        %4685 = vmatpush1.bf16.msra.mxu0 0
        %4686 = vmatprep.subr.bf16.mxu0 0
        %4687 = vmatpush1.bf16.msra.mxu0 0
        %4688 = vmatprep.subr.bf16.mxu0 0
        %4689 = vmatpush1.bf16.msra.mxu0 0
        %4690 = vmatprep.mubr.bf16.mxu0 0
        %4691 = vmatmul.mubr.bf16.gmra.mrb[0].mxu0 %v4653
        %v4692 = vpop.f32.mrb[0].mxu0
        %v4693 = vadd.f32 0.0, %v4692
        %v4694 = vpop.f32.mrb[0].mxu0
        %v4695 = vpop.f32.mrb[0].mxu0
        %v4696 = vpop.f32.mrb[0].mxu0
        %4697 = vdwg.mxu0
        %v4698 = vcombine.low %v4555, %v4647
        %v4699 = vcombine.high %v4555, %v4647
        %v4701 = vunpack.c.l.s4 1983009808
        %v4702 = vunpack.c.0.s8 %v4701
        %v4703 = vlaneseq
        %v4704 = vshrl.u32 %v4703, 7
        %v4705 = vsub.s32 %v4702, %v4704
        %v4706 = vrot.slane %v4698, %v4705
        %v4708 = vunpack.c.l.s4 1983009808
        %v4709 = vunpack.c.0.s8 %v4708
        %v4710 = vlaneseq
        %v4711 = vshrl.u32 %v4710, 7
        %v4712 = vsub.s32 %v4709, %v4711
        %v4713 = vrot.slane %v4699, %v4712
        %v4714 = vcombine.low %v4601, %v4693
        %v4715 = vcombine.high %v4601, %v4693
        %v4717 = vunpack.c.l.s4 1983009808
        %v4718 = vunpack.c.0.s8 %v4717
        %v4719 = vlaneseq
        %v4720 = vshrl.u32 %v4719, 7
        %v4721 = vsub.s32 %v4718, %v4720
        %v4722 = vrot.slane %v4714, %v4721
        %v4724 = vunpack.c.l.s4 1983009808
        %v4725 = vunpack.c.0.s8 %v4724
        %v4726 = vlaneseq
        %v4727 = vshrl.u32 %v4726, 7
        %v4728 = vsub.s32 %v4725, %v4727
        %v4729 = vrot.slane %v4715, %v4728
        %v4730 = vcombine.low %v4706, %v4722
        %v4731 = vcombine.high %v4706, %v4722
        %v4733 = vunpack.c.l.s4 1934713408
        %v4734 = vunpack.c.0.s8 %v4733
        %v4735 = vlaneseq
        %v4736 = vshrl.u32 %v4735, 7
        %v4737 = vsub.s32 %v4734, %v4736
        %v4738 = vrot.slane %v4730, %v4737
        %v4740 = vunpack.c.l.s4 1934713408
        %v4741 = vunpack.c.0.s8 %v4740
        %v4742 = vlaneseq
        %v4743 = vshrl.u32 %v4742, 7
        %v4744 = vsub.s32 %v4741, %v4743
        %v4745 = vrot.slane %v4731, %v4744
        %v4746 = vcombine.low %v4713, %v4729
        %v4747 = vcombine.high %v4713, %v4729
        %v4749 = vunpack.c.l.s4 1934713408
        %v4750 = vunpack.c.0.s8 %v4749
        %v4751 = vlaneseq
        %v4752 = vshrl.u32 %v4751, 7
        %v4753 = vsub.s32 %v4750, %v4752
        %v4754 = vrot.slane %v4746, %v4753
        %v4756 = vunpack.c.l.s4 1934713408
        %v4757 = vunpack.c.0.s8 %v4756
        %v4758 = vlaneseq
        %v4759 = vshrl.u32 %v4758, 7
        %v4760 = vsub.s32 %v4757, %v4759
        %v4761 = vrot.slane %v4747, %v4760
        %v4762 = vcombine.high %v4738, 0.0
        %v4763 = vcombine.high %v4745, 0.0
        %v4764 = vcombine.high %v4754, 0.0
        %v4765 = vcombine.high %v4761, 0.0
        %v4766 = vcombine.low %v4738, %v4745
        %v4768 = vunpack.c.l.s4 1983009808
        %v4769 = vunpack.c.0.s8 %v4768
        %v4770 = vlaneseq
        %v4771 = vshrl.u32 %v4770, 7
        %v4772 = vsub.s32 %v4769, %v4771
        %v4773 = vrot.slane %v4766, %v4772
        %v4774 = vcombine.low %v4762, %v4763
        %v4776 = vunpack.c.l.s4 1983009808
        %v4777 = vunpack.c.0.s8 %v4776
        %v4778 = vlaneseq
        %v4779 = vshrl.u32 %v4778, 7
        %v4780 = vsub.s32 %v4777, %v4779
        %v4781 = vrot.slane %v4774, %v4780
        %v4782 = vcombine.low %v4754, %v4761
        %v4784 = vunpack.c.l.s4 1983009808
        %v4785 = vunpack.c.0.s8 %v4784
        %v4786 = vlaneseq
        %v4787 = vshrl.u32 %v4786, 7
        %v4788 = vsub.s32 %v4785, %v4787
        %v4789 = vrot.slane %v4782, %v4788
        %v4790 = vcombine.low %v4764, %v4765
        %v4792 = vunpack.c.l.s4 1983009808
        %v4793 = vunpack.c.0.s8 %v4792
        %v4794 = vlaneseq
        %v4795 = vshrl.u32 %v4794, 7
        %v4796 = vsub.s32 %v4793, %v4795
        %v4797 = vrot.slane %v4790, %v4796
        %v4798 = vcombine.low %v4773, %v4781
        %v4799 = vcombine.high %v4773, %v4781
        %v4801 = vunpack.c.l.s4 1934713408
        %v4802 = vunpack.c.0.s8 %v4801
        %v4803 = vlaneseq
        %v4804 = vshrl.u32 %v4803, 7
        %v4805 = vsub.s32 %v4802, %v4804
        %v4806 = vrot.slane %v4798, %v4805
        %v4808 = vunpack.c.l.s4 1934713408
        %v4809 = vunpack.c.0.s8 %v4808
        %v4810 = vlaneseq
        %v4811 = vshrl.u32 %v4810, 7
        %v4812 = vsub.s32 %v4809, %v4811
        %v4813 = vrot.slane %v4799, %v4812
        %v4814 = vcombine.low %v4789, %v4797
        %v4815 = vcombine.high %v4789, %v4797
        %v4817 = vunpack.c.l.s4 1934713408
        %v4818 = vunpack.c.0.s8 %v4817
        %v4819 = vlaneseq
        %v4820 = vshrl.u32 %v4819, 7
        %v4821 = vsub.s32 %v4818, %v4820
        %v4822 = vrot.slane %v4814, %v4821
        %v4824 = vunpack.c.l.s4 1934713408
        %v4825 = vunpack.c.0.s8 %v4824
        %v4826 = vlaneseq
        %v4827 = vshrl.u32 %v4826, 7
        %v4828 = vsub.s32 %v4825, %v4827
        %v4829 = vrot.slane %v4815, %v4828
        %v4830 = vcombine.low %v4806, %v4822
        %v4831 = vcombine.high %v4806, %v4822
        %v4832 = vcombine.low %v4813, %v4829
        %v4833 = vcombine.high %v4813, %v4829
        %4835 = vrot.lane.b32.xlu0 %v4831, 8
        %v4836 = vpop.permute.xlu0 %4835
        %4839 = vrot.lane.b32.xlu0 %v4832, 16
        %v4840 = vpop.permute.xlu0 %4839
        %4843 = vrot.lane.b32.xlu0 %v4833, 24
        %v4844 = vpop.permute.xlu0 %4843
        %v4846 = vsel %vm1908, %v4830, %v4836
        %v4847 = vsel %vm2483, %v4846, %v4840
        %v4848 = vsel %vm2485, %v4847, %v4844
        %v4849 = vcombine.low %v3730, %v3734
        %v4851 = vunpack.c.l.s4 1983009808
        %v4852 = vunpack.c.0.s8 %v4851
        %v4853 = vlaneseq
        %v4854 = vshrl.u32 %v4853, 7
        %v4855 = vsub.s32 %v4852, %v4854
        %v4856 = vrot.slane %v4849, %v4855
        %v4857 = vcombine.low %v3732, %v3736
        %v4859 = vunpack.c.l.s4 1983009808
        %v4860 = vunpack.c.0.s8 %v4859
        %v4861 = vlaneseq
        %v4862 = vshrl.u32 %v4861, 7
        %v4863 = vsub.s32 %v4860, %v4862
        %v4864 = vrot.slane %v4857, %v4863
        %v4865 = vcombine.low %v4856, %v4864
        %v4867 = vunpack.c.l.s4 1934713408
        %v4868 = vunpack.c.0.s8 %v4867
        %v4869 = vlaneseq
        %v4870 = vshrl.u32 %v4869, 7
        %v4871 = vsub.s32 %v4868, %v4870
        %v4872 = vrot.slane %v4865, %v4871
        %v4873 = vcombine.high %v4872, 0
        %v4874 = vcombine.low %v3731, %v3735
        %v4876 = vunpack.c.l.s4 1983009808
        %v4877 = vunpack.c.0.s8 %v4876
        %v4878 = vlaneseq
        %v4879 = vshrl.u32 %v4878, 7
        %v4880 = vsub.s32 %v4877, %v4879
        %v4881 = vrot.slane %v4874, %v4880
        %v4882 = vcombine.low %v3733, %v3737
        %v4884 = vunpack.c.l.s4 1983009808
        %v4885 = vunpack.c.0.s8 %v4884
        %v4886 = vlaneseq
        %v4887 = vshrl.u32 %v4886, 7
        %v4888 = vsub.s32 %v4885, %v4887
        %v4889 = vrot.slane %v4882, %v4888
        %v4890 = vcombine.low %v4881, %v4889
        %v4892 = vunpack.c.l.s4 1934713408
        %v4893 = vunpack.c.0.s8 %v4892
        %v4894 = vlaneseq
        %v4895 = vshrl.u32 %v4894, 7
        %v4896 = vsub.s32 %v4893, %v4895
        %v4897 = vrot.slane %v4890, %v4896
        %v4898 = vcombine.high %v4897, 0
        %v4901 = vpack.i.b16 %v4897, %v4872
        %v4902 = vshrl.u32 %v4872, 16
        %v4903 = vshrl.u32 %v4897, 16
        %v4904 = vpack.i.b16 %v4903, %v4902
        %v4907 = vpack.i.b16 %v4898, %v4873
        %v4908 = vshrl.u32 %v4873, 16
        %v4909 = vshrl.u32 %v4898, 16
        %v4910 = vpack.i.b16 %v4909, %v4908
        %v4911 = vcombine.low %v3902, %v3906
        %v4913 = vunpack.c.l.s4 1983009808
        %v4914 = vunpack.c.0.s8 %v4913
        %v4915 = vlaneseq
        %v4916 = vshrl.u32 %v4915, 7
        %v4917 = vsub.s32 %v4914, %v4916
        %v4918 = vrot.slane %v4911, %v4917
        %v4919 = vcombine.low %v3904, %v3908
        %v4921 = vunpack.c.l.s4 1983009808
        %v4922 = vunpack.c.0.s8 %v4921
        %v4923 = vlaneseq
        %v4924 = vshrl.u32 %v4923, 7
        %v4925 = vsub.s32 %v4922, %v4924
        %v4926 = vrot.slane %v4919, %v4925
        %v4927 = vcombine.low %v4918, %v4926
        %v4929 = vunpack.c.l.s4 1934713408
        %v4930 = vunpack.c.0.s8 %v4929
        %v4931 = vlaneseq
        %v4932 = vshrl.u32 %v4931, 7
        %v4933 = vsub.s32 %v4930, %v4932
        %v4934 = vrot.slane %v4927, %v4933
        %v4935 = vcombine.high %v4934, 0
        %v4936 = vcombine.low %v3903, %v3907
        %v4938 = vunpack.c.l.s4 1983009808
        %v4939 = vunpack.c.0.s8 %v4938
        %v4940 = vlaneseq
        %v4941 = vshrl.u32 %v4940, 7
        %v4942 = vsub.s32 %v4939, %v4941
        %v4943 = vrot.slane %v4936, %v4942
        %v4944 = vcombine.low %v3905, %v3909
        %v4946 = vunpack.c.l.s4 1983009808
        %v4947 = vunpack.c.0.s8 %v4946
        %v4948 = vlaneseq
        %v4949 = vshrl.u32 %v4948, 7
        %v4950 = vsub.s32 %v4947, %v4949
        %v4951 = vrot.slane %v4944, %v4950
        %v4952 = vcombine.low %v4943, %v4951
        %v4954 = vunpack.c.l.s4 1934713408
        %v4955 = vunpack.c.0.s8 %v4954
        %v4956 = vlaneseq
        %v4957 = vshrl.u32 %v4956, 7
        %v4958 = vsub.s32 %v4955, %v4957
        %v4959 = vrot.slane %v4952, %v4958
        %v4960 = vcombine.high %v4959, 0
        %v4963 = vpack.i.b16 %v4959, %v4934
        %v4964 = vshrl.u32 %v4934, 16
        %v4965 = vshrl.u32 %v4959, 16
        %v4966 = vpack.i.b16 %v4965, %v4964
        %v4969 = vpack.i.b16 %v4960, %v4935
        %v4970 = vshrl.u32 %v4935, 16
        %v4971 = vshrl.u32 %v4960, 16
        %v4972 = vpack.i.b16 %v4971, %v4970
        %v4973 = vcombine.low %v4074, %v4078
        %v4975 = vunpack.c.l.s4 1983009808
        %v4976 = vunpack.c.0.s8 %v4975
        %v4977 = vlaneseq
        %v4978 = vshrl.u32 %v4977, 7
        %v4979 = vsub.s32 %v4976, %v4978
        %v4980 = vrot.slane %v4973, %v4979
        %v4981 = vcombine.low %v4076, %v4080
        %v4983 = vunpack.c.l.s4 1983009808
        %v4984 = vunpack.c.0.s8 %v4983
        %v4985 = vlaneseq
        %v4986 = vshrl.u32 %v4985, 7
        %v4987 = vsub.s32 %v4984, %v4986
        %v4988 = vrot.slane %v4981, %v4987
        %v4989 = vcombine.low %v4980, %v4988
        %v4991 = vunpack.c.l.s4 1934713408
        %v4992 = vunpack.c.0.s8 %v4991
        %v4993 = vlaneseq
        %v4994 = vshrl.u32 %v4993, 7
        %v4995 = vsub.s32 %v4992, %v4994
        %v4996 = vrot.slane %v4989, %v4995
        %v4997 = vcombine.high %v4996, 0
        %v4998 = vcombine.low %v4075, %v4079
        %v5000 = vunpack.c.l.s4 1983009808
        %v5001 = vunpack.c.0.s8 %v5000
        %v5002 = vlaneseq
        %v5003 = vshrl.u32 %v5002, 7
        %v5004 = vsub.s32 %v5001, %v5003
        %v5005 = vrot.slane %v4998, %v5004
        %v5006 = vcombine.low %v4077, %v4081
        %v5008 = vunpack.c.l.s4 1983009808
        %v5009 = vunpack.c.0.s8 %v5008
        %v5010 = vlaneseq
        %v5011 = vshrl.u32 %v5010, 7
        %v5012 = vsub.s32 %v5009, %v5011
        %v5013 = vrot.slane %v5006, %v5012
        %v5014 = vcombine.low %v5005, %v5013
        %v5016 = vunpack.c.l.s4 1934713408
        %v5017 = vunpack.c.0.s8 %v5016
        %v5018 = vlaneseq
        %v5019 = vshrl.u32 %v5018, 7
        %v5020 = vsub.s32 %v5017, %v5019
        %v5021 = vrot.slane %v5014, %v5020
        %v5022 = vcombine.high %v5021, 0
        %v5025 = vpack.i.b16 %v5021, %v4996
        %v5026 = vshrl.u32 %v4996, 16
        %v5027 = vshrl.u32 %v5021, 16
        %v5028 = vpack.i.b16 %v5027, %v5026
        %v5031 = vpack.i.b16 %v5022, %v4997
        %v5032 = vshrl.u32 %v4997, 16
        %v5033 = vshrl.u32 %v5022, 16
        %v5034 = vpack.i.b16 %v5033, %v5032
        %v5036 = vsel %vm1908, %v4901, 0
        %v5039 = vsel %vm1908, %v4963, 0
        %5041 = vmatprep.subr.bf16.mxu0 0
        %5042 = vmatpush1.bf16.xpose.msra.mxu0 %v5039
        %5043 = vmatprep.subr.bf16.mxu0 0
        %5044 = vmatpush1.bf16.xpose.msra.mxu0 0
        %5045 = vmatprep.subr.bf16.mxu0 0
        %5046 = vmatpush1.bf16.xpose.msra.mxu0 0
        %5047 = vmatprep.subr.bf16.mxu0 0
        %5048 = vmatpush1.bf16.xpose.msra.mxu0 0
        %5049 = vmatprep.subr.bf16.mxu0 0
        %5050 = vmatpush1.bf16.xpose.msra.mxu0 0
        %5051 = vmatprep.subr.bf16.mxu0 0
        %5052 = vmatpush1.bf16.xpose.msra.mxu0 0
        %5053 = vmatprep.subr.bf16.mxu0 0
        %5054 = vmatpush1.bf16.xpose.msra.mxu0 0
        %5055 = vmatprep.subr.bf16.mxu0 0
        %5056 = vmatpush1.bf16.xpose.msra.mxu0 0
        %5057 = vmatprep.subr.bf16.mxu0 0
        %5058 = vmatpush1.bf16.xpose.msra.mxu0 0
        %5059 = vmatprep.subr.bf16.mxu0 0
        %5060 = vmatpush1.bf16.xpose.msra.mxu0 0
        %5061 = vmatprep.subr.bf16.mxu0 0
        %5062 = vmatpush1.bf16.xpose.msra.mxu0 0
        %5063 = vmatprep.subr.bf16.mxu0 0
        %5064 = vmatpush1.bf16.xpose.msra.mxu0 0
        %5065 = vmatprep.subr.bf16.mxu0 0
        %5066 = vmatpush1.bf16.xpose.msra.mxu0 0
        %5067 = vmatprep.subr.bf16.mxu0 0
        %5068 = vmatpush1.bf16.xpose.msra.mxu0 0
        %5069 = vmatprep.subr.bf16.mxu0 0
        %5070 = vmatpush1.bf16.xpose.msra.mxu0 0
        %5071 = vmatprep.subr.bf16.mxu0 0
        %5072 = vmatpush1.bf16.xpose.msra.mxu0 0
        %5073 = vmatprep.mubr.bf16.mxu0 0
        %5074 = vmatmul.mubr.bf16.gmra.mrb[0].mxu0 %v5036
        %v5075 = vpop.f32.mrb[0].mxu0
        %v5076 = vadd.f32 0.0, %v5075
        %v5077 = vpop.f32.mrb[0].mxu0
        %v5078 = vpop.f32.mrb[0].mxu0
        %v5079 = vpop.f32.mrb[0].mxu0
        %5080 = vdwg.mxu0
        %v5082 = vsel %vm1908, %v4904, 0
        %v5085 = vsel %vm1908, %v4966, 0
        %5087 = vmatprep.subr.bf16.mxu0 0
        %5088 = vmatpush1.bf16.xpose.msra.mxu0 %v5085
        %5089 = vmatprep.subr.bf16.mxu0 0
        %5090 = vmatpush1.bf16.xpose.msra.mxu0 0
        %5091 = vmatprep.subr.bf16.mxu0 0
        %5092 = vmatpush1.bf16.xpose.msra.mxu0 0
        %5093 = vmatprep.subr.bf16.mxu0 0
        %5094 = vmatpush1.bf16.xpose.msra.mxu0 0
        %5095 = vmatprep.subr.bf16.mxu0 0
        %5096 = vmatpush1.bf16.xpose.msra.mxu0 0
        %5097 = vmatprep.subr.bf16.mxu0 0
        %5098 = vmatpush1.bf16.xpose.msra.mxu0 0
        %5099 = vmatprep.subr.bf16.mxu0 0
        %5100 = vmatpush1.bf16.xpose.msra.mxu0 0
        %5101 = vmatprep.subr.bf16.mxu0 0
        %5102 = vmatpush1.bf16.xpose.msra.mxu0 0
        %5103 = vmatprep.subr.bf16.mxu0 0
        %5104 = vmatpush1.bf16.xpose.msra.mxu0 0
        %5105 = vmatprep.subr.bf16.mxu0 0
        %5106 = vmatpush1.bf16.xpose.msra.mxu0 0
        %5107 = vmatprep.subr.bf16.mxu0 0
        %5108 = vmatpush1.bf16.xpose.msra.mxu0 0
        %5109 = vmatprep.subr.bf16.mxu0 0
        %5110 = vmatpush1.bf16.xpose.msra.mxu0 0
        %5111 = vmatprep.subr.bf16.mxu0 0
        %5112 = vmatpush1.bf16.xpose.msra.mxu0 0
        %5113 = vmatprep.subr.bf16.mxu0 0
        %5114 = vmatpush1.bf16.xpose.msra.mxu0 0
        %5115 = vmatprep.subr.bf16.mxu0 0
        %5116 = vmatpush1.bf16.xpose.msra.mxu0 0
        %5117 = vmatprep.subr.bf16.mxu0 0
        %5118 = vmatpush1.bf16.xpose.msra.mxu0 0
        %5119 = vmatprep.mubr.bf16.mxu0 0
        %5120 = vmatmul.mubr.bf16.gmra.mrb[0].mxu0 %v5082
        %v5121 = vpop.f32.mrb[0].mxu0
        %v5122 = vadd.f32 0.0, %v5121
        %v5123 = vpop.f32.mrb[0].mxu0
        %v5124 = vpop.f32.mrb[0].mxu0
        %v5125 = vpop.f32.mrb[0].mxu0
        %5126 = vdwg.mxu0
        %v5128 = vsel %vm1908, %v4907, 0
        %v5131 = vsel %vm1908, %v4969, 0
        %5133 = vmatprep.subr.bf16.mxu0 0
        %5134 = vmatpush1.bf16.xpose.msra.mxu0 %v5131
        %5135 = vmatprep.subr.bf16.mxu0 0
        %5136 = vmatpush1.bf16.xpose.msra.mxu0 0
        %5137 = vmatprep.subr.bf16.mxu0 0
        %5138 = vmatpush1.bf16.xpose.msra.mxu0 0
        %5139 = vmatprep.subr.bf16.mxu0 0
        %5140 = vmatpush1.bf16.xpose.msra.mxu0 0
        %5141 = vmatprep.subr.bf16.mxu0 0
        %5142 = vmatpush1.bf16.xpose.msra.mxu0 0
        %5143 = vmatprep.subr.bf16.mxu0 0
        %5144 = vmatpush1.bf16.xpose.msra.mxu0 0
        %5145 = vmatprep.subr.bf16.mxu0 0
        %5146 = vmatpush1.bf16.xpose.msra.mxu0 0
        %5147 = vmatprep.subr.bf16.mxu0 0
        %5148 = vmatpush1.bf16.xpose.msra.mxu0 0
        %5149 = vmatprep.subr.bf16.mxu0 0
        %5150 = vmatpush1.bf16.xpose.msra.mxu0 0
        %5151 = vmatprep.subr.bf16.mxu0 0
        %5152 = vmatpush1.bf16.xpose.msra.mxu0 0
        %5153 = vmatprep.subr.bf16.mxu0 0
        %5154 = vmatpush1.bf16.xpose.msra.mxu0 0
        %5155 = vmatprep.subr.bf16.mxu0 0
        %5156 = vmatpush1.bf16.xpose.msra.mxu0 0
        %5157 = vmatprep.subr.bf16.mxu0 0
        %5158 = vmatpush1.bf16.xpose.msra.mxu0 0
        %5159 = vmatprep.subr.bf16.mxu0 0
        %5160 = vmatpush1.bf16.xpose.msra.mxu0 0
        %5161 = vmatprep.subr.bf16.mxu0 0
        %5162 = vmatpush1.bf16.xpose.msra.mxu0 0
        %5163 = vmatprep.subr.bf16.mxu0 0
        %5164 = vmatpush1.bf16.xpose.msra.mxu0 0
        %5165 = vmatprep.mubr.bf16.mxu0 0
        %5166 = vmatmul.mubr.bf16.gmra.mrb[0].mxu0 %v5128
        %v5167 = vpop.f32.mrb[0].mxu0
        %v5168 = vadd.f32 0.0, %v5167
        %v5169 = vpop.f32.mrb[0].mxu0
        %v5170 = vpop.f32.mrb[0].mxu0
        %v5171 = vpop.f32.mrb[0].mxu0
        %5172 = vdwg.mxu0
        %v5174 = vsel %vm1908, %v4910, 0
        %v5177 = vsel %vm1908, %v4972, 0
        %5179 = vmatprep.subr.bf16.mxu0 0
        %5180 = vmatpush1.bf16.xpose.msra.mxu0 %v5177
        %5181 = vmatprep.subr.bf16.mxu0 0
        %5182 = vmatpush1.bf16.xpose.msra.mxu0 0
        %5183 = vmatprep.subr.bf16.mxu0 0
        %5184 = vmatpush1.bf16.xpose.msra.mxu0 0
        %5185 = vmatprep.subr.bf16.mxu0 0
        %5186 = vmatpush1.bf16.xpose.msra.mxu0 0
        %5187 = vmatprep.subr.bf16.mxu0 0
        %5188 = vmatpush1.bf16.xpose.msra.mxu0 0
        %5189 = vmatprep.subr.bf16.mxu0 0
        %5190 = vmatpush1.bf16.xpose.msra.mxu0 0
        %5191 = vmatprep.subr.bf16.mxu0 0
        %5192 = vmatpush1.bf16.xpose.msra.mxu0 0
        %5193 = vmatprep.subr.bf16.mxu0 0
        %5194 = vmatpush1.bf16.xpose.msra.mxu0 0
        %5195 = vmatprep.subr.bf16.mxu0 0
        %5196 = vmatpush1.bf16.xpose.msra.mxu0 0
        %5197 = vmatprep.subr.bf16.mxu0 0
        %5198 = vmatpush1.bf16.xpose.msra.mxu0 0
        %5199 = vmatprep.subr.bf16.mxu0 0
        %5200 = vmatpush1.bf16.xpose.msra.mxu0 0
        %5201 = vmatprep.subr.bf16.mxu0 0
        %5202 = vmatpush1.bf16.xpose.msra.mxu0 0
        %5203 = vmatprep.subr.bf16.mxu0 0
        %5204 = vmatpush1.bf16.xpose.msra.mxu0 0
        %5205 = vmatprep.subr.bf16.mxu0 0
        %5206 = vmatpush1.bf16.xpose.msra.mxu0 0
        %5207 = vmatprep.subr.bf16.mxu0 0
        %5208 = vmatpush1.bf16.xpose.msra.mxu0 0
        %5209 = vmatprep.subr.bf16.mxu0 0
        %5210 = vmatpush1.bf16.xpose.msra.mxu0 0
        %5211 = vmatprep.mubr.bf16.mxu0 0
        %5212 = vmatmul.mubr.bf16.gmra.mrb[0].mxu0 %v5174
        %v5213 = vpop.f32.mrb[0].mxu0
        %v5214 = vadd.f32 0.0, %v5213
        %v5215 = vpop.f32.mrb[0].mxu0
        %v5216 = vpop.f32.mrb[0].mxu0
        %v5217 = vpop.f32.mrb[0].mxu0
        %5218 = vdwg.mxu0
        %v5219 = vmul.f32 %v5076, 0.35355338
        %v5220 = vmul.f32 %v5122, 0.35355338
        %v5221 = vmul.f32 %v5168, 0.35355338
        %v5222 = vmul.f32 %v5214, 0.35355338
        %v5224 = vlaneseq
        %v5225 = vshrl.u32 %v5224, 7
        %v5226 = vsub.s32 0, %v5225
        %v5227 = vrot.slane %v949, %v5226
        %v5229 = vadd.f32 %v5219, %v5227
        %v5230 = vadd.f32 %v5220, %v5227
        %v5231 = vadd.f32 %v5221, %v5227
        %v5232 = vadd.f32 %v5222, %v5227
        %v5233 = vsel %vm1908, %v5229, -inf
        %5234 = vmax.xlane.f32.xlu0 %v5233
        %v5235 = vpop.xlane.xlu0 %5234
        %v5236 = vsel %vm1908, %v5230, -inf
        %5237 = vmax.xlane.f32.xlu0 %v5236
        %v5238 = vpop.xlane.xlu0 %5237
        %v5239 = vsel %vm1908, %v5231, -inf
        %5240 = vmax.xlane.f32.xlu0 %v5239
        %v5241 = vpop.xlane.xlu0 %5240
        %v5242 = vsel %vm1908, %v5232, -inf
        %5243 = vmax.xlane.f32.xlu0 %v5242
        %v5244 = vpop.xlane.xlu0 %5243
        %v5245 = vsub.f32 %v5229, %v5235
        %v5246 = vsub.f32 %v5230, %v5238
        %v5247 = vsub.f32 %v5231, %v5241
        %v5248 = vsub.f32 %v5232, %v5244
        %v5249 = vmul.f32 %v5245, 1.442695
        %v5250 = vpow.pop %v5249
        %v5251 = vmul.f32 %v5246, 1.442695
        %v5252 = vpow.pop %v5251
        %v5253 = vmul.f32 %v5247, 1.442695
        %v5254 = vpow.pop %v5253
        %v5255 = vmul.f32 %v5248, 1.442695
        %v5256 = vpow.pop %v5255
        %v5257 = vsel %vm1908, %v5250, 0.0
        %5258 = vadd.xlane.f32.xlu0 %v5257
        %v5259 = vpop.xlane.xlu0 %5258
        %v5260 = vsel %vm1908, %v5252, 0.0
        %5261 = vadd.xlane.f32.xlu0 %v5260
        %v5262 = vpop.xlane.xlu0 %5261
        %v5263 = vsel %vm1908, %v5254, 0.0
        %5264 = vadd.xlane.f32.xlu0 %v5263
        %v5265 = vpop.xlane.xlu0 %5264
        %v5266 = vsel %vm1908, %v5256, 0.0
        %5267 = vadd.xlane.f32.xlu0 %v5266
        %v5268 = vpop.xlane.xlu0 %5267
        %v5269 = vrcp.pop %v5259
        %v5270 = vrcp.pop %v5262
        %v5271 = vrcp.pop %v5265
        %v5272 = vrcp.pop %v5268
        %v5273 = vmul.f32 %v5250, %v5269
        %v5274 = vmul.f32 %v5252, %v5270
        %v5275 = vmul.f32 %v5254, %v5271
        %v5276 = vmul.f32 %v5256, %v5272
        %v5277 = vpack.c.bf16 %v5273, %v5273
        %v5278 = vpack.c.bf16 %v5274, %v5274
        %v5279 = vpack.c.bf16 %v5275, %v5275
        %v5280 = vpack.c.bf16 %v5276, %v5276
        %v5282 = vsel %vm1908, %v5277, 0
        %v5285 = vsel %vm2152, %v5025, 0
        %5287 = vmatprep.subr.bf16.mxu0 0
        %5288 = vmatpush1.bf16.msra.mxu0 %v5285
        %5289 = vmatprep.subr.bf16.mxu0 0
        %5290 = vmatpush1.bf16.msra.mxu0 0
        %5291 = vmatprep.subr.bf16.mxu0 0
        %5292 = vmatpush1.bf16.msra.mxu0 0
        %5293 = vmatprep.subr.bf16.mxu0 0
        %5294 = vmatpush1.bf16.msra.mxu0 0
        %5295 = vmatprep.subr.bf16.mxu0 0
        %5296 = vmatpush1.bf16.msra.mxu0 0
        %5297 = vmatprep.subr.bf16.mxu0 0
        %5298 = vmatpush1.bf16.msra.mxu0 0
        %5299 = vmatprep.subr.bf16.mxu0 0
        %5300 = vmatpush1.bf16.msra.mxu0 0
        %5301 = vmatprep.subr.bf16.mxu0 0
        %5302 = vmatpush1.bf16.msra.mxu0 0
        %5303 = vmatprep.subr.bf16.mxu0 0
        %5304 = vmatpush1.bf16.msra.mxu0 0
        %5305 = vmatprep.subr.bf16.mxu0 0
        %5306 = vmatpush1.bf16.msra.mxu0 0
        %5307 = vmatprep.subr.bf16.mxu0 0
        %5308 = vmatpush1.bf16.msra.mxu0 0
        %5309 = vmatprep.subr.bf16.mxu0 0
        %5310 = vmatpush1.bf16.msra.mxu0 0
        %5311 = vmatprep.subr.bf16.mxu0 0
        %5312 = vmatpush1.bf16.msra.mxu0 0
        %5313 = vmatprep.subr.bf16.mxu0 0
        %5314 = vmatpush1.bf16.msra.mxu0 0
        %5315 = vmatprep.subr.bf16.mxu0 0
        %5316 = vmatpush1.bf16.msra.mxu0 0
        %5317 = vmatprep.subr.bf16.mxu0 0
        %5318 = vmatpush1.bf16.msra.mxu0 0
        %5319 = vmatprep.mubr.bf16.mxu0 0
        %5320 = vmatmul.mubr.bf16.gmra.mrb[0].mxu0 %v5282
        %v5321 = vpop.f32.mrb[0].mxu0
        %v5322 = vadd.f32 0.0, %v5321
        %v5323 = vpop.f32.mrb[0].mxu0
        %v5324 = vpop.f32.mrb[0].mxu0
        %v5325 = vpop.f32.mrb[0].mxu0
        %5326 = vdwg.mxu0
        %v5328 = vsel %vm1908, %v5278, 0
        %v5331 = vsel %vm2152, %v5028, 0
        %5333 = vmatprep.subr.bf16.mxu0 0
        %5334 = vmatpush1.bf16.msra.mxu0 %v5331
        %5335 = vmatprep.subr.bf16.mxu0 0
        %5336 = vmatpush1.bf16.msra.mxu0 0
        %5337 = vmatprep.subr.bf16.mxu0 0
        %5338 = vmatpush1.bf16.msra.mxu0 0
        %5339 = vmatprep.subr.bf16.mxu0 0
        %5340 = vmatpush1.bf16.msra.mxu0 0
        %5341 = vmatprep.subr.bf16.mxu0 0
        %5342 = vmatpush1.bf16.msra.mxu0 0
        %5343 = vmatprep.subr.bf16.mxu0 0
        %5344 = vmatpush1.bf16.msra.mxu0 0
        %5345 = vmatprep.subr.bf16.mxu0 0
        %5346 = vmatpush1.bf16.msra.mxu0 0
        %5347 = vmatprep.subr.bf16.mxu0 0
        %5348 = vmatpush1.bf16.msra.mxu0 0
        %5349 = vmatprep.subr.bf16.mxu0 0
        %5350 = vmatpush1.bf16.msra.mxu0 0
        %5351 = vmatprep.subr.bf16.mxu0 0
        %5352 = vmatpush1.bf16.msra.mxu0 0
        %5353 = vmatprep.subr.bf16.mxu0 0
        %5354 = vmatpush1.bf16.msra.mxu0 0
        %5355 = vmatprep.subr.bf16.mxu0 0
        %5356 = vmatpush1.bf16.msra.mxu0 0
        %5357 = vmatprep.subr.bf16.mxu0 0
        %5358 = vmatpush1.bf16.msra.mxu0 0
        %5359 = vmatprep.subr.bf16.mxu0 0
        %5360 = vmatpush1.bf16.msra.mxu0 0
        %5361 = vmatprep.subr.bf16.mxu0 0
        %5362 = vmatpush1.bf16.msra.mxu0 0
        %5363 = vmatprep.subr.bf16.mxu0 0
        %5364 = vmatpush1.bf16.msra.mxu0 0
        %5365 = vmatprep.mubr.bf16.mxu0 0
        %5366 = vmatmul.mubr.bf16.gmra.mrb[0].mxu0 %v5328
        %v5367 = vpop.f32.mrb[0].mxu0
        %v5368 = vadd.f32 0.0, %v5367
        %v5369 = vpop.f32.mrb[0].mxu0
        %v5370 = vpop.f32.mrb[0].mxu0
        %v5371 = vpop.f32.mrb[0].mxu0
        %5372 = vdwg.mxu0
        %v5374 = vsel %vm1908, %v5279, 0
        %v5377 = vsel %vm2152, %v5031, 0
        %5379 = vmatprep.subr.bf16.mxu0 0
        %5380 = vmatpush1.bf16.msra.mxu0 %v5377
        %5381 = vmatprep.subr.bf16.mxu0 0
        %5382 = vmatpush1.bf16.msra.mxu0 0
        %5383 = vmatprep.subr.bf16.mxu0 0
        %5384 = vmatpush1.bf16.msra.mxu0 0
        %5385 = vmatprep.subr.bf16.mxu0 0
        %5386 = vmatpush1.bf16.msra.mxu0 0
        %5387 = vmatprep.subr.bf16.mxu0 0
        %5388 = vmatpush1.bf16.msra.mxu0 0
        %5389 = vmatprep.subr.bf16.mxu0 0
        %5390 = vmatpush1.bf16.msra.mxu0 0
        %5391 = vmatprep.subr.bf16.mxu0 0
        %5392 = vmatpush1.bf16.msra.mxu0 0
        %5393 = vmatprep.subr.bf16.mxu0 0
        %5394 = vmatpush1.bf16.msra.mxu0 0
        %5395 = vmatprep.subr.bf16.mxu0 0
        %5396 = vmatpush1.bf16.msra.mxu0 0
        %5397 = vmatprep.subr.bf16.mxu0 0
        %5398 = vmatpush1.bf16.msra.mxu0 0
        %5399 = vmatprep.subr.bf16.mxu0 0
        %5400 = vmatpush1.bf16.msra.mxu0 0
        %5401 = vmatprep.subr.bf16.mxu0 0
        %5402 = vmatpush1.bf16.msra.mxu0 0
        %5403 = vmatprep.subr.bf16.mxu0 0
        %5404 = vmatpush1.bf16.msra.mxu0 0
        %5405 = vmatprep.subr.bf16.mxu0 0
        %5406 = vmatpush1.bf16.msra.mxu0 0
        %5407 = vmatprep.subr.bf16.mxu0 0
        %5408 = vmatpush1.bf16.msra.mxu0 0
        %5409 = vmatprep.subr.bf16.mxu0 0
        %5410 = vmatpush1.bf16.msra.mxu0 0
        %5411 = vmatprep.mubr.bf16.mxu0 0
        %5412 = vmatmul.mubr.bf16.gmra.mrb[0].mxu0 %v5374
        %v5413 = vpop.f32.mrb[0].mxu0
        %v5414 = vadd.f32 0.0, %v5413
        %v5415 = vpop.f32.mrb[0].mxu0
        %v5416 = vpop.f32.mrb[0].mxu0
        %v5417 = vpop.f32.mrb[0].mxu0
        %5418 = vdwg.mxu0
        %v5420 = vsel %vm1908, %v5280, 0
        %v5423 = vsel %vm2152, %v5034, 0
        %5425 = vmatprep.subr.bf16.mxu0 0
        %5426 = vmatpush1.bf16.msra.mxu0 %v5423
        %5427 = vmatprep.subr.bf16.mxu0 0
        %5428 = vmatpush1.bf16.msra.mxu0 0
        %5429 = vmatprep.subr.bf16.mxu0 0
        %5430 = vmatpush1.bf16.msra.mxu0 0
        %5431 = vmatprep.subr.bf16.mxu0 0
        %5432 = vmatpush1.bf16.msra.mxu0 0
        %5433 = vmatprep.subr.bf16.mxu0 0
        %5434 = vmatpush1.bf16.msra.mxu0 0
        %5435 = vmatprep.subr.bf16.mxu0 0
        %5436 = vmatpush1.bf16.msra.mxu0 0
        %5437 = vmatprep.subr.bf16.mxu0 0
        %5438 = vmatpush1.bf16.msra.mxu0 0
        %5439 = vmatprep.subr.bf16.mxu0 0
        %5440 = vmatpush1.bf16.msra.mxu0 0
        %5441 = vmatprep.subr.bf16.mxu0 0
        %5442 = vmatpush1.bf16.msra.mxu0 0
        %5443 = vmatprep.subr.bf16.mxu0 0
        %5444 = vmatpush1.bf16.msra.mxu0 0
        %5445 = vmatprep.subr.bf16.mxu0 0
        %5446 = vmatpush1.bf16.msra.mxu0 0
        %5447 = vmatprep.subr.bf16.mxu0 0
        %5448 = vmatpush1.bf16.msra.mxu0 0
        %5449 = vmatprep.subr.bf16.mxu0 0
        %5450 = vmatpush1.bf16.msra.mxu0 0
        %5451 = vmatprep.subr.bf16.mxu0 0
        %5452 = vmatpush1.bf16.msra.mxu0 0
        %5453 = vmatprep.subr.bf16.mxu0 0
        %5454 = vmatpush1.bf16.msra.mxu0 0
        %5455 = vmatprep.subr.bf16.mxu0 0
        %5456 = vmatpush1.bf16.msra.mxu0 0
        %5457 = vmatprep.mubr.bf16.mxu0 0
        %5458 = vmatmul.mubr.bf16.gmra.mrb[0].mxu0 %v5420
        %v5459 = vpop.f32.mrb[0].mxu0
        %v5460 = vadd.f32 0.0, %v5459
        %v5461 = vpop.f32.mrb[0].mxu0
        %v5462 = vpop.f32.mrb[0].mxu0
        %v5463 = vpop.f32.mrb[0].mxu0
        %5464 = vdwg.mxu0
        %v5465 = vcombine.low %v5322, %v5414
        %v5466 = vcombine.high %v5322, %v5414
        %v5468 = vunpack.c.l.s4 1983009808
        %v5469 = vunpack.c.0.s8 %v5468
        %v5470 = vlaneseq
        %v5471 = vshrl.u32 %v5470, 7
        %v5472 = vsub.s32 %v5469, %v5471
        %v5473 = vrot.slane %v5465, %v5472
        %v5475 = vunpack.c.l.s4 1983009808
        %v5476 = vunpack.c.0.s8 %v5475
        %v5477 = vlaneseq
        %v5478 = vshrl.u32 %v5477, 7
        %v5479 = vsub.s32 %v5476, %v5478
        %v5480 = vrot.slane %v5466, %v5479
        %v5481 = vcombine.low %v5368, %v5460
        %v5482 = vcombine.high %v5368, %v5460
        %v5484 = vunpack.c.l.s4 1983009808
        %v5485 = vunpack.c.0.s8 %v5484
        %v5486 = vlaneseq
        %v5487 = vshrl.u32 %v5486, 7
        %v5488 = vsub.s32 %v5485, %v5487
        %v5489 = vrot.slane %v5481, %v5488
        %v5491 = vunpack.c.l.s4 1983009808
        %v5492 = vunpack.c.0.s8 %v5491
        %v5493 = vlaneseq
        %v5494 = vshrl.u32 %v5493, 7
        %v5495 = vsub.s32 %v5492, %v5494
        %v5496 = vrot.slane %v5482, %v5495
        %v5497 = vcombine.low %v5473, %v5489
        %v5498 = vcombine.high %v5473, %v5489
        %v5500 = vunpack.c.l.s4 1934713408
        %v5501 = vunpack.c.0.s8 %v5500
        %v5502 = vlaneseq
        %v5503 = vshrl.u32 %v5502, 7
        %v5504 = vsub.s32 %v5501, %v5503
        %v5505 = vrot.slane %v5497, %v5504
        %v5507 = vunpack.c.l.s4 1934713408
        %v5508 = vunpack.c.0.s8 %v5507
        %v5509 = vlaneseq
        %v5510 = vshrl.u32 %v5509, 7
        %v5511 = vsub.s32 %v5508, %v5510
        %v5512 = vrot.slane %v5498, %v5511
        %v5513 = vcombine.low %v5480, %v5496
        %v5514 = vcombine.high %v5480, %v5496
        %v5516 = vunpack.c.l.s4 1934713408
        %v5517 = vunpack.c.0.s8 %v5516
        %v5518 = vlaneseq
        %v5519 = vshrl.u32 %v5518, 7
        %v5520 = vsub.s32 %v5517, %v5519
        %v5521 = vrot.slane %v5513, %v5520
        %v5523 = vunpack.c.l.s4 1934713408
        %v5524 = vunpack.c.0.s8 %v5523
        %v5525 = vlaneseq
        %v5526 = vshrl.u32 %v5525, 7
        %v5527 = vsub.s32 %v5524, %v5526
        %v5528 = vrot.slane %v5514, %v5527
        %v5529 = vcombine.high %v5505, 0.0
        %v5530 = vcombine.high %v5512, 0.0
        %v5531 = vcombine.high %v5521, 0.0
        %v5532 = vcombine.high %v5528, 0.0
        %v5533 = vcombine.low %v5505, %v5512
        %v5535 = vunpack.c.l.s4 1983009808
        %v5536 = vunpack.c.0.s8 %v5535
        %v5537 = vlaneseq
        %v5538 = vshrl.u32 %v5537, 7
        %v5539 = vsub.s32 %v5536, %v5538
        %v5540 = vrot.slane %v5533, %v5539
        %v5541 = vcombine.low %v5529, %v5530
        %v5543 = vunpack.c.l.s4 1983009808
        %v5544 = vunpack.c.0.s8 %v5543
        %v5545 = vlaneseq
        %v5546 = vshrl.u32 %v5545, 7
        %v5547 = vsub.s32 %v5544, %v5546
        %v5548 = vrot.slane %v5541, %v5547
        %v5549 = vcombine.low %v5521, %v5528
        %v5551 = vunpack.c.l.s4 1983009808
        %v5552 = vunpack.c.0.s8 %v5551
        %v5553 = vlaneseq
        %v5554 = vshrl.u32 %v5553, 7
        %v5555 = vsub.s32 %v5552, %v5554
        %v5556 = vrot.slane %v5549, %v5555
        %v5557 = vcombine.low %v5531, %v5532
        %v5559 = vunpack.c.l.s4 1983009808
        %v5560 = vunpack.c.0.s8 %v5559
        %v5561 = vlaneseq
        %v5562 = vshrl.u32 %v5561, 7
        %v5563 = vsub.s32 %v5560, %v5562
        %v5564 = vrot.slane %v5557, %v5563
        %v5565 = vcombine.low %v5540, %v5548
        %v5566 = vcombine.high %v5540, %v5548
        %v5568 = vunpack.c.l.s4 1934713408
        %v5569 = vunpack.c.0.s8 %v5568
        %v5570 = vlaneseq
        %v5571 = vshrl.u32 %v5570, 7
        %v5572 = vsub.s32 %v5569, %v5571
        %v5573 = vrot.slane %v5565, %v5572
        %v5575 = vunpack.c.l.s4 1934713408
        %v5576 = vunpack.c.0.s8 %v5575
        %v5577 = vlaneseq
        %v5578 = vshrl.u32 %v5577, 7
        %v5579 = vsub.s32 %v5576, %v5578
        %v5580 = vrot.slane %v5566, %v5579
        %v5581 = vcombine.low %v5556, %v5564
        %v5582 = vcombine.high %v5556, %v5564
        %v5584 = vunpack.c.l.s4 1934713408
        %v5585 = vunpack.c.0.s8 %v5584
        %v5586 = vlaneseq
        %v5587 = vshrl.u32 %v5586, 7
        %v5588 = vsub.s32 %v5585, %v5587
        %v5589 = vrot.slane %v5581, %v5588
        %v5591 = vunpack.c.l.s4 1934713408
        %v5592 = vunpack.c.0.s8 %v5591
        %v5593 = vlaneseq
        %v5594 = vshrl.u32 %v5593, 7
        %v5595 = vsub.s32 %v5592, %v5594
        %v5596 = vrot.slane %v5582, %v5595
        %v5597 = vcombine.low %v5573, %v5589
        %v5598 = vcombine.high %v5573, %v5589
        %v5599 = vcombine.low %v5580, %v5596
        %v5600 = vcombine.high %v5580, %v5596
        %5602 = vrot.lane.b32.xlu0 %v5598, 8
        %v5603 = vpop.permute.xlu0 %5602
        %5606 = vrot.lane.b32.xlu0 %v5599, 16
        %v5607 = vpop.permute.xlu0 %5606
        %5610 = vrot.lane.b32.xlu0 %v5600, 24
        %v5611 = vpop.permute.xlu0 %5610
        %v5613 = vsel %vm1908, %v5597, %v5603
        %v5614 = vsel %vm2483, %v5613, %v5607
        %v5615 = vsel %vm2485, %v5614, %v5611
        %v5616 = vpack.c.bf16 %v5615, %v4848
        %v5617 = vlaneseq
        %v5618 = vshrl.u32 %v5617, 7
        %v5619 = vsub.s32 0, %v5618
        %v5620 = vrot.slane %v3386, %v5619
        %v5625 = vunpack.c.l.b16 %v3379
        %v5626 = vunpack.c.l.b16 %v3380
        %v5627 = vunpack.c.l.b16 %v3381
        %v5628 = vunpack.c.l.b16 %v3382
        %v5629 = vpack.c.b16 %v5626, %v5625
        %v5630 = vpack.c.b16 %v5628, %v5627
        %v5634 = vsel %vm954, %v5616, 0
        %5636 = vmatprep.subr.bf16.mxu0 0
        %5637 = vmatpush1.bf16.msra.mxu0 %v5629
        %5638 = vmatprep.subr.bf16.mxu0 0
        %5639 = vmatpush1.bf16.msra.mxu0 %v5630
        %5640 = vmatprep.subr.bf16.mxu0 0
        %5641 = vmatpush1.bf16.msra.mxu0 0
        %5642 = vmatprep.subr.bf16.mxu0 0
        %5643 = vmatpush1.bf16.msra.mxu0 0
        %5644 = vmatprep.subr.bf16.mxu0 0
        %5645 = vmatpush1.bf16.msra.mxu0 0
        %5646 = vmatprep.subr.bf16.mxu0 0
        %5647 = vmatpush1.bf16.msra.mxu0 0
        %5648 = vmatprep.subr.bf16.mxu0 0
        %5649 = vmatpush1.bf16.msra.mxu0 0
        %5650 = vmatprep.subr.bf16.mxu0 0
        %5651 = vmatpush1.bf16.msra.mxu0 0
        %5652 = vmatprep.subr.bf16.mxu0 0
        %5653 = vmatpush1.bf16.msra.mxu0 0
        %5654 = vmatprep.subr.bf16.mxu0 0
        %5655 = vmatpush1.bf16.msra.mxu0 0
        %5656 = vmatprep.subr.bf16.mxu0 0
        %5657 = vmatpush1.bf16.msra.mxu0 0
        %5658 = vmatprep.subr.bf16.mxu0 0
        %5659 = vmatpush1.bf16.msra.mxu0 0
        %5660 = vmatprep.subr.bf16.mxu0 0
        %5661 = vmatpush1.bf16.msra.mxu0 0
        %5662 = vmatprep.subr.bf16.mxu0 0
        %5663 = vmatpush1.bf16.msra.mxu0 0
        %5664 = vmatprep.subr.bf16.mxu0 0
        %5665 = vmatpush1.bf16.msra.mxu0 0
        %5666 = vmatprep.subr.bf16.mxu0 0
        %5667 = vmatpush1.bf16.msra.mxu0 0
        %5668 = vmatprep.mubr.bf16.mxu0 0
        %5669 = vmatmul.mubr.bf16.gmra.mrb[0].mxu0 %v5634
        %v5670 = vpop.f32.mrb[0].mxu0
        %v5671 = vadd.f32 %v5620, %v5670
        %v5672 = vpop.f32.mrb[0].mxu0
        %v5673 = vpop.f32.mrb[0].mxu0
        %v5674 = vadd.f32 %v5620, %v5673
        %v5675 = vpop.f32.mrb[0].mxu0
        %5676 = vdwg.mxu0
        %v5677 = vadd.f32 %v3309, %v5671
        %v5678 = vadd.f32 %v3310, %v5674
        %v5679 = vsel %vm954, %v5677, 0.0
        %5680 = vadd.xlane.f32.xlu0 %v5679
        %v5681 = vpop.xlane.xlu0 %5680
        %v5682 = vsel %vm954, %v5678, 0.0
        %5683 = vadd.xlane.f32.xlu0 %v5682
        %v5684 = vpop.xlane.xlu0 %5683
        %v5685 = vmul.f32 %v5681, %v961
        %v5686 = vmul.f32 %v5684, %v961
        %v5687 = vsub.f32 %v5677, %v5685
        %v5688 = vsub.f32 %v5678, %v5686
        %v5689 = vmul.f32 %v5687, %v5687
        %v5690 = vmul.f32 %v5688, %v5688
        %v5691 = vsel %vm954, %v5689, 0.0
        %5692 = vadd.xlane.f32.xlu0 %v5691
        %v5693 = vpop.xlane.xlu0 %5692
        %v5694 = vsel %vm954, %v5690, 0.0
        %5695 = vadd.xlane.f32.xlu0 %v5694
        %v5696 = vpop.xlane.xlu0 %5695
        %v5697 = vmul.f32 %v5693, 0.032258064
        %v5698 = vmul.f32 %v5696, 0.032258064
        %v5699 = vrsqrt.pop %v5697
        %v5700 = vmul.f32 %v5697, %v5699
        %vm5701 = vcmp.eq.f32.partialorder %v5697, inf
        %v5702 = vsel %vm5701, %v5697, %v5700
        %vm5703 = vcmp.eq.f32.partialorder %v5697, 0.0
        %v5704 = vand.u32 %v5697, 2147483648
        %v5705 = vsel %vm5703, %v5704, %v5702
        %v5706 = vrsqrt.pop %v5698
        %v5707 = vmul.f32 %v5698, %v5706
        %vm5708 = vcmp.eq.f32.partialorder %v5698, inf
        %v5709 = vsel %vm5708, %v5698, %v5707
        %vm5710 = vcmp.eq.f32.partialorder %v5698, 0.0
        %v5711 = vand.u32 %v5698, 2147483648
        %v5712 = vsel %vm5710, %v5711, %v5709
        %v5713 = vadd.f32 %v5705, 1e-06
        %v5714 = vadd.f32 %v5712, 1e-06
        %v5715 = vrcp.pop %v5713
        %v5716 = vrcp.pop %v5714
        %v5717 = vmul.f32 %v5687, %v5715
        %v5718 = vmul.f32 %v5688, %v5716
        %v5719 = vlaneseq
        %v5720 = vshrl.u32 %v5719, 7
        %v5721 = vsub.s32 2, %v5720
        %v5722 = vrot.slane %v952, %v5721
        %v5723 = vmul.f32 %v5722, %v5717
        %v5724 = vmul.f32 %v5722, %v5718
        %v5725 = vlaneseq
        %v5726 = vshrl.u32 %v5725, 7
        %v5727 = vsub.s32 2, %v5726
        %v5728 = vrot.slane %v953, %v5727
        %v5729 = vadd.f32 %v5723, %v5728
        %v5730 = vadd.f32 %v5724, %v5728
        %v5731 = vpack.c.bf16 %v5730, %v5729
        %v5732 = vld [vmem:[%s779] sm:$0xf]
        %v5733 = vld [vmem:[%s779 + $0x4] sm:$0xf]
        %v5734 = vld [vmem:[%s779 + $0x8] sm:$0xf]
        %v5735 = vld [vmem:[%s779 + $0xc] sm:$0xf]
        %v5736 = vld [vmem:[%s787] sm:$0x1]
        %v5738 = vlaneseq
        %v5739 = vshrl.u32 %v5738, 7
        %v5740 = vsub.s32 0, %v5739
        %v5741 = vrot.slane %v5736, %v5740
        %v5747 = vunpack.c.l.b16 %v5732
        %v5748 = vunpack.c.l.b16 %v5733
        %v5749 = vunpack.c.l.b16 %v5734
        %v5750 = vunpack.c.l.b16 %v5735
        %v5751 = vpack.c.b16 %v5748, %v5747
        %v5752 = vpack.c.b16 %v5750, %v5749
        %v5756 = vsel %vm954, %v5731, 0
        %5758 = vmatprep.subr.bf16.mxu0 0
        %5759 = vmatpush1.bf16.msra.mxu0 %v5751
        %5760 = vmatprep.subr.bf16.mxu0 0
        %5761 = vmatpush1.bf16.msra.mxu0 %v5752
        %5762 = vmatprep.subr.bf16.mxu0 0
        %5763 = vmatpush1.bf16.msra.mxu0 0
        %5764 = vmatprep.subr.bf16.mxu0 0
        %5765 = vmatpush1.bf16.msra.mxu0 0
        %5766 = vmatprep.subr.bf16.mxu0 0
        %5767 = vmatpush1.bf16.msra.mxu0 0
        %5768 = vmatprep.subr.bf16.mxu0 0
        %5769 = vmatpush1.bf16.msra.mxu0 0
        %5770 = vmatprep.subr.bf16.mxu0 0
        %5771 = vmatpush1.bf16.msra.mxu0 0
        %5772 = vmatprep.subr.bf16.mxu0 0
        %5773 = vmatpush1.bf16.msra.mxu0 0
        %5774 = vmatprep.subr.bf16.mxu0 0
        %5775 = vmatpush1.bf16.msra.mxu0 0
        %5776 = vmatprep.subr.bf16.mxu0 0
        %5777 = vmatpush1.bf16.msra.mxu0 0
        %5778 = vmatprep.subr.bf16.mxu0 0
        %5779 = vmatpush1.bf16.msra.mxu0 0
        %5780 = vmatprep.subr.bf16.mxu0 0
        %5781 = vmatpush1.bf16.msra.mxu0 0
        %5782 = vmatprep.subr.bf16.mxu0 0
        %5783 = vmatpush1.bf16.msra.mxu0 0
        %5784 = vmatprep.subr.bf16.mxu0 0
        %5785 = vmatpush1.bf16.msra.mxu0 0
        %5786 = vmatprep.subr.bf16.mxu0 0
        %5787 = vmatpush1.bf16.msra.mxu0 0
        %5788 = vmatprep.subr.bf16.mxu0 0
        %5789 = vmatpush1.bf16.msra.mxu0 0
        %5790 = vmatprep.mubr.bf16.mxu0 0
        %5791 = vmatmul.mubr.bf16.gmra.mrb[0].mxu0 %v5756
        %v5792 = vpop.f32.mrb[0].mxu0
        %v5793 = vadd.f32 %v5741, %v5792
        %v5794 = vpop.f32.mrb[0].mxu0
        %v5795 = vpop.f32.mrb[0].mxu0
        %v5796 = vadd.f32 %v5741, %v5795
        %v5797 = vpop.f32.mrb[0].mxu0
        %5798 = vdwg.mxu0
        %v5799 = vmax.f32 %v5793, 0.0
        %v5800 = vmax.f32 %v5796, 0.0
        %v5801 = vpack.c.bf16 %v5800, %v5799
        %v5802 = vld [vmem:[%s796] sm:$0xf]
        %v5803 = vld [vmem:[%s796 + $0x4] sm:$0xf]
        %v5804 = vld [vmem:[%s796 + $0x8] sm:$0xf]
        %v5805 = vld [vmem:[%s796 + $0xc] sm:$0xf]
        %v5806 = vld [vmem:[%s796 + $0x10] sm:$0xf]
        %v5807 = vld [vmem:[%s796 + $0x14] sm:$0xf]
        %v5808 = vld [vmem:[%s796 + $0x18] sm:$0xf]
        %v5809 = vld [vmem:[%s796 + $0x1c] sm:$0xf]
        %v5810 = vld [vmem:[%s804] sm:$0x1]
        %v5812 = vlaneseq
        %v5813 = vshrl.u32 %v5812, 7
        %v5814 = vsub.s32 0, %v5813
        %v5815 = vrot.slane %v5810, %v5814
        %v5825 = vunpack.c.l.b16 %v5802
        %v5826 = vunpack.c.l.b16 %v5803
        %v5827 = vunpack.c.l.b16 %v5804
        %v5828 = vunpack.c.l.b16 %v5805
        %v5829 = vunpack.c.l.b16 %v5806
        %v5830 = vunpack.c.l.b16 %v5807
        %v5831 = vunpack.c.l.b16 %v5808
        %v5832 = vunpack.c.l.b16 %v5809
        %v5833 = vpack.c.b16 %v5826, %v5825
        %v5834 = vpack.c.b16 %v5828, %v5827
        %v5835 = vpack.c.b16 %v5830, %v5829
        %v5836 = vpack.c.b16 %v5832, %v5831
        %vm5841 = vcmask 523264
        %v5843 = vsel %vm5841, %v5801, 0
        %5845 = vmatprep.subr.bf16.mxu0 0
        %5846 = vmatpush1.bf16.msra.mxu0 %v5833
        %5847 = vmatprep.subr.bf16.mxu0 0
        %5848 = vmatpush1.bf16.msra.mxu0 %v5834
        %5849 = vmatprep.subr.bf16.mxu0 0
        %5850 = vmatpush1.bf16.msra.mxu0 %v5835
        %5851 = vmatprep.subr.bf16.mxu0 0
        %5852 = vmatpush1.bf16.msra.mxu0 %v5836
        %5853 = vmatprep.subr.bf16.mxu0 0
        %5854 = vmatpush1.bf16.msra.mxu0 0
        %5855 = vmatprep.subr.bf16.mxu0 0
        %5856 = vmatpush1.bf16.msra.mxu0 0
        %5857 = vmatprep.subr.bf16.mxu0 0
        %5858 = vmatpush1.bf16.msra.mxu0 0
        %5859 = vmatprep.subr.bf16.mxu0 0
        %5860 = vmatpush1.bf16.msra.mxu0 0
        %5861 = vmatprep.subr.bf16.mxu0 0
        %5862 = vmatpush1.bf16.msra.mxu0 0
        %5863 = vmatprep.subr.bf16.mxu0 0
        %5864 = vmatpush1.bf16.msra.mxu0 0
        %5865 = vmatprep.subr.bf16.mxu0 0
        %5866 = vmatpush1.bf16.msra.mxu0 0
        %5867 = vmatprep.subr.bf16.mxu0 0
        %5868 = vmatpush1.bf16.msra.mxu0 0
        %5869 = vmatprep.subr.bf16.mxu0 0
        %5870 = vmatpush1.bf16.msra.mxu0 0
        %5871 = vmatprep.subr.bf16.mxu0 0
        %5872 = vmatpush1.bf16.msra.mxu0 0
        %5873 = vmatprep.subr.bf16.mxu0 0
        %5874 = vmatpush1.bf16.msra.mxu0 0
        %5875 = vmatprep.subr.bf16.mxu0 0
        %5876 = vmatpush1.bf16.msra.mxu0 0
        %5877 = vmatprep.mubr.bf16.mxu0 0
        %5878 = vmatmul.mubr.bf16.gmra.mrb[0].mxu0 %v5843
        %v5879 = vpop.f32.mrb[0].mxu0
        %v5880 = vadd.f32 %v5815, %v5879
        %v5881 = vpop.f32.mrb[0].mxu0
        %v5882 = vpop.f32.mrb[0].mxu0
        %v5883 = vadd.f32 %v5815, %v5882
        %v5884 = vpop.f32.mrb[0].mxu0
        %5885 = vdwg.mxu0
        %v5886 = vadd.f32 %v5677, %v5880
        %v5887 = vadd.f32 %v5678, %v5883
        %5888 = vst.msk [vmem:[#allocation2] sm:$0xff] %vm954, %v5886
        %5889 = vst.msk [vmem:[#allocation2 + $0x8] sm:$0xff] %vm954, %v5887
        %p5890 = scmp.eq.s32.totalorder %s55, 1
        // Predicated region
        $region137: #{tpu_custom_call.1} parent=75 // pred_check
          %p5891 = pneg %p5890
        $region138: #{tpu_custom_call.1} parent=75 // pred_check_branch
          %5893 = sbr.rel (%p5891) target = $region140
        $region139: #{tpu_custom_call.1} parent=75 // pred_region
          %v5894 = vld [vmem:[#allocation23] sm:$0x1]
          %v5895 = vld [vmem:[#allocation24] sm:$0x1]
          %v5896 = vsel %vm954, %v5886, 0.0
          %5897 = vadd.xlane.f32.xlu0 %v5896
          %v5898 = vpop.xlane.xlu0 %5897
          %v5899 = vsel %vm954, %v5887, 0.0
          %5900 = vadd.xlane.f32.xlu0 %v5899
          %v5901 = vpop.xlane.xlu0 %5900
          %v5902 = vmul.f32 %v5898, %v961
          %v5903 = vmul.f32 %v5901, %v961
          %v5904 = vsub.f32 %v5886, %v5902
          %v5905 = vsub.f32 %v5887, %v5903
          %v5906 = vmul.f32 %v5904, %v5904
          %v5907 = vmul.f32 %v5905, %v5905
          %v5908 = vsel %vm954, %v5906, 0.0
          %5909 = vadd.xlane.f32.xlu0 %v5908
          %v5910 = vpop.xlane.xlu0 %5909
          %v5911 = vsel %vm954, %v5907, 0.0
          %5912 = vadd.xlane.f32.xlu0 %v5911
          %v5913 = vpop.xlane.xlu0 %5912
          %v5914 = vmul.f32 %v5910, 0.032258064
          %v5915 = vmul.f32 %v5913, 0.032258064
          %v5916 = vrsqrt.pop %v5914
          %v5917 = vmul.f32 %v5914, %v5916
          %vm5918 = vcmp.eq.f32.partialorder %v5914, inf
          %v5919 = vsel %vm5918, %v5914, %v5917
          %vm5920 = vcmp.eq.f32.partialorder %v5914, 0.0
          %v5921 = vand.u32 %v5914, 2147483648
          %v5922 = vsel %vm5920, %v5921, %v5919
          %v5923 = vrsqrt.pop %v5915
          %v5924 = vmul.f32 %v5915, %v5923
          %vm5925 = vcmp.eq.f32.partialorder %v5915, inf
          %v5926 = vsel %vm5925, %v5915, %v5924
          %vm5927 = vcmp.eq.f32.partialorder %v5915, 0.0
          %v5928 = vand.u32 %v5915, 2147483648
          %v5929 = vsel %vm5927, %v5928, %v5926
          %v5930 = vadd.f32 %v5922, 1e-06
          %v5931 = vadd.f32 %v5929, 1e-06
          %v5932 = vrcp.pop %v5930
          %v5933 = vrcp.pop %v5931
          %v5934 = vmul.f32 %v5904, %v5932
          %v5935 = vmul.f32 %v5905, %v5933
          %v5937 = vlaneseq
          %v5938 = vshrl.u32 %v5937, 7
          %v5939 = vsub.s32 0, %v5938
          %v5940 = vrot.slane %v5894, %v5939
          %v5942 = vmul.f32 %v5940, %v5934
          %v5943 = vmul.f32 %v5940, %v5935
          %v5945 = vlaneseq
          %v5946 = vshrl.u32 %v5945, 7
          %v5947 = vsub.s32 0, %v5946
          %v5948 = vrot.slane %v5895, %v5947
          %v5950 = vadd.f32 %v5942, %v5948
          %v5951 = vadd.f32 %v5943, %v5948
          %5952 = vst.msk [vmem:[%s927] sm:$0xff] %vm954, %v5950
          %5953 = vst.msk [vmem:[%s927 + $0x8] sm:$0xff] %vm954, %v5951
        $region140: #{tpu_custom_call.1} parent=75 // pred_fallthru
          _
        %s5954 = sand.u32 %s424, 1
        %s5955 = scalar_lea.sflag [#allocation5], %s5954
        %s5956 = sand.u32 %s424, 1
        %s5957 = smul.addr %s5956, 16
        %s5958 = scalar_lea.vmem [#allocation26], %s5957
        // Predicated region
        $region141: #{tpu_custom_call.1} parent=75 // pred_check
          %p5959 = pneg %p434
        $region142: #{tpu_custom_call.1} parent=75 // pred_check_branch
          %5961 = sbr.rel (%p5959) target = $region144
        $region143: #{tpu_custom_call.1} parent=75 // pred_region
          %s5962 = smul.u32 2, %s54
          %s5964 = ssub.s32 256, 256
          %5965 = vsyncadd %s5955, %s5964
          %s5966 = smul.addr %s5962, 128
          %s5967 = scalar_lea.hbm %s14, %s5966
          %s5968 = sshll.u32 %s5958, 4
          %s5969 = int_to_ptr.vmem [resolvable:$true] %s5968
          %5974 = dma.vmem_to_hbm [thread:$0]  %s5969, 256, %s5967, %s5955, 128, 128, 8
        $region144: #{tpu_custom_call.1} parent=75 // pred_fallthru
          _
      $region76: #{tpu_custom_call.1} parent=5 // pred_fallthru
        _
      %p5975 = scmp.le.s32.totalorder 2, %s45
      // Predicated region
      $region145: #{tpu_custom_call.1} parent=5 // pred_check
        %p5976 = pneg %p5975
      $region146: #{tpu_custom_call.1} parent=5 // pred_check_branch
        %5978 = sbr.rel (%p5976) target = $region148
      $region147: #{tpu_custom_call.1} parent=5 // pred_region
        %s5979 = ssub.s32 %s45, 2
        // Predicated region
        $region149: #{tpu_custom_call.1} parent=147 // pred_check
          %p5980 = pneg %p440
        $region150: #{tpu_custom_call.1} parent=147 // pred_check_branch
          %5982 = sbr.rel (%p5980) target = $region152
        $region151: #{tpu_custom_call.1} parent=147 // pred_region
          %s5983 = sand.u32 %s425, 1
          %s5984 = scalar_lea.sflag [#allocation5], %s5983
          %s5985 = sand.u32 %s425, 1
          %s5986 = smul.addr %s5985, 16
          %s5987 = scalar_lea.vmem [#allocation26], %s5986
          %5988 = dma.done %s5984, 256
        $region152: #{tpu_custom_call.1} parent=147 // pred_fallthru
          _
      $region148: #{tpu_custom_call.1} parent=5 // pred_fallthru
        _
    $region6: #{tpu_custom_call.1} parent=1 // loop_footer
      %s49 = sadd.s32 1, %s45
    $region7: #{tpu_custom_call.1} parent=1 // loop_footer_branch
      %44 = sbr.rel target = $region3
    $region8: #{tpu_custom_call.1} parent=1 // loop_exit
      _
    %5989 = vsyncpa [#allocation4], 1
    %s5990 = scalar_lea.sflag [#allocation4], 1
    %5991 = vsyncpa %s5990, 1
    %5992 = vsyncpa [#allocation7], 1
    %s5993 = scalar_lea.sflag [#allocation7], 1
    %5994 = vsyncpa %s5993, 1
    %5995 = vsyncpa [#allocation10], 1
    %s5996 = scalar_lea.sflag [#allocation10], 1
    %5997 = vsyncpa %s5996, 1
    %5998 = vsyncpa [#allocation13], 1
    %s5999 = scalar_lea.sflag [#allocation13], 1
    %6000 = vsyncpa %s5999, 1
    %6001 = vsyncpa [#allocation16], 1
    %s6002 = scalar_lea.sflag [#allocation16], 1
    %6003 = vsyncpa %s6002, 1
    %6004 = vsyncpa [#allocation19], 1
    %s6005 = scalar_lea.sflag [#allocation19], 1
    %6006 = vsyncpa %s6005, 1
    %6007 = vsyncpa [#allocation22], 1
    %s6008 = scalar_lea.sflag [#allocation22], 1
    %6009 = vsyncpa %s6008, 1
    %6010 = vsyncpa [#allocation25], 1
    %6011 = vsyncpa [#allocation5], 1
    %s6012 = scalar_lea.sflag [#allocation5], 1
    %6013 = vsyncpa %s6012, 1

</llo_original>
